<compile_context>
chip_gen: v7x
topology: tpu7x:2x2x1
jax: 0.10.0
libtpu: 0.0.40
codegen_flags: <defaults>
</compile_context>

<pallas_src>
import jax
import jax.numpy as jnp
from jax.experimental import pallas as pl
from jax.experimental.pallas import tpu as pltpu


# ----------------------------------------------------------------------------
# Fused kernel: interleaved 2-layer LSTM -> MHA (last query) -> Linear/ReLU/Linear
# ----------------------------------------------------------------------------
def fused_lstm_attn_kernel(
    x_ref,                                   # (T*B, D)  time-major flattened input
    wih0_ref, b0_ref,                        # (D, 4H), (1, 4H)  layer-0 input proj (+fused bias)
    wblk_ref, b1_ref,                        # (2H, 8H), (1, 4H) interleaved recurrent block weight
    wq_ref, bq_ref, wk_ref, bk_ref, wv_ref, bv_ref,   # (H, E), (1, E) each
    wo_ref, bo_ref,                          # (E, E), (1, E)
    seg_ref, segt_ref,                       # (E, nh), (nh, E) head segment matrices
    wf1_ref, bf1_ref, wf2_ref, bf2_ref,      # (E, 32), (1, 32), (32, 3), (1, 3)
    out_ref,                                 # (B, 3)
    h1seq_ref,                               # VMEM scratch: (T*B, H) layer-1 hidden sequence
):
    f32 = jnp.float32
    B = out_ref.shape[0]
    TB = x_ref.shape[0]
    T = TB // B
    H = wblk_ref.shape[0] // 2
    G = 4 * H
    E = wq_ref.shape[1]
    nh = seg_ref.shape[1]
    hd = E // nh
    scale = 1.0 / (hd ** 0.5)

    def cell(gates, c_prev):
        # PyTorch gate order i, f, g, o (static 64-lane slices -> XLU, off the MXU path).
        i = jax.nn.sigmoid(gates[:, 0:H])
        f = jax.nn.sigmoid(gates[:, H:2 * H])
        g = jnp.tanh(gates[:, 2 * H:3 * H])
        o = jax.nn.sigmoid(gates[:, 3 * H:4 * H])
        c = f * c_prev + i * g
        return o * jnp.tanh(c), c

    # ---- Hoisted layer-0 input projection: ONE dense (T*B, D) @ (D, 4H) matmul ----
    gx0 = jnp.dot(x_ref[...], wih0_ref[...], preferred_element_type=f32) + b0_ref[...]

    wblk = wblk_ref[...]
    b1 = b1_ref[...]

    # ---- Interleaved 2-layer recurrence (macro-steps s = 0..T, statically unrolled) ----
    # At macro-step s: layer-0 computes time s (if s < T) and layer-1 computes time s-1
    # (if s >= 1); both recurrent contributions come from ONE (B, 2H) @ (2H, 8H) matmul.
    h0 = jnp.zeros((B, H), f32)
    c0 = jnp.zeros((B, H), f32)
    h1 = jnp.zeros((B, H), f32)
    c1 = jnp.zeros((B, H), f32)

    # s = 0: recurrent contribution is exactly zero -> skip the matmul.
    h0, c0 = cell(gx0[0:B], c0)

    for s in range(1, T + 1):
        lhs = jnp.concatenate([h0, h1], axis=1)                        # (B, 2H)
        blk = jnp.dot(lhs, wblk, preferred_element_type=f32)           # (B, 8H)
        # layer-1, time s-1: input = h0_{s-1}, previous hidden = h1_{s-2}
        h1, c1 = cell(blk[:, G:2 * G] + b1, c1)
        h1seq_ref[(s - 1) * B:s * B, :] = h1
        # layer-0, time s
        if s < T:
            h0, c0 = cell(gx0[s * B:(s + 1) * B] + blk[:, 0:G], c0)
    # TODO(synk): nn.LSTM inter-layer dropout (p=0.2) is train-only -> identity here.

    h1_all = h1seq_ref[...]                                            # (T*B, H)

    # ---- Multi-head self-attention, last query position only ----
    q_last = jnp.dot(h1, wq_ref[...], preferred_element_type=f32) + bq_ref[...]       # (B, E)
    k_all = jnp.dot(h1_all, wk_ref[...], preferred_element_type=f32) + bk_ref[...]    # (T*B, E)
    v_all = jnp.dot(h1_all, wv_ref[...], preferred_element_type=f32) + bv_ref[...]    # (T*B, E)

    # Per-head scores via segment-sum matmul (no 16-lane per-head slicing):
    # s[t*B+b, h] = sum_{e in head h} q_last[b, e] * k[t*B+b, e]
    q_rep = jnp.concatenate([q_last] * T, axis=0)                      # (T*B, E)
    s_all = jnp.dot(k_all * q_rep, seg_ref[...],
                    preferred_element_type=f32) * scale                # (T*B, nh)

    # Softmax over time (T static & tiny -> unrolled elementwise reductions).
    m = s_all[0:B]
    for t in range(1, T):
        m = jnp.maximum(m, s_all[t * B:(t + 1) * B])
    ex = []
    den = jnp.zeros((B, nh), f32)
    for t in range(T):
        e = jnp.exp(s_all[t * B:(t + 1) * B] - m)
        ex.append(e)
        den = den + e
    inv = pl.reciprocal(den, approx=True)                              # EUP slot, off MXU path

    # Broadcast per-head probabilities across that head's lanes, weight V, reduce over time.
    ctx = jnp.zeros((B, E), f32)
    for t in range(T):
        pf = jnp.dot(ex[t] * inv, segt_ref[...], preferred_element_type=f32)   # (B, E)
        ctx = ctx + pf * v_all[t * B:(t + 1) * B]
    # TODO(synk): attention dropout (p=0.1) is train-only -> identity here.
    attn = jnp.dot(ctx, wo_ref[...], preferred_element_type=f32) + bo_ref[...]  # (B, E)

    # ---- MLP head: Linear(E,32) -> ReLU -> (Dropout=identity) -> Linear(32,3) ----
    hfc = jnp.maximum(
        jnp.dot(attn, wf1_ref[...], preferred_element_type=f32) + bf1_ref[...], 0.0)
    out_ref[...] = jnp.dot(hfc, wf2_ref[...], preferred_element_type=f32) + bf2_ref[...]


# ----------------------------------------------------------------------------
# Parameter construction (PyTorch-like layout) + one-time kernel weight packing.
# ----------------------------------------------------------------------------
def init_params(key, input_size, hidden_size=64):
    H = hidden_size
    ks = jax.random.split(key, 16)

    def u(k, shape, scale):
        return jax.random.uniform(k, shape, jnp.float32, -scale, scale)

    s = 1.0 / (H ** 0.5)
    return {
        'lstm0': (u(ks[0], (4 * H, input_size), s), u(ks[1], (4 * H, H), s),
                  u(ks[2], (4 * H,), s), u(ks[3], (4 * H,), s)),
        'lstm1': (u(ks[4], (4 * H, H), s), u(ks[5], (4 * H, H), s),
                  u(ks[6], (4 * H,), s), u(ks[7], (4 * H,), s)),
        'attn': {
            'wq': u(ks[8], (H, H), s), 'wk': u(ks[9], (H, H), s),
            'wv': u(ks[10], (H, H), s),
            'bq': jnp.zeros((H,), jnp.float32),
            'bk': jnp.zeros((H,), jnp.float32),
            'bv': jnp.zeros((H,), jnp.float32),
            'wo': u(ks[11], (H, H), s), 'bo': jnp.zeros((H,), jnp.float32),
            'w1': u(ks[12], (32, H), s), 'b1': u(ks[13], (32,), s),
            'w2': u(ks[14], (3, 32), 1.0 / (32 ** 0.5)),
            'b2': u(ks[15], (3,), 1.0 / (32 ** 0.5)),
        },
    }


def prepare_params(params):
    """One-time weight packing for the fused kernel (kept out of the per-call forward)."""
    f32 = jnp.float32
    w_ih0, w_hh0, b_ih0, b_hh0 = params['lstm0']
    w_ih1, w_hh1, b_ih1, b_hh1 = params['lstm1']
    a = params['attn']
    H = w_hh0.shape[1]
    nh = 4
    hd = H // nh

    # Layer-0 input projection (bias folded: b_ih0 + b_hh0).
    wih0 = w_ih0.T.astype(f32)                                    # (D, 4H)
    b0 = (b_ih0 + b_hh0).reshape(1, -1).astype(f32)               # (1, 4H)

    # Interleaved recurrent block weight: [h0 | h1] @ [[Whh0, Wih1], [0, Whh1]].
    top = jnp.concatenate([w_hh0.T, w_ih1.T], axis=1)             # (H, 8H)
    bot = jnp.concatenate([jnp.zeros((H, 4 * H), f32), w_hh1.T], axis=1)
    wblk = jnp.concatenate([top, bot], axis=0).astype(f32)        # (2H, 8H)
    b1 = (b_ih1 + b_hh1).reshape(1, -1).astype(f32)               # (1, 4H)

    # Head segment matrices: seg[e, h] = 1 iff lane e belongs to head h.
    seg = (jnp.arange(H)[:, None] // hd == jnp.arange(nh)[None, :]).astype(f32)
    segt = seg.T

    # TODO(synk): optional bf16 cast of the large projection weights (halves weight DMA)
    # deliberately skipped to keep exact f32 parity with the PyTorch reference.
    return (
        wih0, b0, wblk, b1,
        a['wq'].T, a['bq'].reshape(1, -1),
        a['wk'].T, a['bk'].reshape(1, -1),
        a['wv'].T, a['bv'].reshape(1, -1),
        a['wo'].T, a['bo'].reshape(1, -1),
        seg, segt,
        a['w1'].T, a['b1'].reshape(1, -1),
        a['w2'].T, a['b2'].reshape(1, -1),
    )


# ----------------------------------------------------------------------------
# Forward: single fused pallas_call (everything resident in VMEM at this size).
# ----------------------------------------------------------------------------
@jax.jit
def lstm_model_forward(x, prepped):
    """x: (B, T, input_size) batch-first, like the PyTorch module. Returns (B, 3)."""
    B, T, D = x.shape
    wblk = prepped[2]
    H = wblk.shape[0] // 2
    n_out = prepped[-2].shape[1]                       # wf2 is (32, 3)

    x_flat = jnp.transpose(x, (1, 0, 2)).reshape(T * B, D)   # time-major, flattened (T*B, D)

    vmem = pl.BlockSpec(memory_space=pltpu.MemorySpace.VMEM)
    n_in = 1 + len(prepped)
    # TODO(synk): when B grows, add a batch grid axis with
    # dimension_semantics=("parallel",) (uses the 2nd v7x TensorCore), tile B via BlockSpec,
    # and compute the hoisted input projection per batch tile so gx0 never approaches the
    # v7x 64 MiB VMEM / 32 MiB scoped default.
    return pl.pallas_call(
        fused_lstm_attn_kernel,
        out_shape=jax.ShapeDtypeStruct((B, n_out), jnp.float32),
        in_specs=[vmem] * n_in,
        out_specs=vmem,
        scratch_shapes=[pltpu.VMEM((T * B, H), jnp.float32)],   # layer-1 hidden sequence
    )(x_flat, *prepped)


if __name__ == "__main__":
    key = jax.random.PRNGKey(0)
    k_x, k_p = jax.random.split(key)

    B, T, INPUT_SIZE, HIDDEN = 2, 8, 8, 64
    x = jax.random.normal(k_x, (B, T, INPUT_SIZE), dtype=jnp.float32)
    params = init_params(k_p, INPUT_SIZE, HIDDEN)
    prepped = prepare_params(params)          # one-time weight packing (not per call)

    out = lstm_model_forward(x, prepped)
    out = jax.block_until_ready(out)
    assert out.shape == (B, 3), out.shape
    assert bool(jnp.all(jnp.isfinite(out)))
    print("KERNEL_OK")
</pallas_src>

<mosaic_0001>
module attributes {stable_mosaic.version = 11 : i64} {
  func.func @fused_lstm_attn_kernel(%arg0: memref<16x8xf32, #tpu.memory_space<vmem>>, %arg1: memref<8x256xf32, #tpu.memory_space<vmem>>, %arg2: memref<1x256xf32, #tpu.memory_space<vmem>>, %arg3: memref<128x512xf32, #tpu.memory_space<vmem>>, %arg4: memref<1x256xf32, #tpu.memory_space<vmem>>, %arg5: memref<64x64xf32, #tpu.memory_space<vmem>>, %arg6: memref<1x64xf32, #tpu.memory_space<vmem>>, %arg7: memref<64x64xf32, #tpu.memory_space<vmem>>, %arg8: memref<1x64xf32, #tpu.memory_space<vmem>>, %arg9: memref<64x64xf32, #tpu.memory_space<vmem>>, %arg10: memref<1x64xf32, #tpu.memory_space<vmem>>, %arg11: memref<64x64xf32, #tpu.memory_space<vmem>>, %arg12: memref<1x64xf32, #tpu.memory_space<vmem>>, %arg13: memref<64x4xf32, #tpu.memory_space<vmem>>, %arg14: memref<4x64xf32, #tpu.memory_space<vmem>>, %arg15: memref<64x32xf32, #tpu.memory_space<vmem>>, %arg16: memref<1x32xf32, #tpu.memory_space<vmem>>, %arg17: memref<32x3xf32, #tpu.memory_space<vmem>>, %arg18: memref<1x3xf32, #tpu.memory_space<vmem>>, %arg19: memref<2x3xf32, #tpu.memory_space<vmem>>, %arg20: memref<16x64xf32, #tpu.memory_space<vmem>>) attributes {dimension_semantics = [], scalar_prefetch = 0 : i64, scratch_operands = 1 : i64, tpu.core_type = #tpu.core_type<tc>} {
    %c0 = arith.constant 0 : index
    %c0_0 = arith.constant 0 : index
    %0 = vector.load %arg0[%c0, %c0_0] : memref<16x8xf32, #tpu.memory_space<vmem>>, vector<16x8xf32>
    %c0_1 = arith.constant 0 : index
    %c0_2 = arith.constant 0 : index
    %1 = vector.load %arg1[%c0_1, %c0_2] : memref<8x256xf32, #tpu.memory_space<vmem>>, vector<8x256xf32>
    %cst = arith.constant dense<0.000000e+00> : vector<16x256xf32>
    %2 = tpu.matmul %0, %1, %cst {dimension_numbers = #tpu.dot_dimension_numbers<[1], [0], [0], [1], [0, 0, 1, 1], [], []>} : vector<16x8xf32>, vector<8x256xf32>, vector<16x256xf32> -> vector<16x256xf32>
    %c0_3 = arith.constant 0 : index
    %c0_4 = arith.constant 0 : index
    %3 = vector.load %arg2[%c0_3, %c0_4] : memref<1x256xf32, #tpu.memory_space<vmem>>, vector<1x256xf32>
    %4 = vector.broadcast %3 : vector<1x256xf32> to vector<16x256xf32>
    %5 = arith.addf %2, %4 : vector<16x256xf32>
    %c0_5 = arith.constant 0 : index
    %c0_6 = arith.constant 0 : index
    %6 = vector.load %arg3[%c0_5, %c0_6] : memref<128x512xf32, #tpu.memory_space<vmem>>, vector<128x512xf32>
    %c0_7 = arith.constant 0 : index
    %c0_8 = arith.constant 0 : index
    %7 = vector.load %arg4[%c0_7, %c0_8] : memref<1x256xf32, #tpu.memory_space<vmem>>, vector<1x256xf32>
    %cst_9 = arith.constant 0.000000e+00 : f32
    %8 = vector.broadcast %cst_9 : f32 to vector<2x64xf32>
    %cst_10 = arith.constant 0.000000e+00 : f32
    %9 = vector.broadcast %cst_10 : f32 to vector<2x64xf32>
    %cst_11 = arith.constant 0.000000e+00 : f32
    %10 = vector.broadcast %cst_11 : f32 to vector<2x64xf32>
    %11 = vector.extract_strided_slice %5 {offsets = [0, 0], sizes = [2, 256], strides = [1, 1]} : vector<16x256xf32> to vector<2x256xf32>
    %12 = vector.extract_strided_slice %11 {offsets = [0, 0], sizes = [2, 64], strides = [1, 1]} : vector<2x256xf32> to vector<2x64xf32>
    %13 = arith.negf %12 : vector<2x64xf32>
    %14 = math.exp %13 : vector<2x64xf32>
    %cst_12 = arith.constant 1.000000e+00 : f32
    %15 = vector.broadcast %cst_12 : f32 to vector<2x64xf32>
    %16 = arith.addf %15, %14 : vector<2x64xf32>
    %17 = arith.divf %15, %16 : vector<2x64xf32>
    %18 = vector.extract_strided_slice %11 {offsets = [0, 64], sizes = [2, 64], strides = [1, 1]} : vector<2x256xf32> to vector<2x64xf32>
    %19 = arith.negf %18 : vector<2x64xf32>
    %20 = math.exp %19 : vector<2x64xf32>
    %cst_13 = arith.constant 1.000000e+00 : f32
    %21 = vector.broadcast %cst_13 : f32 to vector<2x64xf32>
    %22 = arith.addf %21, %20 : vector<2x64xf32>
    %23 = arith.divf %21, %22 : vector<2x64xf32>
    %24 = vector.extract_strided_slice %11 {offsets = [0, 128], sizes = [2, 64], strides = [1, 1]} : vector<2x256xf32> to vector<2x64xf32>
    %25 = math.tanh %24 : vector<2x64xf32>
    %26 = vector.extract_strided_slice %11 {offsets = [0, 192], sizes = [2, 64], strides = [1, 1]} : vector<2x256xf32> to vector<2x64xf32>
    %27 = arith.negf %26 : vector<2x64xf32>
    %28 = math.exp %27 : vector<2x64xf32>
    %cst_14 = arith.constant 1.000000e+00 : f32
    %29 = vector.broadcast %cst_14 : f32 to vector<2x64xf32>
    %30 = arith.addf %29, %28 : vector<2x64xf32>
    %31 = arith.divf %29, %30 : vector<2x64xf32>
    %32 = arith.mulf %23, %8 : vector<2x64xf32>
    %33 = arith.mulf %17, %25 : vector<2x64xf32>
    %34 = arith.addf %32, %33 : vector<2x64xf32>
    %35 = math.tanh %34 : vector<2x64xf32>
    %36 = arith.mulf %31, %35 : vector<2x64xf32>
    %37 = tpu.concatenate %36, %9 in 1 : vector<2x64xf32>, vector<2x64xf32> -> vector<2x128xf32>
    %cst_15 = arith.constant dense<0.000000e+00> : vector<2x512xf32>
    %38 = tpu.matmul %37, %6, %cst_15 {dimension_numbers = #tpu.dot_dimension_numbers<[1], [0], [0], [1], [0, 0, 1, 1], [], []>} : vector<2x128xf32>, vector<128x512xf32>, vector<2x512xf32> -> vector<2x512xf32>
    %39 = vector.extract_strided_slice %38 {offsets = [0, 256], sizes = [2, 256], strides = [1, 1]} : vector<2x512xf32> to vector<2x256xf32>
    %40 = vector.broadcast %7 : vector<1x256xf32> to vector<2x256xf32>
    %41 = arith.addf %39, %40 : vector<2x256xf32>
    %42 = vector.extract_strided_slice %41 {offsets = [0, 0], sizes = [2, 64], strides = [1, 1]} : vector<2x256xf32> to vector<2x64xf32>
    %43 = arith.negf %42 : vector<2x64xf32>
    %44 = math.exp %43 : vector<2x64xf32>
    %cst_16 = arith.constant 1.000000e+00 : f32
    %45 = vector.broadcast %cst_16 : f32 to vector<2x64xf32>
    %46 = arith.addf %45, %44 : vector<2x64xf32>
    %47 = arith.divf %45, %46 : vector<2x64xf32>
    %48 = vector.extract_strided_slice %41 {offsets = [0, 64], sizes = [2, 64], strides = [1, 1]} : vector<2x256xf32> to vector<2x64xf32>
    %49 = arith.negf %48 : vector<2x64xf32>
    %50 = math.exp %49 : vector<2x64xf32>
    %cst_17 = arith.constant 1.000000e+00 : f32
    %51 = vector.broadcast %cst_17 : f32 to vector<2x64xf32>
    %52 = arith.addf %51, %50 : vector<2x64xf32>
    %53 = arith.divf %51, %52 : vector<2x64xf32>
    %54 = vector.extract_strided_slice %41 {offsets = [0, 128], sizes = [2, 64], strides = [1, 1]} : vector<2x256xf32> to vector<2x64xf32>
    %55 = math.tanh %54 : vector<2x64xf32>
    %56 = vector.extract_strided_slice %41 {offsets = [0, 192], sizes = [2, 64], strides = [1, 1]} : vector<2x256xf32> to vector<2x64xf32>
    %57 = arith.negf %56 : vector<2x64xf32>
    %58 = math.exp %57 : vector<2x64xf32>
    %cst_18 = arith.constant 1.000000e+00 : f32
    %59 = vector.broadcast %cst_18 : f32 to vector<2x64xf32>
    %60 = arith.addf %59, %58 : vector<2x64xf32>
    %61 = arith.divf %59, %60 : vector<2x64xf32>
    %62 = arith.mulf %53, %10 : vector<2x64xf32>
    %63 = arith.mulf %47, %55 : vector<2x64xf32>
    %64 = arith.addf %62, %63 : vector<2x64xf32>
    %65 = math.tanh %64 : vector<2x64xf32>
    %66 = arith.mulf %61, %65 : vector<2x64xf32>
    %c0_19 = arith.constant 0 : index
    %c0_20 = arith.constant 0 : index
    %67 = vector.load %arg20[%c0_19, %c0_20] : memref<16x64xf32, #tpu.memory_space<vmem>>, vector<2x64xf32>
    tpu.vector_store %arg20[%c0_19, %c0_20], %66 {strides = array<i32>} : memref<16x64xf32, #tpu.memory_space<vmem>>, vector<2x64xf32>,
    %68 = vector.extract_strided_slice %5 {offsets = [2, 0], sizes = [2, 256], strides = [1, 1]} : vector<16x256xf32> to vector<2x256xf32>
    %69 = vector.extract_strided_slice %38 {offsets = [0, 0], sizes = [2, 256], strides = [1, 1]} : vector<2x512xf32> to vector<2x256xf32>
    %70 = arith.addf %68, %69 : vector<2x256xf32>
    %71 = vector.extract_strided_slice %70 {offsets = [0, 0], sizes = [2, 64], strides = [1, 1]} : vector<2x256xf32> to vector<2x64xf32>
    %72 = arith.negf %71 : vector<2x64xf32>
    %73 = math.exp %72 : vector<2x64xf32>
    %cst_21 = arith.constant 1.000000e+00 : f32
    %74 = vector.broadcast %cst_21 : f32 to vector<2x64xf32>
    %75 = arith.addf %74, %73 : vector<2x64xf32>
    %76 = arith.divf %74, %75 : vector<2x64xf32>
    %77 = vector.extract_strided_slice %70 {offsets = [0, 64], sizes = [2, 64], strides = [1, 1]} : vector<2x256xf32> to vector<2x64xf32>
    %78 = arith.negf %77 : vector<2x64xf32>
    %79 = math.exp %78 : vector<2x64xf32>
    %cst_22 = arith.constant 1.000000e+00 : f32
    %80 = vector.broadcast %cst_22 : f32 to vector<2x64xf32>
    %81 = arith.addf %80, %79 : vector<2x64xf32>
    %82 = arith.divf %80, %81 : vector<2x64xf32>
    %83 = vector.extract_strided_slice %70 {offsets = [0, 128], sizes = [2, 64], strides = [1, 1]} : vector<2x256xf32> to vector<2x64xf32>
    %84 = math.tanh %83 : vector<2x64xf32>
    %85 = vector.extract_strided_slice %70 {offsets = [0, 192], sizes = [2, 64], strides = [1, 1]} : vector<2x256xf32> to vector<2x64xf32>
    %86 = arith.negf %85 : vector<2x64xf32>
    %87 = math.exp %86 : vector<2x64xf32>
    %cst_23 = arith.constant 1.000000e+00 : f32
    %88 = vector.broadcast %cst_23 : f32 to vector<2x64xf32>
    %89 = arith.addf %88, %87 : vector<2x64xf32>
    %90 = arith.divf %88, %89 : vector<2x64xf32>
    %91 = arith.mulf %82, %34 : vector<2x64xf32>
    %92 = arith.mulf %76, %84 : vector<2x64xf32>
    %93 = arith.addf %91, %92 : vector<2x64xf32>
    %94 = math.tanh %93 : vector<2x64xf32>
    %95 = arith.mulf %90, %94 : vector<2x64xf32>
    %96 = tpu.concatenate %95, %66 in 1 : vector<2x64xf32>, vector<2x64xf32> -> vector<2x128xf32>
    %cst_24 = arith.constant dense<0.000000e+00> : vector<2x512xf32>
    %97 = tpu.matmul %96, %6, %cst_24 {dimension_numbers = #tpu.dot_dimension_numbers<[1], [0], [0], [1], [0, 0, 1, 1], [], []>} : vector<2x128xf32>, vector<128x512xf32>, vector<2x512xf32> -> vector<2x512xf32>
    %98 = vector.extract_strided_slice %97 {offsets = [0, 256], sizes = [2, 256], strides = [1, 1]} : vector<2x512xf32> to vector<2x256xf32>
    %99 = vector.broadcast %7 : vector<1x256xf32> to vector<2x256xf32>
    %100 = arith.addf %98, %99 : vector<2x256xf32>
    %101 = vector.extract_strided_slice %100 {offsets = [0, 0], sizes = [2, 64], strides = [1, 1]} : vector<2x256xf32> to vector<2x64xf32>
    %102 = arith.negf %101 : vector<2x64xf32>
    %103 = math.exp %102 : vector<2x64xf32>
    %cst_25 = arith.constant 1.000000e+00 : f32
    %104 = vector.broadcast %cst_25 : f32 to vector<2x64xf32>
    %105 = arith.addf %104, %103 : vector<2x64xf32>
    %106 = arith.divf %104, %105 : vector<2x64xf32>
    %107 = vector.extract_strided_slice %100 {offsets = [0, 64], sizes = [2, 64], strides = [1, 1]} : vector<2x256xf32> to vector<2x64xf32>
    %108 = arith.negf %107 : vector<2x64xf32>
    %109 = math.exp %108 : vector<2x64xf32>
    %cst_26 = arith.constant 1.000000e+00 : f32
    %110 = vector.broadcast %cst_26 : f32 to vector<2x64xf32>
    %111 = arith.addf %110, %109 : vector<2x64xf32>
    %112 = arith.divf %110, %111 : vector<2x64xf32>
    %113 = vector.extract_strided_slice %100 {offsets = [0, 128], sizes = [2, 64], strides = [1, 1]} : vector<2x256xf32> to vector<2x64xf32>
    %114 = math.tanh %113 : vector<2x64xf32>
    %115 = vector.extract_strided_slice %100 {offsets = [0, 192], sizes = [2, 64], strides = [1, 1]} : vector<2x256xf32> to vector<2x64xf32>
    %116 = arith.negf %115 : vector<2x64xf32>
    %117 = math.exp %116 : vector<2x64xf32>
    %cst_27 = arith.constant 1.000000e+00 : f32
    %118 = vector.broadcast %cst_27 : f32 to vector<2x64xf32>
    %119 = arith.addf %118, %117 : vector<2x64xf32>
    %120 = arith.divf %118, %119 : vector<2x64xf32>
    %121 = arith.mulf %112, %64 : vector<2x64xf32>
    %122 = arith.mulf %106, %114 : vector<2x64xf32>
    %123 = arith.addf %121, %122 : vector<2x64xf32>
    %124 = math.tanh %123 : vector<2x64xf32>
    %125 = arith.mulf %120, %124 : vector<2x64xf32>
    %c2 = arith.constant 2 : index
    %c0_28 = arith.constant 0 : index
    %126 = vector.load %arg20[%c2, %c0_28] : memref<16x64xf32, #tpu.memory_space<vmem>>, vector<2x64xf32>
    tpu.vector_store %arg20[%c2, %c0_28], %125 {strides = array<i32>} : memref<16x64xf32, #tpu.memory_space<vmem>>, vector<2x64xf32>,
    %127 = vector.extract_strided_slice %5 {offsets = [4, 0], sizes = [2, 256], strides = [1, 1]} : vector<16x256xf32> to vector<2x256xf32>
    %128 = vector.extract_strided_slice %97 {offsets = [0, 0], sizes = [2, 256], strides = [1, 1]} : vector<2x512xf32> to vector<2x256xf32>
    %129 = arith.addf %127, %128 : vector<2x256xf32>
    %130 = vector.extract_strided_slice %129 {offsets = [0, 0], sizes = [2, 64], strides = [1, 1]} : vector<2x256xf32> to vector<2x64xf32>
    %131 = arith.negf %130 : vector<2x64xf32>
    %132 = math.exp %131 : vector<2x64xf32>
    %cst_29 = arith.constant 1.000000e+00 : f32
    %133 = vector.broadcast %cst_29 : f32 to vector<2x64xf32>
    %134 = arith.addf %133, %132 : vector<2x64xf32>
    %135 = arith.divf %133, %134 : vector<2x64xf32>
    %136 = vector.extract_strided_slice %129 {offsets = [0, 64], sizes = [2, 64], strides = [1, 1]} : vector<2x256xf32> to vector<2x64xf32>
    %137 = arith.negf %136 : vector<2x64xf32>
    %138 = math.exp %137 : vector<2x64xf32>
    %cst_30 = arith.constant 1.000000e+00 : f32
    %139 = vector.broadcast %cst_30 : f32 to vector<2x64xf32>
    %140 = arith.addf %139, %138 : vector<2x64xf32>
    %141 = arith.divf %139, %140 : vector<2x64xf32>
    %142 = vector.extract_strided_slice %129 {offsets = [0, 128], sizes = [2, 64], strides = [1, 1]} : vector<2x256xf32> to vector<2x64xf32>
    %143 = math.tanh %142 : vector<2x64xf32>
    %144 = vector.extract_strided_slice %129 {offsets = [0, 192], sizes = [2, 64], strides = [1, 1]} : vector<2x256xf32> to vector<2x64xf32>
    %145 = arith.negf %144 : vector<2x64xf32>
    %146 = math.exp %145 : vector<2x64xf32>
    %cst_31 = arith.constant 1.000000e+00 : f32
    %147 = vector.broadcast %cst_31 : f32 to vector<2x64xf32>
    %148 = arith.addf %147, %146 : vector<2x64xf32>
    %149 = arith.divf %147, %148 : vector<2x64xf32>
    %150 = arith.mulf %141, %93 : vector<2x64xf32>
    %151 = arith.mulf %135, %143 : vector<2x64xf32>
    %152 = arith.addf %150, %151 : vector<2x64xf32>
    %153 = math.tanh %152 : vector<2x64xf32>
    %154 = arith.mulf %149, %153 : vector<2x64xf32>
    %155 = tpu.concatenate %154, %125 in 1 : vector<2x64xf32>, vector<2x64xf32> -> vector<2x128xf32>
    %cst_32 = arith.constant dense<0.000000e+00> : vector<2x512xf32>
    %156 = tpu.matmul %155, %6, %cst_32 {dimension_numbers = #tpu.dot_dimension_numbers<[1], [0], [0], [1], [0, 0, 1, 1], [], []>} : vector<2x128xf32>, vector<128x512xf32>, vector<2x512xf32> -> vector<2x512xf32>
    %157 = vector.extract_strided_slice %156 {offsets = [0, 256], sizes = [2, 256], strides = [1, 1]} : vector<2x512xf32> to vector<2x256xf32>
    %158 = vector.broadcast %7 : vector<1x256xf32> to vector<2x256xf32>
    %159 = arith.addf %157, %158 : vector<2x256xf32>
    %160 = vector.extract_strided_slice %159 {offsets = [0, 0], sizes = [2, 64], strides = [1, 1]} : vector<2x256xf32> to vector<2x64xf32>
    %161 = arith.negf %160 : vector<2x64xf32>
    %162 = math.exp %161 : vector<2x64xf32>
    %cst_33 = arith.constant 1.000000e+00 : f32
    %163 = vector.broadcast %cst_33 : f32 to vector<2x64xf32>
    %164 = arith.addf %163, %162 : vector<2x64xf32>
    %165 = arith.divf %163, %164 : vector<2x64xf32>
    %166 = vector.extract_strided_slice %159 {offsets = [0, 64], sizes = [2, 64], strides = [1, 1]} : vector<2x256xf32> to vector<2x64xf32>
    %167 = arith.negf %166 : vector<2x64xf32>
    %168 = math.exp %167 : vector<2x64xf32>
    %cst_34 = arith.constant 1.000000e+00 : f32
    %169 = vector.broadcast %cst_34 : f32 to vector<2x64xf32>
    %170 = arith.addf %169, %168 : vector<2x64xf32>
    %171 = arith.divf %169, %170 : vector<2x64xf32>
    %172 = vector.extract_strided_slice %159 {offsets = [0, 128], sizes = [2, 64], strides = [1, 1]} : vector<2x256xf32> to vector<2x64xf32>
    %173 = math.tanh %172 : vector<2x64xf32>
    %174 = vector.extract_strided_slice %159 {offsets = [0, 192], sizes = [2, 64], strides = [1, 1]} : vector<2x256xf32> to vector<2x64xf32>
    %175 = arith.negf %174 : vector<2x64xf32>
    %176 = math.exp %175 : vector<2x64xf32>
    %cst_35 = arith.constant 1.000000e+00 : f32
    %177 = vector.broadcast %cst_35 : f32 to vector<2x64xf32>
    %178 = arith.addf %177, %176 : vector<2x64xf32>
    %179 = arith.divf %177, %178 : vector<2x64xf32>
    %180 = arith.mulf %171, %123 : vector<2x64xf32>
    %181 = arith.mulf %165, %173 : vector<2x64xf32>
    %182 = arith.addf %180, %181 : vector<2x64xf32>
    %183 = math.tanh %182 : vector<2x64xf32>
    %184 = arith.mulf %179, %183 : vector<2x64xf32>
    %c4 = arith.constant 4 : index
    %c0_36 = arith.constant 0 : index
    %185 = vector.load %arg20[%c4, %c0_36] : memref<16x64xf32, #tpu.memory_space<vmem>>, vector<2x64xf32>
    tpu.vector_store %arg20[%c4, %c0_36], %184 {strides = array<i32>} : memref<16x64xf32, #tpu.memory_space<vmem>>, vector<2x64xf32>,
    %186 = vector.extract_strided_slice %5 {offsets = [6, 0], sizes = [2, 256], strides = [1, 1]} : vector<16x256xf32> to vector<2x256xf32>
    %187 = vector.extract_strided_slice %156 {offsets = [0, 0], sizes = [2, 256], strides = [1, 1]} : vector<2x512xf32> to vector<2x256xf32>
    %188 = arith.addf %186, %187 : vector<2x256xf32>
    %189 = vector.extract_strided_slice %188 {offsets = [0, 0], sizes = [2, 64], strides = [1, 1]} : vector<2x256xf32> to vector<2x64xf32>
    %190 = arith.negf %189 : vector<2x64xf32>
    %191 = math.exp %190 : vector<2x64xf32>
    %cst_37 = arith.constant 1.000000e+00 : f32
    %192 = vector.broadcast %cst_37 : f32 to vector<2x64xf32>
    %193 = arith.addf %192, %191 : vector<2x64xf32>
    %194 = arith.divf %192, %193 : vector<2x64xf32>
    %195 = vector.extract_strided_slice %188 {offsets = [0, 64], sizes = [2, 64], strides = [1, 1]} : vector<2x256xf32> to vector<2x64xf32>
    %196 = arith.negf %195 : vector<2x64xf32>
    %197 = math.exp %196 : vector<2x64xf32>
    %cst_38 = arith.constant 1.000000e+00 : f32
    %198 = vector.broadcast %cst_38 : f32 to vector<2x64xf32>
    %199 = arith.addf %198, %197 : vector<2x64xf32>
    %200 = arith.divf %198, %199 : vector<2x64xf32>
    %201 = vector.extract_strided_slice %188 {offsets = [0, 128], sizes = [2, 64], strides = [1, 1]} : vector<2x256xf32> to vector<2x64xf32>
    %202 = math.tanh %201 : vector<2x64xf32>
    %203 = vector.extract_strided_slice %188 {offsets = [0, 192], sizes = [2, 64], strides = [1, 1]} : vector<2x256xf32> to vector<2x64xf32>
    %204 = arith.negf %203 : vector<2x64xf32>
    %205 = math.exp %204 : vector<2x64xf32>
    %cst_39 = arith.constant 1.000000e+00 : f32
    %206 = vector.broadcast %cst_39 : f32 to vector<2x64xf32>
    %207 = arith.addf %206, %205 : vector<2x64xf32>
    %208 = arith.divf %206, %207 : vector<2x64xf32>
    %209 = arith.mulf %200, %152 : vector<2x64xf32>
    %210 = arith.mulf %194, %202 : vector<2x64xf32>
    %211 = arith.addf %209, %210 : vector<2x64xf32>
    %212 = math.tanh %211 : vector<2x64xf32>
    %213 = arith.mulf %208, %212 : vector<2x64xf32>
    %214 = tpu.concatenate %213, %184 in 1 : vector<2x64xf32>, vector<2x64xf32> -> vector<2x128xf32>
    %cst_40 = arith.constant dense<0.000000e+00> : vector<2x512xf32>
    %215 = tpu.matmul %214, %6, %cst_40 {dimension_numbers = #tpu.dot_dimension_numbers<[1], [0], [0], [1], [0, 0, 1, 1], [], []>} : vector<2x128xf32>, vector<128x512xf32>, vector<2x512xf32> -> vector<2x512xf32>
    %216 = vector.extract_strided_slice %215 {offsets = [0, 256], sizes = [2, 256], strides = [1, 1]} : vector<2x512xf32> to vector<2x256xf32>
    %217 = vector.broadcast %7 : vector<1x256xf32> to vector<2x256xf32>
    %218 = arith.addf %216, %217 : vector<2x256xf32>
    %219 = vector.extract_strided_slice %218 {offsets = [0, 0], sizes = [2, 64], strides = [1, 1]} : vector<2x256xf32> to vector<2x64xf32>
    %220 = arith.negf %219 : vector<2x64xf32>
    %221 = math.exp %220 : vector<2x64xf32>
    %cst_41 = arith.constant 1.000000e+00 : f32
    %222 = vector.broadcast %cst_41 : f32 to vector<2x64xf32>
    %223 = arith.addf %222, %221 : vector<2x64xf32>
    %224 = arith.divf %222, %223 : vector<2x64xf32>
    %225 = vector.extract_strided_slice %218 {offsets = [0, 64], sizes = [2, 64], strides = [1, 1]} : vector<2x256xf32> to vector<2x64xf32>
    %226 = arith.negf %225 : vector<2x64xf32>
    %227 = math.exp %226 : vector<2x64xf32>
    %cst_42 = arith.constant 1.000000e+00 : f32
    %228 = vector.broadcast %cst_42 : f32 to vector<2x64xf32>
    %229 = arith.addf %228, %227 : vector<2x64xf32>
    %230 = arith.divf %228, %229 : vector<2x64xf32>
    %231 = vector.extract_strided_slice %218 {offsets = [0, 128], sizes = [2, 64], strides = [1, 1]} : vector<2x256xf32> to vector<2x64xf32>
    %232 = math.tanh %231 : vector<2x64xf32>
    %233 = vector.extract_strided_slice %218 {offsets = [0, 192], sizes = [2, 64], strides = [1, 1]} : vector<2x256xf32> to vector<2x64xf32>
    %234 = arith.negf %233 : vector<2x64xf32>
    %235 = math.exp %234 : vector<2x64xf32>
    %cst_43 = arith.constant 1.000000e+00 : f32
    %236 = vector.broadcast %cst_43 : f32 to vector<2x64xf32>
    %237 = arith.addf %236, %235 : vector<2x64xf32>
    %238 = arith.divf %236, %237 : vector<2x64xf32>
    %239 = arith.mulf %230, %182 : vector<2x64xf32>
    %240 = arith.mulf %224, %232 : vector<2x64xf32>
    %241 = arith.addf %239, %240 : vector<2x64xf32>
    %242 = math.tanh %241 : vector<2x64xf32>
    %243 = arith.mulf %238, %242 : vector<2x64xf32>
    %c6 = arith.constant 6 : index
    %c0_44 = arith.constant 0 : index
    %244 = vector.load %arg20[%c6, %c0_44] : memref<16x64xf32, #tpu.memory_space<vmem>>, vector<2x64xf32>
    tpu.vector_store %arg20[%c6, %c0_44], %243 {strides = array<i32>} : memref<16x64xf32, #tpu.memory_space<vmem>>, vector<2x64xf32>,
    %245 = vector.extract_strided_slice %5 {offsets = [8, 0], sizes = [2, 256], strides = [1, 1]} : vector<16x256xf32> to vector<2x256xf32>
    %246 = vector.extract_strided_slice %215 {offsets = [0, 0], sizes = [2, 256], strides = [1, 1]} : vector<2x512xf32> to vector<2x256xf32>
    %247 = arith.addf %245, %246 : vector<2x256xf32>
    %248 = vector.extract_strided_slice %247 {offsets = [0, 0], sizes = [2, 64], strides = [1, 1]} : vector<2x256xf32> to vector<2x64xf32>
    %249 = arith.negf %248 : vector<2x64xf32>
    %250 = math.exp %249 : vector<2x64xf32>
    %cst_45 = arith.constant 1.000000e+00 : f32
    %251 = vector.broadcast %cst_45 : f32 to vector<2x64xf32>
    %252 = arith.addf %251, %250 : vector<2x64xf32>
    %253 = arith.divf %251, %252 : vector<2x64xf32>
    %254 = vector.extract_strided_slice %247 {offsets = [0, 64], sizes = [2, 64], strides = [1, 1]} : vector<2x256xf32> to vector<2x64xf32>
    %255 = arith.negf %254 : vector<2x64xf32>
    %256 = math.exp %255 : vector<2x64xf32>
    %cst_46 = arith.constant 1.000000e+00 : f32
    %257 = vector.broadcast %cst_46 : f32 to vector<2x64xf32>
    %258 = arith.addf %257, %256 : vector<2x64xf32>
    %259 = arith.divf %257, %258 : vector<2x64xf32>
    %260 = vector.extract_strided_slice %247 {offsets = [0, 128], sizes = [2, 64], strides = [1, 1]} : vector<2x256xf32> to vector<2x64xf32>
    %261 = math.tanh %260 : vector<2x64xf32>
    %262 = vector.extract_strided_slice %247 {offsets = [0, 192], sizes = [2, 64], strides = [1, 1]} : vector<2x256xf32> to vector<2x64xf32>
    %263 = arith.negf %262 : vector<2x64xf32>
    %264 = math.exp %263 : vector<2x64xf32>
    %cst_47 = arith.constant 1.000000e+00 : f32
    %265 = vector.broadcast %cst_47 : f32 to vector<2x64xf32>
    %266 = arith.addf %265, %264 : vector<2x64xf32>
    %267 = arith.divf %265, %266 : vector<2x64xf32>
    %268 = arith.mulf %259, %211 : vector<2x64xf32>
    %269 = arith.mulf %253, %261 : vector<2x64xf32>
    %270 = arith.addf %268, %269 : vector<2x64xf32>
    %271 = math.tanh %270 : vector<2x64xf32>
    %272 = arith.mulf %267, %271 : vector<2x64xf32>
    %273 = tpu.concatenate %272, %243 in 1 : vector<2x64xf32>, vector<2x64xf32> -> vector<2x128xf32>
    %cst_48 = arith.constant dense<0.000000e+00> : vector<2x512xf32>
    %274 = tpu.matmul %273, %6, %cst_48 {dimension_numbers = #tpu.dot_dimension_numbers<[1], [0], [0], [1], [0, 0, 1, 1], [], []>} : vector<2x128xf32>, vector<128x512xf32>, vector<2x512xf32> -> vector<2x512xf32>
    %275 = vector.extract_strided_slice %274 {offsets = [0, 256], sizes = [2, 256], strides = [1, 1]} : vector<2x512xf32> to vector<2x256xf32>
    %276 = vector.broadcast %7 : vector<1x256xf32> to vector<2x256xf32>
    %277 = arith.addf %275, %276 : vector<2x256xf32>
    %278 = vector.extract_strided_slice %277 {offsets = [0, 0], sizes = [2, 64], strides = [1, 1]} : vector<2x256xf32> to vector<2x64xf32>
    %279 = arith.negf %278 : vector<2x64xf32>
    %280 = math.exp %279 : vector<2x64xf32>
    %cst_49 = arith.constant 1.000000e+00 : f32
    %281 = vector.broadcast %cst_49 : f32 to vector<2x64xf32>
    %282 = arith.addf %281, %280 : vector<2x64xf32>
    %283 = arith.divf %281, %282 : vector<2x64xf32>
    %284 = vector.extract_strided_slice %277 {offsets = [0, 64], sizes = [2, 64], strides = [1, 1]} : vector<2x256xf32> to vector<2x64xf32>
    %285 = arith.negf %284 : vector<2x64xf32>
    %286 = math.exp %285 : vector<2x64xf32>
    %cst_50 = arith.constant 1.000000e+00 : f32
    %287 = vector.broadcast %cst_50 : f32 to vector<2x64xf32>
    %288 = arith.addf %287, %286 : vector<2x64xf32>
    %289 = arith.divf %287, %288 : vector<2x64xf32>
    %290 = vector.extract_strided_slice %277 {offsets = [0, 128], sizes = [2, 64], strides = [1, 1]} : vector<2x256xf32> to vector<2x64xf32>
    %291 = math.tanh %290 : vector<2x64xf32>
    %292 = vector.extract_strided_slice %277 {offsets = [0, 192], sizes = [2, 64], strides = [1, 1]} : vector<2x256xf32> to vector<2x64xf32>
    %293 = arith.negf %292 : vector<2x64xf32>
    %294 = math.exp %293 : vector<2x64xf32>
    %cst_51 = arith.constant 1.000000e+00 : f32
    %295 = vector.broadcast %cst_51 : f32 to vector<2x64xf32>
    %296 = arith.addf %295, %294 : vector<2x64xf32>
    %297 = arith.divf %295, %296 : vector<2x64xf32>
    %298 = arith.mulf %289, %241 : vector<2x64xf32>
    %299 = arith.mulf %283, %291 : vector<2x64xf32>
    %300 = arith.addf %298, %299 : vector<2x64xf32>
    %301 = math.tanh %300 : vector<2x64xf32>
    %302 = arith.mulf %297, %301 : vector<2x64xf32>
    %c8 = arith.constant 8 : index
    %c0_52 = arith.constant 0 : index
    %303 = vector.load %arg20[%c8, %c0_52] : memref<16x64xf32, #tpu.memory_space<vmem>>, vector<2x64xf32>
    tpu.vector_store %arg20[%c8, %c0_52], %302 {strides = array<i32>} : memref<16x64xf32, #tpu.memory_space<vmem>>, vector<2x64xf32>,
    %304 = vector.extract_strided_slice %5 {offsets = [10, 0], sizes = [2, 256], strides = [1, 1]} : vector<16x256xf32> to vector<2x256xf32>
    %305 = vector.extract_strided_slice %274 {offsets = [0, 0], sizes = [2, 256], strides = [1, 1]} : vector<2x512xf32> to vector<2x256xf32>
    %306 = arith.addf %304, %305 : vector<2x256xf32>
    %307 = vector.extract_strided_slice %306 {offsets = [0, 0], sizes = [2, 64], strides = [1, 1]} : vector<2x256xf32> to vector<2x64xf32>
    %308 = arith.negf %307 : vector<2x64xf32>
    %309 = math.exp %308 : vector<2x64xf32>
    %cst_53 = arith.constant 1.000000e+00 : f32
    %310 = vector.broadcast %cst_53 : f32 to vector<2x64xf32>
    %311 = arith.addf %310, %309 : vector<2x64xf32>
    %312 = arith.divf %310, %311 : vector<2x64xf32>
    %313 = vector.extract_strided_slice %306 {offsets = [0, 64], sizes = [2, 64], strides = [1, 1]} : vector<2x256xf32> to vector<2x64xf32>
    %314 = arith.negf %313 : vector<2x64xf32>
    %315 = math.exp %314 : vector<2x64xf32>
    %cst_54 = arith.constant 1.000000e+00 : f32
    %316 = vector.broadcast %cst_54 : f32 to vector<2x64xf32>
    %317 = arith.addf %316, %315 : vector<2x64xf32>
    %318 = arith.divf %316, %317 : vector<2x64xf32>
    %319 = vector.extract_strided_slice %306 {offsets = [0, 128], sizes = [2, 64], strides = [1, 1]} : vector<2x256xf32> to vector<2x64xf32>
    %320 = math.tanh %319 : vector<2x64xf32>
    %321 = vector.extract_strided_slice %306 {offsets = [0, 192], sizes = [2, 64], strides = [1, 1]} : vector<2x256xf32> to vector<2x64xf32>
    %322 = arith.negf %321 : vector<2x64xf32>
    %323 = math.exp %322 : vector<2x64xf32>
    %cst_55 = arith.constant 1.000000e+00 : f32
    %324 = vector.broadcast %cst_55 : f32 to vector<2x64xf32>
    %325 = arith.addf %324, %323 : vector<2x64xf32>
    %326 = arith.divf %324, %325 : vector<2x64xf32>
    %327 = arith.mulf %318, %270 : vector<2x64xf32>
    %328 = arith.mulf %312, %320 : vector<2x64xf32>
    %329 = arith.addf %327, %328 : vector<2x64xf32>
    %330 = math.tanh %329 : vector<2x64xf32>
    %331 = arith.mulf %326, %330 : vector<2x64xf32>
    %332 = tpu.concatenate %331, %302 in 1 : vector<2x64xf32>, vector<2x64xf32> -> vector<2x128xf32>
    %cst_56 = arith.constant dense<0.000000e+00> : vector<2x512xf32>
    %333 = tpu.matmul %332, %6, %cst_56 {dimension_numbers = #tpu.dot_dimension_numbers<[1], [0], [0], [1], [0, 0, 1, 1], [], []>} : vector<2x128xf32>, vector<128x512xf32>, vector<2x512xf32> -> vector<2x512xf32>
    %334 = vector.extract_strided_slice %333 {offsets = [0, 256], sizes = [2, 256], strides = [1, 1]} : vector<2x512xf32> to vector<2x256xf32>
    %335 = vector.broadcast %7 : vector<1x256xf32> to vector<2x256xf32>
    %336 = arith.addf %334, %335 : vector<2x256xf32>
    %337 = vector.extract_strided_slice %336 {offsets = [0, 0], sizes = [2, 64], strides = [1, 1]} : vector<2x256xf32> to vector<2x64xf32>
    %338 = arith.negf %337 : vector<2x64xf32>
    %339 = math.exp %338 : vector<2x64xf32>
    %cst_57 = arith.constant 1.000000e+00 : f32
    %340 = vector.broadcast %cst_57 : f32 to vector<2x64xf32>
    %341 = arith.addf %340, %339 : vector<2x64xf32>
    %342 = arith.divf %340, %341 : vector<2x64xf32>
    %343 = vector.extract_strided_slice %336 {offsets = [0, 64], sizes = [2, 64], strides = [1, 1]} : vector<2x256xf32> to vector<2x64xf32>
    %344 = arith.negf %343 : vector<2x64xf32>
    %345 = math.exp %344 : vector<2x64xf32>
    %cst_58 = arith.constant 1.000000e+00 : f32
    %346 = vector.broadcast %cst_58 : f32 to vector<2x64xf32>
    %347 = arith.addf %346, %345 : vector<2x64xf32>
    %348 = arith.divf %346, %347 : vector<2x64xf32>
    %349 = vector.extract_strided_slice %336 {offsets = [0, 128], sizes = [2, 64], strides = [1, 1]} : vector<2x256xf32> to vector<2x64xf32>
    %350 = math.tanh %349 : vector<2x64xf32>
    %351 = vector.extract_strided_slice %336 {offsets = [0, 192], sizes = [2, 64], strides = [1, 1]} : vector<2x256xf32> to vector<2x64xf32>
    %352 = arith.negf %351 : vector<2x64xf32>
    %353 = math.exp %352 : vector<2x64xf32>
    %cst_59 = arith.constant 1.000000e+00 : f32
    %354 = vector.broadcast %cst_59 : f32 to vector<2x64xf32>
    %355 = arith.addf %354, %353 : vector<2x64xf32>
    %356 = arith.divf %354, %355 : vector<2x64xf32>
    %357 = arith.mulf %348, %300 : vector<2x64xf32>
    %358 = arith.mulf %342, %350 : vector<2x64xf32>
    %359 = arith.addf %357, %358 : vector<2x64xf32>
    %360 = math.tanh %359 : vector<2x64xf32>
    %361 = arith.mulf %356, %360 : vector<2x64xf32>
    %c10 = arith.constant 10 : index
    %c0_60 = arith.constant 0 : index
    %362 = vector.load %arg20[%c10, %c0_60] : memref<16x64xf32, #tpu.memory_space<vmem>>, vector<2x64xf32>
    tpu.vector_store %arg20[%c10, %c0_60], %361 {strides = array<i32>} : memref<16x64xf32, #tpu.memory_space<vmem>>, vector<2x64xf32>,
    %363 = vector.extract_strided_slice %5 {offsets = [12, 0], sizes = [2, 256], strides = [1, 1]} : vector<16x256xf32> to vector<2x256xf32>
    %364 = vector.extract_strided_slice %333 {offsets = [0, 0], sizes = [2, 256], strides = [1, 1]} : vector<2x512xf32> to vector<2x256xf32>
    %365 = arith.addf %363, %364 : vector<2x256xf32>
    %366 = vector.extract_strided_slice %365 {offsets = [0, 0], sizes = [2, 64], strides = [1, 1]} : vector<2x256xf32> to vector<2x64xf32>
    %367 = arith.negf %366 : vector<2x64xf32>
    %368 = math.exp %367 : vector<2x64xf32>
    %cst_61 = arith.constant 1.000000e+00 : f32
    %369 = vector.broadcast %cst_61 : f32 to vector<2x64xf32>
    %370 = arith.addf %369, %368 : vector<2x64xf32>
    %371 = arith.divf %369, %370 : vector<2x64xf32>
    %372 = vector.extract_strided_slice %365 {offsets = [0, 64], sizes = [2, 64], strides = [1, 1]} : vector<2x256xf32> to vector<2x64xf32>
    %373 = arith.negf %372 : vector<2x64xf32>
    %374 = math.exp %373 : vector<2x64xf32>
    %cst_62 = arith.constant 1.000000e+00 : f32
    %375 = vector.broadcast %cst_62 : f32 to vector<2x64xf32>
    %376 = arith.addf %375, %374 : vector<2x64xf32>
    %377 = arith.divf %375, %376 : vector<2x64xf32>
    %378 = vector.extract_strided_slice %365 {offsets = [0, 128], sizes = [2, 64], strides = [1, 1]} : vector<2x256xf32> to vector<2x64xf32>
    %379 = math.tanh %378 : vector<2x64xf32>
    %380 = vector.extract_strided_slice %365 {offsets = [0, 192], sizes = [2, 64], strides = [1, 1]} : vector<2x256xf32> to vector<2x64xf32>
    %381 = arith.negf %380 : vector<2x64xf32>
    %382 = math.exp %381 : vector<2x64xf32>
    %cst_63 = arith.constant 1.000000e+00 : f32
    %383 = vector.broadcast %cst_63 : f32 to vector<2x64xf32>
    %384 = arith.addf %383, %382 : vector<2x64xf32>
    %385 = arith.divf %383, %384 : vector<2x64xf32>
    %386 = arith.mulf %377, %329 : vector<2x64xf32>
    %387 = arith.mulf %371, %379 : vector<2x64xf32>
    %388 = arith.addf %386, %387 : vector<2x64xf32>
    %389 = math.tanh %388 : vector<2x64xf32>
    %390 = arith.mulf %385, %389 : vector<2x64xf32>
    %391 = tpu.concatenate %390, %361 in 1 : vector<2x64xf32>, vector<2x64xf32> -> vector<2x128xf32>
    %cst_64 = arith.constant dense<0.000000e+00> : vector<2x512xf32>
    %392 = tpu.matmul %391, %6, %cst_64 {dimension_numbers = #tpu.dot_dimension_numbers<[1], [0], [0], [1], [0, 0, 1, 1], [], []>} : vector<2x128xf32>, vector<128x512xf32>, vector<2x512xf32> -> vector<2x512xf32>
    %393 = vector.extract_strided_slice %392 {offsets = [0, 256], sizes = [2, 256], strides = [1, 1]} : vector<2x512xf32> to vector<2x256xf32>
    %394 = vector.broadcast %7 : vector<1x256xf32> to vector<2x256xf32>
    %395 = arith.addf %393, %394 : vector<2x256xf32>
    %396 = vector.extract_strided_slice %395 {offsets = [0, 0], sizes = [2, 64], strides = [1, 1]} : vector<2x256xf32> to vector<2x64xf32>
    %397 = arith.negf %396 : vector<2x64xf32>
    %398 = math.exp %397 : vector<2x64xf32>
    %cst_65 = arith.constant 1.000000e+00 : f32
    %399 = vector.broadcast %cst_65 : f32 to vector<2x64xf32>
    %400 = arith.addf %399, %398 : vector<2x64xf32>
    %401 = arith.divf %399, %400 : vector<2x64xf32>
    %402 = vector.extract_strided_slice %395 {offsets = [0, 64], sizes = [2, 64], strides = [1, 1]} : vector<2x256xf32> to vector<2x64xf32>
    %403 = arith.negf %402 : vector<2x64xf32>
    %404 = math.exp %403 : vector<2x64xf32>
    %cst_66 = arith.constant 1.000000e+00 : f32
    %405 = vector.broadcast %cst_66 : f32 to vector<2x64xf32>
    %406 = arith.addf %405, %404 : vector<2x64xf32>
    %407 = arith.divf %405, %406 : vector<2x64xf32>
    %408 = vector.extract_strided_slice %395 {offsets = [0, 128], sizes = [2, 64], strides = [1, 1]} : vector<2x256xf32> to vector<2x64xf32>
    %409 = math.tanh %408 : vector<2x64xf32>
    %410 = vector.extract_strided_slice %395 {offsets = [0, 192], sizes = [2, 64], strides = [1, 1]} : vector<2x256xf32> to vector<2x64xf32>
    %411 = arith.negf %410 : vector<2x64xf32>
    %412 = math.exp %411 : vector<2x64xf32>
    %cst_67 = arith.constant 1.000000e+00 : f32
    %413 = vector.broadcast %cst_67 : f32 to vector<2x64xf32>
    %414 = arith.addf %413, %412 : vector<2x64xf32>
    %415 = arith.divf %413, %414 : vector<2x64xf32>
    %416 = arith.mulf %407, %359 : vector<2x64xf32>
    %417 = arith.mulf %401, %409 : vector<2x64xf32>
    %418 = arith.addf %416, %417 : vector<2x64xf32>
    %419 = math.tanh %418 : vector<2x64xf32>
    %420 = arith.mulf %415, %419 : vector<2x64xf32>
    %c12 = arith.constant 12 : index
    %c0_68 = arith.constant 0 : index
    %421 = vector.load %arg20[%c12, %c0_68] : memref<16x64xf32, #tpu.memory_space<vmem>>, vector<2x64xf32>
    tpu.vector_store %arg20[%c12, %c0_68], %420 {strides = array<i32>} : memref<16x64xf32, #tpu.memory_space<vmem>>, vector<2x64xf32>,
    %422 = vector.extract_strided_slice %5 {offsets = [14, 0], sizes = [2, 256], strides = [1, 1]} : vector<16x256xf32> to vector<2x256xf32>
    %423 = vector.extract_strided_slice %392 {offsets = [0, 0], sizes = [2, 256], strides = [1, 1]} : vector<2x512xf32> to vector<2x256xf32>
    %424 = arith.addf %422, %423 : vector<2x256xf32>
    %425 = vector.extract_strided_slice %424 {offsets = [0, 0], sizes = [2, 64], strides = [1, 1]} : vector<2x256xf32> to vector<2x64xf32>
    %426 = arith.negf %425 : vector<2x64xf32>
    %427 = math.exp %426 : vector<2x64xf32>
    %cst_69 = arith.constant 1.000000e+00 : f32
    %428 = vector.broadcast %cst_69 : f32 to vector<2x64xf32>
    %429 = arith.addf %428, %427 : vector<2x64xf32>
    %430 = arith.divf %428, %429 : vector<2x64xf32>
    %431 = vector.extract_strided_slice %424 {offsets = [0, 64], sizes = [2, 64], strides = [1, 1]} : vector<2x256xf32> to vector<2x64xf32>
    %432 = arith.negf %431 : vector<2x64xf32>
    %433 = math.exp %432 : vector<2x64xf32>
    %cst_70 = arith.constant 1.000000e+00 : f32
    %434 = vector.broadcast %cst_70 : f32 to vector<2x64xf32>
    %435 = arith.addf %434, %433 : vector<2x64xf32>
    %436 = arith.divf %434, %435 : vector<2x64xf32>
    %437 = vector.extract_strided_slice %424 {offsets = [0, 128], sizes = [2, 64], strides = [1, 1]} : vector<2x256xf32> to vector<2x64xf32>
    %438 = math.tanh %437 : vector<2x64xf32>
    %439 = vector.extract_strided_slice %424 {offsets = [0, 192], sizes = [2, 64], strides = [1, 1]} : vector<2x256xf32> to vector<2x64xf32>
    %440 = arith.negf %439 : vector<2x64xf32>
    %441 = math.exp %440 : vector<2x64xf32>
    %cst_71 = arith.constant 1.000000e+00 : f32
    %442 = vector.broadcast %cst_71 : f32 to vector<2x64xf32>
    %443 = arith.addf %442, %441 : vector<2x64xf32>
    %444 = arith.divf %442, %443 : vector<2x64xf32>
    %445 = arith.mulf %436, %388 : vector<2x64xf32>
    %446 = arith.mulf %430, %438 : vector<2x64xf32>
    %447 = arith.addf %445, %446 : vector<2x64xf32>
    %448 = math.tanh %447 : vector<2x64xf32>
    %449 = arith.mulf %444, %448 : vector<2x64xf32>
    %450 = tpu.concatenate %449, %420 in 1 : vector<2x64xf32>, vector<2x64xf32> -> vector<2x128xf32>
    %cst_72 = arith.constant dense<0.000000e+00> : vector<2x512xf32>
    %451 = tpu.matmul %450, %6, %cst_72 {dimension_numbers = #tpu.dot_dimension_numbers<[1], [0], [0], [1], [0, 0, 1, 1], [], []>} : vector<2x128xf32>, vector<128x512xf32>, vector<2x512xf32> -> vector<2x512xf32>
    %452 = vector.extract_strided_slice %451 {offsets = [0, 256], sizes = [2, 256], strides = [1, 1]} : vector<2x512xf32> to vector<2x256xf32>
    %453 = vector.broadcast %7 : vector<1x256xf32> to vector<2x256xf32>
    %454 = arith.addf %452, %453 : vector<2x256xf32>
    %455 = vector.extract_strided_slice %454 {offsets = [0, 0], sizes = [2, 64], strides = [1, 1]} : vector<2x256xf32> to vector<2x64xf32>
    %456 = arith.negf %455 : vector<2x64xf32>
    %457 = math.exp %456 : vector<2x64xf32>
    %cst_73 = arith.constant 1.000000e+00 : f32
    %458 = vector.broadcast %cst_73 : f32 to vector<2x64xf32>
    %459 = arith.addf %458, %457 : vector<2x64xf32>
    %460 = arith.divf %458, %459 : vector<2x64xf32>
    %461 = vector.extract_strided_slice %454 {offsets = [0, 64], sizes = [2, 64], strides = [1, 1]} : vector<2x256xf32> to vector<2x64xf32>
    %462 = arith.negf %461 : vector<2x64xf32>
    %463 = math.exp %462 : vector<2x64xf32>
    %cst_74 = arith.constant 1.000000e+00 : f32
    %464 = vector.broadcast %cst_74 : f32 to vector<2x64xf32>
    %465 = arith.addf %464, %463 : vector<2x64xf32>
    %466 = arith.divf %464, %465 : vector<2x64xf32>
    %467 = vector.extract_strided_slice %454 {offsets = [0, 128], sizes = [2, 64], strides = [1, 1]} : vector<2x256xf32> to vector<2x64xf32>
    %468 = math.tanh %467 : vector<2x64xf32>
    %469 = vector.extract_strided_slice %454 {offsets = [0, 192], sizes = [2, 64], strides = [1, 1]} : vector<2x256xf32> to vector<2x64xf32>
    %470 = arith.negf %469 : vector<2x64xf32>
    %471 = math.exp %470 : vector<2x64xf32>
    %cst_75 = arith.constant 1.000000e+00 : f32
    %472 = vector.broadcast %cst_75 : f32 to vector<2x64xf32>
    %473 = arith.addf %472, %471 : vector<2x64xf32>
    %474 = arith.divf %472, %473 : vector<2x64xf32>
    %475 = arith.mulf %466, %418 : vector<2x64xf32>
    %476 = arith.mulf %460, %468 : vector<2x64xf32>
    %477 = arith.addf %475, %476 : vector<2x64xf32>
    %478 = math.tanh %477 : vector<2x64xf32>
    %479 = arith.mulf %474, %478 : vector<2x64xf32>
    %c14 = arith.constant 14 : index
    %c0_76 = arith.constant 0 : index
    %480 = vector.load %arg20[%c14, %c0_76] : memref<16x64xf32, #tpu.memory_space<vmem>>, vector<2x64xf32>
    tpu.vector_store %arg20[%c14, %c0_76], %479 {strides = array<i32>} : memref<16x64xf32, #tpu.memory_space<vmem>>, vector<2x64xf32>,
    %c0_77 = arith.constant 0 : index
    %c0_78 = arith.constant 0 : index
    %481 = vector.load %arg20[%c0_77, %c0_78] : memref<16x64xf32, #tpu.memory_space<vmem>>, vector<16x64xf32>
    %c0_79 = arith.constant 0 : index
    %c0_80 = arith.constant 0 : index
    %482 = vector.load %arg5[%c0_79, %c0_80] : memref<64x64xf32, #tpu.memory_space<vmem>>, vector<64x64xf32>
    %cst_81 = arith.constant dense<0.000000e+00> : vector<2x64xf32>
    %483 = tpu.matmul %479, %482, %cst_81 {dimension_numbers = #tpu.dot_dimension_numbers<[1], [0], [0], [1], [0, 0, 1, 1], [], []>} : vector<2x64xf32>, vector<64x64xf32>, vector<2x64xf32> -> vector<2x64xf32>
    %c0_82 = arith.constant 0 : index
    %c0_83 = arith.constant 0 : index
    %484 = vector.load %arg6[%c0_82, %c0_83] : memref<1x64xf32, #tpu.memory_space<vmem>>, vector<1x64xf32>
    %485 = vector.broadcast %484 : vector<1x64xf32> to vector<2x64xf32>
    %486 = arith.addf %483, %485 : vector<2x64xf32>
    %c0_84 = arith.constant 0 : index
    %c0_85 = arith.constant 0 : index
    %487 = vector.load %arg7[%c0_84, %c0_85] : memref<64x64xf32, #tpu.memory_space<vmem>>, vector<64x64xf32>
    %cst_86 = arith.constant dense<0.000000e+00> : vector<16x64xf32>
    %488 = tpu.matmul %481, %487, %cst_86 {dimension_numbers = #tpu.dot_dimension_numbers<[1], [0], [0], [1], [0, 0, 1, 1], [], []>} : vector<16x64xf32>, vector<64x64xf32>, vector<16x64xf32> -> vector<16x64xf32>
    %c0_87 = arith.constant 0 : index
    %c0_88 = arith.constant 0 : index
    %489 = vector.load %arg8[%c0_87, %c0_88] : memref<1x64xf32, #tpu.memory_space<vmem>>, vector<1x64xf32>
    %490 = vector.broadcast %489 : vector<1x64xf32> to vector<16x64xf32>
    %491 = arith.addf %488, %490 : vector<16x64xf32>
    %c0_89 = arith.constant 0 : index
    %c0_90 = arith.constant 0 : index
    %492 = vector.load %arg9[%c0_89, %c0_90] : memref<64x64xf32, #tpu.memory_space<vmem>>, vector<64x64xf32>
    %cst_91 = arith.constant dense<0.000000e+00> : vector<16x64xf32>
    %493 = tpu.matmul %481, %492, %cst_91 {dimension_numbers = #tpu.dot_dimension_numbers<[1], [0], [0], [1], [0, 0, 1, 1], [], []>} : vector<16x64xf32>, vector<64x64xf32>, vector<16x64xf32> -> vector<16x64xf32>
    %c0_92 = arith.constant 0 : index
    %c0_93 = arith.constant 0 : index
    %494 = vector.load %arg10[%c0_92, %c0_93] : memref<1x64xf32, #tpu.memory_space<vmem>>, vector<1x64xf32>
    %495 = vector.broadcast %494 : vector<1x64xf32> to vector<16x64xf32>
    %496 = arith.addf %493, %495 : vector<16x64xf32>
    %497 = tpu.concatenate %486, %486, %486, %486, %486, %486, %486, %486 in 0 : vector<2x64xf32>, vector<2x64xf32>, vector<2x64xf32>, vector<2x64xf32>, vector<2x64xf32>, vector<2x64xf32>, vector<2x64xf32>, vector<2x64xf32> -> vector<16x64xf32>
    %498 = arith.mulf %491, %497 : vector<16x64xf32>
    %c0_94 = arith.constant 0 : index
    %c0_95 = arith.constant 0 : index
    %499 = vector.load %arg13[%c0_94, %c0_95] : memref<64x4xf32, #tpu.memory_space<vmem>>, vector<64x4xf32>
    %cst_96 = arith.constant dense<0.000000e+00> : vector<16x4xf32>
    %500 = tpu.matmul %498, %499, %cst_96 {dimension_numbers = #tpu.dot_dimension_numbers<[1], [0], [0], [1], [0, 0, 1, 1], [], []>} : vector<16x64xf32>, vector<64x4xf32>, vector<16x4xf32> -> vector<16x4xf32>
    %cst_97 = arith.constant 2.500000e-01 : f32
    %501 = vector.broadcast %cst_97 : f32 to vector<16x4xf32>
    %502 = arith.mulf %500, %501 : vector<16x4xf32>
    %503 = vector.extract_strided_slice %502 {offsets = [0, 0], sizes = [2, 4], strides = [1, 1]} : vector<16x4xf32> to vector<2x4xf32>
    %504 = vector.extract_strided_slice %502 {offsets = [2, 0], sizes = [2, 4], strides = [1, 1]} : vector<16x4xf32> to vector<2x4xf32>
    %505 = arith.maximumf %503, %504 : vector<2x4xf32>
    %506 = vector.extract_strided_slice %502 {offsets = [4, 0], sizes = [2, 4], strides = [1, 1]} : vector<16x4xf32> to vector<2x4xf32>
    %507 = arith.maximumf %505, %506 : vector<2x4xf32>
    %508 = vector.extract_strided_slice %502 {offsets = [6, 0], sizes = [2, 4], strides = [1, 1]} : vector<16x4xf32> to vector<2x4xf32>
    %509 = arith.maximumf %507, %508 : vector<2x4xf32>
    %510 = vector.extract_strided_slice %502 {offsets = [8, 0], sizes = [2, 4], strides = [1, 1]} : vector<16x4xf32> to vector<2x4xf32>
    %511 = arith.maximumf %509, %510 : vector<2x4xf32>
    %512 = vector.extract_strided_slice %502 {offsets = [10, 0], sizes = [2, 4], strides = [1, 1]} : vector<16x4xf32> to vector<2x4xf32>
    %513 = arith.maximumf %511, %512 : vector<2x4xf32>
    %514 = vector.extract_strided_slice %502 {offsets = [12, 0], sizes = [2, 4], strides = [1, 1]} : vector<16x4xf32> to vector<2x4xf32>
    %515 = arith.maximumf %513, %514 : vector<2x4xf32>
    %516 = vector.extract_strided_slice %502 {offsets = [14, 0], sizes = [2, 4], strides = [1, 1]} : vector<16x4xf32> to vector<2x4xf32>
    %517 = arith.maximumf %515, %516 : vector<2x4xf32>
    %cst_98 = arith.constant 0.000000e+00 : f32
    %518 = vector.broadcast %cst_98 : f32 to vector<2x4xf32>
    %519 = vector.extract_strided_slice %502 {offsets = [0, 0], sizes = [2, 4], strides = [1, 1]} : vector<16x4xf32> to vector<2x4xf32>
    %520 = arith.subf %519, %517 : vector<2x4xf32>
    %521 = math.exp %520 : vector<2x4xf32>
    %522 = arith.addf %518, %521 : vector<2x4xf32>
    %523 = vector.extract_strided_slice %502 {offsets = [2, 0], sizes = [2, 4], strides = [1, 1]} : vector<16x4xf32> to vector<2x4xf32>
    %524 = arith.subf %523, %517 : vector<2x4xf32>
    %525 = math.exp %524 : vector<2x4xf32>
    %526 = arith.addf %522, %525 : vector<2x4xf32>
    %527 = vector.extract_strided_slice %502 {offsets = [4, 0], sizes = [2, 4], strides = [1, 1]} : vector<16x4xf32> to vector<2x4xf32>
    %528 = arith.subf %527, %517 : vector<2x4xf32>
    %529 = math.exp %528 : vector<2x4xf32>
    %530 = arith.addf %526, %529 : vector<2x4xf32>
    %531 = vector.extract_strided_slice %502 {offsets = [6, 0], sizes = [2, 4], strides = [1, 1]} : vector<16x4xf32> to vector<2x4xf32>
    %532 = arith.subf %531, %517 : vector<2x4xf32>
    %533 = math.exp %532 : vector<2x4xf32>
    %534 = arith.addf %530, %533 : vector<2x4xf32>
    %535 = vector.extract_strided_slice %502 {offsets = [8, 0], sizes = [2, 4], strides = [1, 1]} : vector<16x4xf32> to vector<2x4xf32>
    %536 = arith.subf %535, %517 : vector<2x4xf32>
    %537 = math.exp %536 : vector<2x4xf32>
    %538 = arith.addf %534, %537 : vector<2x4xf32>
    %539 = vector.extract_strided_slice %502 {offsets = [10, 0], sizes = [2, 4], strides = [1, 1]} : vector<16x4xf32> to vector<2x4xf32>
    %540 = arith.subf %539, %517 : vector<2x4xf32>
    %541 = math.exp %540 : vector<2x4xf32>
    %542 = arith.addf %538, %541 : vector<2x4xf32>
    %543 = vector.extract_strided_slice %502 {offsets = [12, 0], sizes = [2, 4], strides = [1, 1]} : vector<16x4xf32> to vector<2x4xf32>
    %544 = arith.subf %543, %517 : vector<2x4xf32>
    %545 = math.exp %544 : vector<2x4xf32>
    %546 = arith.addf %542, %545 : vector<2x4xf32>
    %547 = vector.extract_strided_slice %502 {offsets = [14, 0], sizes = [2, 4], strides = [1, 1]} : vector<16x4xf32> to vector<2x4xf32>
    %548 = arith.subf %547, %517 : vector<2x4xf32>
    %549 = math.exp %548 : vector<2x4xf32>
    %550 = arith.addf %546, %549 : vector<2x4xf32>
    %551 = tpu.reciprocal %550 {approx = true} : vector<2x4xf32> -> vector<2x4xf32>
    %cst_99 = arith.constant 0.000000e+00 : f32
    %552 = vector.broadcast %cst_99 : f32 to vector<2x64xf32>
    %553 = arith.mulf %521, %551 : vector<2x4xf32>
    %c0_100 = arith.constant 0 : index
    %c0_101 = arith.constant 0 : index
    %554 = vector.load %arg14[%c0_100, %c0_101] : memref<4x64xf32, #tpu.memory_space<vmem>>, vector<4x64xf32>
    %cst_102 = arith.constant dense<0.000000e+00> : vector<2x64xf32>
    %555 = tpu.matmul %553, %554, %cst_102 {dimension_numbers = #tpu.dot_dimension_numbers<[1], [0], [0], [1], [0, 0, 1, 1], [], []>} : vector<2x4xf32>, vector<4x64xf32>, vector<2x64xf32> -> vector<2x64xf32>
    %556 = vector.extract_strided_slice %496 {offsets = [0, 0], sizes = [2, 64], strides = [1, 1]} : vector<16x64xf32> to vector<2x64xf32>
    %557 = arith.mulf %555, %556 : vector<2x64xf32>
    %558 = arith.addf %552, %557 : vector<2x64xf32>
    %559 = arith.mulf %525, %551 : vector<2x4xf32>
    %c0_103 = arith.constant 0 : index
    %c0_104 = arith.constant 0 : index
    %560 = vector.load %arg14[%c0_103, %c0_104] : memref<4x64xf32, #tpu.memory_space<vmem>>, vector<4x64xf32>
    %cst_105 = arith.constant dense<0.000000e+00> : vector<2x64xf32>
    %561 = tpu.matmul %559, %560, %cst_105 {dimension_numbers = #tpu.dot_dimension_numbers<[1], [0], [0], [1], [0, 0, 1, 1], [], []>} : vector<2x4xf32>, vector<4x64xf32>, vector<2x64xf32> -> vector<2x64xf32>
    %562 = vector.extract_strided_slice %496 {offsets = [2, 0], sizes = [2, 64], strides = [1, 1]} : vector<16x64xf32> to vector<2x64xf32>
    %563 = arith.mulf %561, %562 : vector<2x64xf32>
    %564 = arith.addf %558, %563 : vector<2x64xf32>
    %565 = arith.mulf %529, %551 : vector<2x4xf32>
    %c0_106 = arith.constant 0 : index
    %c0_107 = arith.constant 0 : index
    %566 = vector.load %arg14[%c0_106, %c0_107] : memref<4x64xf32, #tpu.memory_space<vmem>>, vector<4x64xf32>
    %cst_108 = arith.constant dense<0.000000e+00> : vector<2x64xf32>
    %567 = tpu.matmul %565, %566, %cst_108 {dimension_numbers = #tpu.dot_dimension_numbers<[1], [0], [0], [1], [0, 0, 1, 1], [], []>} : vector<2x4xf32>, vector<4x64xf32>, vector<2x64xf32> -> vector<2x64xf32>
    %568 = vector.extract_strided_slice %496 {offsets = [4, 0], sizes = [2, 64], strides = [1, 1]} : vector<16x64xf32> to vector<2x64xf32>
    %569 = arith.mulf %567, %568 : vector<2x64xf32>
    %570 = arith.addf %564, %569 : vector<2x64xf32>
    %571 = arith.mulf %533, %551 : vector<2x4xf32>
    %c0_109 = arith.constant 0 : index
    %c0_110 = arith.constant 0 : index
    %572 = vector.load %arg14[%c0_109, %c0_110] : memref<4x64xf32, #tpu.memory_space<vmem>>, vector<4x64xf32>
    %cst_111 = arith.constant dense<0.000000e+00> : vector<2x64xf32>
    %573 = tpu.matmul %571, %572, %cst_111 {dimension_numbers = #tpu.dot_dimension_numbers<[1], [0], [0], [1], [0, 0, 1, 1], [], []>} : vector<2x4xf32>, vector<4x64xf32>, vector<2x64xf32> -> vector<2x64xf32>
    %574 = vector.extract_strided_slice %496 {offsets = [6, 0], sizes = [2, 64], strides = [1, 1]} : vector<16x64xf32> to vector<2x64xf32>
    %575 = arith.mulf %573, %574 : vector<2x64xf32>
    %576 = arith.addf %570, %575 : vector<2x64xf32>
    %577 = arith.mulf %537, %551 : vector<2x4xf32>
    %c0_112 = arith.constant 0 : index
    %c0_113 = arith.constant 0 : index
    %578 = vector.load %arg14[%c0_112, %c0_113] : memref<4x64xf32, #tpu.memory_space<vmem>>, vector<4x64xf32>
    %cst_114 = arith.constant dense<0.000000e+00> : vector<2x64xf32>
    %579 = tpu.matmul %577, %578, %cst_114 {dimension_numbers = #tpu.dot_dimension_numbers<[1], [0], [0], [1], [0, 0, 1, 1], [], []>} : vector<2x4xf32>, vector<4x64xf32>, vector<2x64xf32> -> vector<2x64xf32>
    %580 = vector.extract_strided_slice %496 {offsets = [8, 0], sizes = [2, 64], strides = [1, 1]} : vector<16x64xf32> to vector<2x64xf32>
    %581 = arith.mulf %579, %580 : vector<2x64xf32>
    %582 = arith.addf %576, %581 : vector<2x64xf32>
    %583 = arith.mulf %541, %551 : vector<2x4xf32>
    %c0_115 = arith.constant 0 : index
    %c0_116 = arith.constant 0 : index
    %584 = vector.load %arg14[%c0_115, %c0_116] : memref<4x64xf32, #tpu.memory_space<vmem>>, vector<4x64xf32>
    %cst_117 = arith.constant dense<0.000000e+00> : vector<2x64xf32>
    %585 = tpu.matmul %583, %584, %cst_117 {dimension_numbers = #tpu.dot_dimension_numbers<[1], [0], [0], [1], [0, 0, 1, 1], [], []>} : vector<2x4xf32>, vector<4x64xf32>, vector<2x64xf32> -> vector<2x64xf32>
    %586 = vector.extract_strided_slice %496 {offsets = [10, 0], sizes = [2, 64], strides = [1, 1]} : vector<16x64xf32> to vector<2x64xf32>
    %587 = arith.mulf %585, %586 : vector<2x64xf32>
    %588 = arith.addf %582, %587 : vector<2x64xf32>
    %589 = arith.mulf %545, %551 : vector<2x4xf32>
    %c0_118 = arith.constant 0 : index
    %c0_119 = arith.constant 0 : index
    %590 = vector.load %arg14[%c0_118, %c0_119] : memref<4x64xf32, #tpu.memory_space<vmem>>, vector<4x64xf32>
    %cst_120 = arith.constant dense<0.000000e+00> : vector<2x64xf32>
    %591 = tpu.matmul %589, %590, %cst_120 {dimension_numbers = #tpu.dot_dimension_numbers<[1], [0], [0], [1], [0, 0, 1, 1], [], []>} : vector<2x4xf32>, vector<4x64xf32>, vector<2x64xf32> -> vector<2x64xf32>
    %592 = vector.extract_strided_slice %496 {offsets = [12, 0], sizes = [2, 64], strides = [1, 1]} : vector<16x64xf32> to vector<2x64xf32>
    %593 = arith.mulf %591, %592 : vector<2x64xf32>
    %594 = arith.addf %588, %593 : vector<2x64xf32>
    %595 = arith.mulf %549, %551 : vector<2x4xf32>
    %c0_121 = arith.constant 0 : index
    %c0_122 = arith.constant 0 : index
    %596 = vector.load %arg14[%c0_121, %c0_122] : memref<4x64xf32, #tpu.memory_space<vmem>>, vector<4x64xf32>
    %cst_123 = arith.constant dense<0.000000e+00> : vector<2x64xf32>
    %597 = tpu.matmul %595, %596, %cst_123 {dimension_numbers = #tpu.dot_dimension_numbers<[1], [0], [0], [1], [0, 0, 1, 1], [], []>} : vector<2x4xf32>, vector<4x64xf32>, vector<2x64xf32> -> vector<2x64xf32>
    %598 = vector.extract_strided_slice %496 {offsets = [14, 0], sizes = [2, 64], strides = [1, 1]} : vector<16x64xf32> to vector<2x64xf32>
    %599 = arith.mulf %597, %598 : vector<2x64xf32>
    %600 = arith.addf %594, %599 : vector<2x64xf32>
    %c0_124 = arith.constant 0 : index
    %c0_125 = arith.constant 0 : index
    %601 = vector.load %arg11[%c0_124, %c0_125] : memref<64x64xf32, #tpu.memory_space<vmem>>, vector<64x64xf32>
    %cst_126 = arith.constant dense<0.000000e+00> : vector<2x64xf32>
    %602 = tpu.matmul %600, %601, %cst_126 {dimension_numbers = #tpu.dot_dimension_numbers<[1], [0], [0], [1], [0, 0, 1, 1], [], []>} : vector<2x64xf32>, vector<64x64xf32>, vector<2x64xf32> -> vector<2x64xf32>
    %c0_127 = arith.constant 0 : index
    %c0_128 = arith.constant 0 : index
    %603 = vector.load %arg12[%c0_127, %c0_128] : memref<1x64xf32, #tpu.memory_space<vmem>>, vector<1x64xf32>
    %604 = vector.broadcast %603 : vector<1x64xf32> to vector<2x64xf32>
    %605 = arith.addf %602, %604 : vector<2x64xf32>
    %c0_129 = arith.constant 0 : index
    %c0_130 = arith.constant 0 : index
    %606 = vector.load %arg15[%c0_129, %c0_130] : memref<64x32xf32, #tpu.memory_space<vmem>>, vector<64x32xf32>
    %cst_131 = arith.constant dense<0.000000e+00> : vector<2x32xf32>
    %607 = tpu.matmul %605, %606, %cst_131 {dimension_numbers = #tpu.dot_dimension_numbers<[1], [0], [0], [1], [0, 0, 1, 1], [], []>} : vector<2x64xf32>, vector<64x32xf32>, vector<2x32xf32> -> vector<2x32xf32>
    %c0_132 = arith.constant 0 : index
    %c0_133 = arith.constant 0 : index
    %608 = vector.load %arg16[%c0_132, %c0_133] : memref<1x32xf32, #tpu.memory_space<vmem>>, vector<1x32xf32>
    %609 = vector.broadcast %608 : vector<1x32xf32> to vector<2x32xf32>
    %610 = arith.addf %607, %609 : vector<2x32xf32>
    %cst_134 = arith.constant 0.000000e+00 : f32
    %611 = vector.broadcast %cst_134 : f32 to vector<2x32xf32>
    %612 = arith.maximumf %610, %611 : vector<2x32xf32>
    %c0_135 = arith.constant 0 : index
    %c0_136 = arith.constant 0 : index
    %613 = vector.load %arg17[%c0_135, %c0_136] : memref<32x3xf32, #tpu.memory_space<vmem>>, vector<32x3xf32>
    %cst_137 = arith.constant dense<0.000000e+00> : vector<2x3xf32>
    %614 = tpu.matmul %612, %613, %cst_137 {dimension_numbers = #tpu.dot_dimension_numbers<[1], [0], [0], [1], [0, 0, 1, 1], [], []>} : vector<2x32xf32>, vector<32x3xf32>, vector<2x3xf32> -> vector<2x3xf32>
    %c0_138 = arith.constant 0 : index
    %c0_139 = arith.constant 0 : index
    %615 = vector.load %arg18[%c0_138, %c0_139] : memref<1x3xf32, #tpu.memory_space<vmem>>, vector<1x3xf32>
    %616 = vector.broadcast %615 : vector<1x3xf32> to vector<2x3xf32>
    %617 = arith.addf %614, %616 : vector<2x3xf32>
    %c0_140 = arith.constant 0 : index
    %c0_141 = arith.constant 0 : index
    %618 = vector.load %arg19[%c0_140, %c0_141] : memref<2x3xf32, #tpu.memory_space<vmem>>, vector<2x3xf32>
    tpu.vector_store %arg19[%c0_140, %c0_141], %617 {strides = array<i32>} : memref<2x3xf32, #tpu.memory_space<vmem>>, vector<2x3xf32>,
    return
  }
}

</mosaic_0001>

<llo_original>
// kernel: lstm_model_forward.1
$region0: #{lstm_model_forward.1}
  #allocation0 [shape = 'u32[]', space=smem, size = 0x4, offset = 0x4, fixed_abs, tag = 'smem constant byte address 0x4 - core index']
  #allocation1 [shape = 'u32[144,128]{1,0:T(1,128)}', space=vmem, size = 0x12000, scoped, tag = 'internal scratch']
  #allocation2 [shape = 'f32[16,64]{1,0:T(8,128)}', space=vmem, size = 0x2000, scoped, tag = 'scratch operand']
  %s0 = inlined_call_operand.vmem [shape: f32[16,8], index: 0, kind: input, shape index: {}]
  %s1 = inlined_call_operand.hbm [shape: f32[8,256], index: 1, kind: input, shape index: {}]
  %s2 = inlined_call_operand.hbm [shape: f32[1,256], index: 2, kind: input, shape index: {}]
  %s3 = inlined_call_operand.hbm [shape: f32[128,512], index: 3, kind: input, shape index: {}]
  %s4 = inlined_call_operand.hbm [shape: f32[1,256], index: 4, kind: input, shape index: {}]
  %s5 = inlined_call_operand.vmem [shape: f32[64,64], index: 5, kind: input, shape index: {}]
  %s6 = inlined_call_operand.hbm [shape: f32[1,64], index: 6, kind: input, shape index: {}]
  %s7 = inlined_call_operand.vmem [shape: f32[64,64], index: 7, kind: input, shape index: {}]
  %s8 = inlined_call_operand.hbm [shape: f32[1,64], index: 8, kind: input, shape index: {}]
  %s9 = inlined_call_operand.vmem [shape: f32[64,64], index: 9, kind: input, shape index: {}]
  %s10 = inlined_call_operand.hbm [shape: f32[1,64], index: 10, kind: input, shape index: {}]
  %s11 = inlined_call_operand.vmem [shape: f32[64,64], index: 11, kind: input, shape index: {}]
  %s12 = inlined_call_operand.hbm [shape: f32[1,64], index: 12, kind: input, shape index: {}]
  %s13 = inlined_call_operand.vmem [shape: f32[64,4], index: 13, kind: input, shape index: {}]
  %s14 = inlined_call_operand.vmem [shape: f32[4,64], index: 14, kind: input, shape index: {}]
  %s15 = inlined_call_operand.vmem [shape: f32[64,32], index: 15, kind: input, shape index: {}]
  %s16 = inlined_call_operand.vmem [shape: f32[1,32], index: 16, kind: input, shape index: {}]
  %s17 = inlined_call_operand.vmem [shape: f32[32,3], index: 17, kind: input, shape index: {}]
  %s18 = inlined_call_operand.vmem [shape: f32[1,3], index: 18, kind: input, shape index: {}]
  %s19 = inlined_call_operand.hbm [shape: f32[2,3], index: 19, kind: output, shape index: {}]
  %s20 = sld [smem:[#allocation0]]
  $region118: #{lstm_model_forward.1} parent=0
    _
  %s22 = ssub.s32 1, %s20
  %s23 = scalar_select 0, %s22, %s20
  $region1: #{lstm_model_forward.1} parent=0
    #allocation3 [shape = 'u8[8192]{0}', space=vmem, size = 0x2000, scoped, tag = 'input window, operand 1, single buffered']
    #allocation4 [shape = 's32[1]{0}', space=sflag, size = 0x4, scoped, tag = 'scoped memory for lstm_model_forward.1']
    #allocation5 [shape = 's32[1]{0}', space=sflag, size = 0x4, scoped, tag = 'scoped memory for lstm_model_forward.1']
    #allocation6 [shape = 'u8[1024]{0}', space=vmem, size = 0x400, scoped, tag = 'input window, operand 2, single buffered']
    #allocation7 [shape = 's32[1]{0}', space=sflag, size = 0x4, scoped, tag = 'scoped memory for lstm_model_forward.1']
    #allocation8 [shape = 'u8[262144]{0}', space=vmem, size = 0x40000, scoped, tag = 'input window, operand 3, single buffered']
    #allocation9 [shape = 'u8[1024]{0}', space=vmem, size = 0x400, scoped, tag = 'input window, operand 4, single buffered']
    #allocation10 [shape = 's32[1]{0}', space=sflag, size = 0x4, scoped, tag = 'scoped memory for lstm_model_forward.1']
    #allocation11 [shape = 'u8[512]{0}', space=vmem, size = 0x400, scoped, tag = 'input window, operand 6, single buffered']
    #allocation12 [shape = 'u8[512]{0}', space=vmem, size = 0x400, scoped, tag = 'input window, operand 8, single buffered']
    #allocation13 [shape = 's32[1]{0}', space=sflag, size = 0x4, scoped, tag = 'scoped memory for lstm_model_forward.1']
    #allocation14 [shape = 'u8[512]{0}', space=vmem, size = 0x400, scoped, tag = 'input window, operand 10, single buffered']
    #allocation15 [shape = 'u8[512]{0}', space=vmem, size = 0x400, scoped, tag = 'input window, operand 12, single buffered']
    #allocation16 [shape = 's32[1]{0}', space=sflag, size = 0x4, scoped, tag = 'scoped memory for lstm_model_forward.1']
    #allocation17 [shape = 'u8[1024]{0}', space=vmem, size = 0x400, scoped, tag = 'output window, operand 0, single buffered']
    %24 = vsyncpa [#allocation4], 0
    %25 = vsyncpa [#allocation7], 0
    %26 = vsyncpa [#allocation10], 0
    %27 = vsyncpa [#allocation13], 0
    %28 = vsyncpa [#allocation16], 0
    %29 = vsyncpa [#allocation5], 0
    // Predicated region
    $region2: #{lstm_model_forward.1} parent=1 // pred_check
      _
    $region3: #{lstm_model_forward.1} parent=1 // pred_check_branch
      %31 = sbr.rel (0) target = $region5
    $region4: #{lstm_model_forward.1} parent=1 // pred_region
      _
    $region5: #{lstm_model_forward.1} parent=1 // pred_fallthru
      _
    // Predicated region
    $region6: #{lstm_model_forward.1} parent=1 // pred_check
      _
    $region7: #{lstm_model_forward.1} parent=1 // pred_check_branch
      %33 = sbr.rel (0) target = $region9
    $region8: #{lstm_model_forward.1} parent=1 // pred_region
      %s35 = ssub.s32 256, 256
      %36 = vsyncadd [#allocation4], %s35
      %s38 = sshll.u32 [#allocation3], 4
      %s39 = int_to_ptr.vmem [resolvable:$true] %s38
      %41 = dma.hbm_to_vmem [thread:$0]  %s1, 256, %s39, [#allocation4]
    $region9: #{lstm_model_forward.1} parent=1 // pred_fallthru
      _
    // Predicated region
    $region10: #{lstm_model_forward.1} parent=1 // pred_check
      _
    $region11: #{lstm_model_forward.1} parent=1 // pred_check_branch
      %43 = sbr.rel (0) target = $region13
    $region12: #{lstm_model_forward.1} parent=1 // pred_region
      %s45 = ssub.s32 32, 32
      %46 = vsyncadd [#allocation7], %s45
      %s48 = sshll.u32 [#allocation6], 4
      %s49 = int_to_ptr.vmem [resolvable:$true] %s48
      %51 = dma.hbm_to_vmem [thread:$0]  %s2, 32, %s49, [#allocation7]
    $region13: #{lstm_model_forward.1} parent=1 // pred_fallthru
      _
    // Predicated region
    $region14: #{lstm_model_forward.1} parent=1 // pred_check
      _
    $region15: #{lstm_model_forward.1} parent=1 // pred_check_branch
      %53 = sbr.rel (0) target = $region17
    $region16: #{lstm_model_forward.1} parent=1 // pred_region
      %s55 = ssub.s32 8192, 8192
      %56 = vsyncadd [#allocation7], %s55
      %s57 = sshll.u32 [#allocation8], 4
      %s58 = int_to_ptr.vmem [resolvable:$true] %s57
      %63 = dma.hbm_to_vmem [thread:$0]  %s3, 8192, %s58, [#allocation7], 512, 512, 32
    $region17: #{lstm_model_forward.1} parent=1 // pred_fallthru
      _
    // Predicated region
    $region18: #{lstm_model_forward.1} parent=1 // pred_check
      _
    $region19: #{lstm_model_forward.1} parent=1 // pred_check_branch
      %65 = sbr.rel (0) target = $region21
    $region20: #{lstm_model_forward.1} parent=1 // pred_region
      %s67 = ssub.s32 32, 32
      %68 = vsyncadd [#allocation10], %s67
      %s70 = sshll.u32 [#allocation9], 4
      %s71 = int_to_ptr.vmem [resolvable:$true] %s70
      %73 = dma.hbm_to_vmem [thread:$0]  %s4, 32, %s71, [#allocation10]
    $region21: #{lstm_model_forward.1} parent=1 // pred_fallthru
      _
    // Predicated region
    $region22: #{lstm_model_forward.1} parent=1 // pred_check
      _
    $region23: #{lstm_model_forward.1} parent=1 // pred_check_branch
      %75 = sbr.rel (0) target = $region25
    $region24: #{lstm_model_forward.1} parent=1 // pred_region
      _
    $region25: #{lstm_model_forward.1} parent=1 // pred_fallthru
      _
    // Predicated region
    $region26: #{lstm_model_forward.1} parent=1 // pred_check
      _
    $region27: #{lstm_model_forward.1} parent=1 // pred_check_branch
      %77 = sbr.rel (0) target = $region29
    $region28: #{lstm_model_forward.1} parent=1 // pred_region
      %s79 = ssub.s32 16, 16
      %80 = vsyncadd [#allocation10], %s79
      %s82 = sshll.u32 [#allocation11], 4
      %s83 = int_to_ptr.vmem [resolvable:$true] %s82
      %85 = dma.hbm_to_vmem [thread:$0]  %s6, 16, %s83, [#allocation10]
    $region29: #{lstm_model_forward.1} parent=1 // pred_fallthru
      _
    // Predicated region
    $region30: #{lstm_model_forward.1} parent=1 // pred_check
      _
    $region31: #{lstm_model_forward.1} parent=1 // pred_check_branch
      %87 = sbr.rel (0) target = $region33
    $region32: #{lstm_model_forward.1} parent=1 // pred_region
      _
    $region33: #{lstm_model_forward.1} parent=1 // pred_fallthru
      _
    // Predicated region
    $region34: #{lstm_model_forward.1} parent=1 // pred_check
      _
    $region35: #{lstm_model_forward.1} parent=1 // pred_check_branch
      %89 = sbr.rel (0) target = $region37
    $region36: #{lstm_model_forward.1} parent=1 // pred_region
      %s91 = ssub.s32 16, 16
      %92 = vsyncadd [#allocation13], %s91
      %s94 = sshll.u32 [#allocation12], 4
      %s95 = int_to_ptr.vmem [resolvable:$true] %s94
      %97 = dma.hbm_to_vmem [thread:$0]  %s8, 16, %s95, [#allocation13]
    $region37: #{lstm_model_forward.1} parent=1 // pred_fallthru
      _
    // Predicated region
    $region38: #{lstm_model_forward.1} parent=1 // pred_check
      _
    $region39: #{lstm_model_forward.1} parent=1 // pred_check_branch
      %99 = sbr.rel (0) target = $region41
    $region40: #{lstm_model_forward.1} parent=1 // pred_region
      _
    $region41: #{lstm_model_forward.1} parent=1 // pred_fallthru
      _
    // Predicated region
    $region42: #{lstm_model_forward.1} parent=1 // pred_check
      _
    $region43: #{lstm_model_forward.1} parent=1 // pred_check_branch
      %101 = sbr.rel (0) target = $region45
    $region44: #{lstm_model_forward.1} parent=1 // pred_region
      %s103 = ssub.s32 16, 16
      %104 = vsyncadd [#allocation13], %s103
      %s106 = sshll.u32 [#allocation14], 4
      %s107 = int_to_ptr.vmem [resolvable:$true] %s106
      %109 = dma.hbm_to_vmem [thread:$0]  %s10, 16, %s107, [#allocation13]
    $region45: #{lstm_model_forward.1} parent=1 // pred_fallthru
      _
    // Predicated region
    $region46: #{lstm_model_forward.1} parent=1 // pred_check
      _
    $region47: #{lstm_model_forward.1} parent=1 // pred_check_branch
      %111 = sbr.rel (0) target = $region49
    $region48: #{lstm_model_forward.1} parent=1 // pred_region
      _
    $region49: #{lstm_model_forward.1} parent=1 // pred_fallthru
      _
    // Predicated region
    $region50: #{lstm_model_forward.1} parent=1 // pred_check
      _
    $region51: #{lstm_model_forward.1} parent=1 // pred_check_branch
      %113 = sbr.rel (0) target = $region53
    $region52: #{lstm_model_forward.1} parent=1 // pred_region
      %s115 = ssub.s32 16, 16
      %116 = vsyncadd [#allocation16], %s115
      %s118 = sshll.u32 [#allocation15], 4
      %s119 = int_to_ptr.vmem [resolvable:$true] %s118
      %121 = dma.hbm_to_vmem [thread:$0]  %s12, 16, %s119, [#allocation16]
    $region53: #{lstm_model_forward.1} parent=1 // pred_fallthru
      _
    // Predicated region
    $region54: #{lstm_model_forward.1} parent=1 // pred_check
      _
    $region55: #{lstm_model_forward.1} parent=1 // pred_check_branch
      %123 = sbr.rel (0) target = $region57
    $region56: #{lstm_model_forward.1} parent=1 // pred_region
      _
    $region57: #{lstm_model_forward.1} parent=1 // pred_fallthru
      _
    // Predicated region
    $region58: #{lstm_model_forward.1} parent=1 // pred_check
      _
    $region59: #{lstm_model_forward.1} parent=1 // pred_check_branch
      %125 = sbr.rel (0) target = $region61
    $region60: #{lstm_model_forward.1} parent=1 // pred_region
      _
    $region61: #{lstm_model_forward.1} parent=1 // pred_fallthru
      _
    // Predicated region
    $region62: #{lstm_model_forward.1} parent=1 // pred_check
      _
    $region63: #{lstm_model_forward.1} parent=1 // pred_check_branch
      %127 = sbr.rel (0) target = $region65
    $region64: #{lstm_model_forward.1} parent=1 // pred_region
      _
    $region65: #{lstm_model_forward.1} parent=1 // pred_fallthru
      _
    // Predicated region
    $region66: #{lstm_model_forward.1} parent=1 // pred_check
      _
    $region67: #{lstm_model_forward.1} parent=1 // pred_check_branch
      %129 = sbr.rel (0) target = $region69
    $region68: #{lstm_model_forward.1} parent=1 // pred_region
      _
    $region69: #{lstm_model_forward.1} parent=1 // pred_fallthru
      _
    // Predicated region
    $region70: #{lstm_model_forward.1} parent=1 // pred_check
      _
    $region71: #{lstm_model_forward.1} parent=1 // pred_check_branch
      %131 = sbr.rel (0) target = $region73
    $region72: #{lstm_model_forward.1} parent=1 // pred_region
      _
    $region73: #{lstm_model_forward.1} parent=1 // pred_fallthru
      _
    // Predicated region
    $region74: #{lstm_model_forward.1} parent=1 // pred_check
      _
    $region75: #{lstm_model_forward.1} parent=1 // pred_check_branch
      %133 = sbr.rel (0) target = $region77
    $region76: #{lstm_model_forward.1} parent=1 // pred_region
      _
    $region77: #{lstm_model_forward.1} parent=1 // pred_fallthru
      _
    // Predicated region
    $region78: #{lstm_model_forward.1} parent=1 // pred_check
      _
    $region79: #{lstm_model_forward.1} parent=1 // pred_check_branch
      %135 = sbr.rel (0) target = $region81
    $region80: #{lstm_model_forward.1} parent=1 // pred_region
      %136 = dma.done [#allocation4], 256
    $region81: #{lstm_model_forward.1} parent=1 // pred_fallthru
      _
    // Predicated region
    $region82: #{lstm_model_forward.1} parent=1 // pred_check
      _
    $region83: #{lstm_model_forward.1} parent=1 // pred_check_branch
      %138 = sbr.rel (0) target = $region85
    $region84: #{lstm_model_forward.1} parent=1 // pred_region
      %139 = dma.done [#allocation7], 32
    $region85: #{lstm_model_forward.1} parent=1 // pred_fallthru
      _
    // Predicated region
    $region86: #{lstm_model_forward.1} parent=1 // pred_check
      _
    $region87: #{lstm_model_forward.1} parent=1 // pred_check_branch
      %141 = sbr.rel (0) target = $region89
    $region88: #{lstm_model_forward.1} parent=1 // pred_region
      %142 = dma.done [#allocation7], 8192
    $region89: #{lstm_model_forward.1} parent=1 // pred_fallthru
      _
    // Predicated region
    $region90: #{lstm_model_forward.1} parent=1 // pred_check
      _
    $region91: #{lstm_model_forward.1} parent=1 // pred_check_branch
      %144 = sbr.rel (0) target = $region93
    $region92: #{lstm_model_forward.1} parent=1 // pred_region
      %145 = dma.done [#allocation10], 32
    $region93: #{lstm_model_forward.1} parent=1 // pred_fallthru
      _
    // Predicated region
    $region94: #{lstm_model_forward.1} parent=1 // pred_check
      _
    $region95: #{lstm_model_forward.1} parent=1 // pred_check_branch
      %147 = sbr.rel (0) target = $region97
    $region96: #{lstm_model_forward.1} parent=1 // pred_region
      %148 = dma.done [#allocation10], 16
    $region97: #{lstm_model_forward.1} parent=1 // pred_fallthru
      _
    // Predicated region
    $region98: #{lstm_model_forward.1} parent=1 // pred_check
      _
    $region99: #{lstm_model_forward.1} parent=1 // pred_check_branch
      %150 = sbr.rel (0) target = $region101
    $region100: #{lstm_model_forward.1} parent=1 // pred_region
      %151 = dma.done [#allocation13], 16
    $region101: #{lstm_model_forward.1} parent=1 // pred_fallthru
      _
    // Predicated region
    $region102: #{lstm_model_forward.1} parent=1 // pred_check
      _
    $region103: #{lstm_model_forward.1} parent=1 // pred_check_branch
      %153 = sbr.rel (0) target = $region105
    $region104: #{lstm_model_forward.1} parent=1 // pred_region
      %154 = dma.done [#allocation13], 16
    $region105: #{lstm_model_forward.1} parent=1 // pred_fallthru
      _
    // Predicated region
    $region106: #{lstm_model_forward.1} parent=1 // pred_check
      _
    $region107: #{lstm_model_forward.1} parent=1 // pred_check_branch
      %156 = sbr.rel (0) target = $region109
    $region108: #{lstm_model_forward.1} parent=1 // pred_region
      %157 = dma.done [#allocation16], 16
    $region109: #{lstm_model_forward.1} parent=1 // pred_fallthru
      _
    %v158 = vld [vmem:[%s0] sm:$0xff]
    %v159 = vld [vmem:[%s0 + $0x8] sm:$0xff]
    %v160 = vld [vmem:[#allocation3] sm:$0xff]
    %v161 = vld [vmem:[#allocation3 + $0x8] sm:$0xff]
    %v162 = vld [vmem:[#allocation6] sm:$0x3]
    %v164 = vlaneseq
    %v165 = vshrl.u32 %v164, 7
    %v166 = vsub.s32 0, %v165
    %v167 = vrot.slane %v162, %v166
    %v168 = vlaneseq
    %v169 = vshrl.u32 %v168, 7
    %v170 = vsub.s32 1, %v169
    %v171 = vrot.slane %v162, %v170
    %vm174 = vcmask 64512
    %v176 = vsel %vm174, %v158, 0
    %v179 = vsel %vm174, %v159, 0
    %181 = vmatprep.subr.mxu0 %v161
    %182 = vmatpush1.msra.mxu0 %v160
    %183 = vmatprep.subr.mxu0 0.0
    %184 = vmatpush1.msra.mxu0 0.0
    %185 = vmatprep.subr.mxu0 0.0
    %186 = vmatpush1.msra.mxu0 0.0
    %187 = vmatprep.subr.mxu0 0.0
    %188 = vmatpush1.msra.mxu0 0.0
    %189 = vmatprep.subr.mxu0 0.0
    %190 = vmatpush1.msra.mxu0 0.0
    %191 = vmatprep.subr.mxu0 0.0
    %192 = vmatpush1.msra.mxu0 0.0
    %193 = vmatprep.subr.mxu0 0.0
    %194 = vmatpush1.msra.mxu0 0.0
    %195 = vmatprep.subr.mxu0 0.0
    %196 = vmatpush1.msra.mxu0 0.0
    %197 = vmatprep.subr.mxu0 0.0
    %198 = vmatpush1.msra.mxu0 0.0
    %199 = vmatprep.subr.mxu0 0.0
    %200 = vmatpush1.msra.mxu0 0.0
    %201 = vmatprep.subr.mxu0 0.0
    %202 = vmatpush1.msra.mxu0 0.0
    %203 = vmatprep.subr.mxu0 0.0
    %204 = vmatpush1.msra.mxu0 0.0
    %205 = vmatprep.subr.mxu0 0.0
    %206 = vmatpush1.msra.mxu0 0.0
    %207 = vmatprep.subr.mxu0 0.0
    %208 = vmatpush1.msra.mxu0 0.0
    %209 = vmatprep.subr.mxu0 0.0
    %210 = vmatpush1.msra.mxu0 0.0
    %211 = vmatprep.subr.mxu0 0.0
    %212 = vmatpush1.msra.mxu0 0.0
    %213 = vmatprep.subr.mxu0 0.0
    %214 = vmatpush1.msra.mxu0 0.0
    %215 = vmatprep.subr.mxu0 0.0
    %216 = vmatpush1.msra.mxu0 0.0
    %217 = vmatprep.subr.mxu0 0.0
    %218 = vmatpush1.msra.mxu0 0.0
    %219 = vmatprep.subr.mxu0 0.0
    %220 = vmatpush1.msra.mxu0 0.0
    %221 = vmatprep.subr.mxu0 0.0
    %222 = vmatpush1.msra.mxu0 0.0
    %223 = vmatprep.subr.mxu0 0.0
    %224 = vmatpush1.msra.mxu0 0.0
    %225 = vmatprep.subr.mxu0 0.0
    %226 = vmatpush1.msra.mxu0 0.0
    %227 = vmatprep.subr.mxu0 0.0
    %228 = vmatpush1.msra.mxu0 0.0
    %229 = vmatprep.subr.mxu0 0.0
    %230 = vmatpush1.msra.mxu0 0.0
    %231 = vmatprep.subr.mxu0 0.0
    %232 = vmatpush1.msra.mxu0 0.0
    %233 = vmatprep.subr.mxu0 0.0
    %234 = vmatpush1.msra.mxu0 0.0
    %235 = vmatprep.subr.mxu0 0.0
    %236 = vmatpush1.msra.mxu0 0.0
    %237 = vmatprep.subr.mxu0 0.0
    %238 = vmatpush1.msra.mxu0 0.0
    %239 = vmatprep.subr.mxu0 0.0
    %240 = vmatpush1.msra.mxu0 0.0
    %241 = vmatprep.subr.mxu0 0.0
    %242 = vmatpush1.msra.mxu0 0.0
    %243 = vmatprep.subr.mxu0 0.0
    %244 = vmatpush1.msra.mxu0 0.0
    %245 = vmatprep.mubr.f32.mxu0 0.0
    %246 = vmatmul.mubr.f32.gmra.mrb[0].mxu0 %v176
    %v247 = vpop.f32.mrb[0].mxu0
    %v248 = vadd.f32 %v167, %v247
    %v249 = vpop.f32.mrb[0].mxu0
    %v250 = vadd.f32 %v171, %v249
    %251 = vmatprep.mubr.f32.mxu0 0.0
    %252 = vmatmul.mubr.f32.gmra.mrb[0].mxu0 %v179
    %v253 = vpop.f32.mrb[0].mxu0
    %v254 = vadd.f32 %v167, %v253
    %v255 = vpop.f32.mrb[0].mxu0
    %v256 = vadd.f32 %v171, %v255
    %257 = vdwg.mxu0
    %v258 = vld [vmem:[#allocation8] sm:$0xff]
    %v259 = vld [vmem:[#allocation8 + $0x8] sm:$0xff]
    %v260 = vld [vmem:[#allocation8 + $0x10] sm:$0xff]
    %v261 = vld [vmem:[#allocation8 + $0x18] sm:$0xff]
    %v262 = vld [vmem:[#allocation8 + $0x20] sm:$0xff]
    %v263 = vld [vmem:[#allocation8 + $0x28] sm:$0xff]
    %v264 = vld [vmem:[#allocation8 + $0x30] sm:$0xff]
    %v265 = vld [vmem:[#allocation8 + $0x38] sm:$0xff]
    %v266 = vld [vmem:[#allocation8 + $0x40] sm:$0xff]
    %v267 = vld [vmem:[#allocation8 + $0x48] sm:$0xff]
    %v268 = vld [vmem:[#allocation8 + $0x50] sm:$0xff]
    %v269 = vld [vmem:[#allocation8 + $0x58] sm:$0xff]
    %v270 = vld [vmem:[#allocation8 + $0x60] sm:$0xff]
    %v271 = vld [vmem:[#allocation8 + $0x68] sm:$0xff]
    %v272 = vld [vmem:[#allocation8 + $0x70] sm:$0xff]
    %v273 = vld [vmem:[#allocation8 + $0x78] sm:$0xff]
    %v274 = vld [vmem:[#allocation8 + $0x80] sm:$0xff]
    %v275 = vld [vmem:[#allocation8 + $0x88] sm:$0xff]
    %v276 = vld [vmem:[#allocation8 + $0x90] sm:$0xff]
    %v277 = vld [vmem:[#allocation8 + $0x98] sm:$0xff]
    %v278 = vld [vmem:[#allocation8 + $0xa0] sm:$0xff]
    %v279 = vld [vmem:[#allocation8 + $0xa8] sm:$0xff]
    %v280 = vld [vmem:[#allocation8 + $0xb0] sm:$0xff]
    %v281 = vld [vmem:[#allocation8 + $0xb8] sm:$0xff]
    %v282 = vld [vmem:[#allocation8 + $0xc0] sm:$0xff]
    %v283 = vld [vmem:[#allocation8 + $0xc8] sm:$0xff]
    %v284 = vld [vmem:[#allocation8 + $0xd0] sm:$0xff]
    %v285 = vld [vmem:[#allocation8 + $0xd8] sm:$0xff]
    %v286 = vld [vmem:[#allocation8 + $0xe0] sm:$0xff]
    %v287 = vld [vmem:[#allocation8 + $0xe8] sm:$0xff]
    %v288 = vld [vmem:[#allocation8 + $0xf0] sm:$0xff]
    %v289 = vld [vmem:[#allocation8 + $0xf8] sm:$0xff]
    %v290 = vld [vmem:[#allocation8 + $0x100] sm:$0xff]
    %v291 = vld [vmem:[#allocation8 + $0x108] sm:$0xff]
    %v292 = vld [vmem:[#allocation8 + $0x110] sm:$0xff]
    %v293 = vld [vmem:[#allocation8 + $0x118] sm:$0xff]
    %v294 = vld [vmem:[#allocation8 + $0x120] sm:$0xff]
    %v295 = vld [vmem:[#allocation8 + $0x128] sm:$0xff]
    %v296 = vld [vmem:[#allocation8 + $0x130] sm:$0xff]
    %v297 = vld [vmem:[#allocation8 + $0x138] sm:$0xff]
    %v298 = vld [vmem:[#allocation8 + $0x140] sm:$0xff]
    %v299 = vld [vmem:[#allocation8 + $0x148] sm:$0xff]
    %v300 = vld [vmem:[#allocation8 + $0x150] sm:$0xff]
    %v301 = vld [vmem:[#allocation8 + $0x158] sm:$0xff]
    %v302 = vld [vmem:[#allocation8 + $0x160] sm:$0xff]
    %v303 = vld [vmem:[#allocation8 + $0x168] sm:$0xff]
    %v304 = vld [vmem:[#allocation8 + $0x170] sm:$0xff]
    %v305 = vld [vmem:[#allocation8 + $0x178] sm:$0xff]
    %v306 = vld [vmem:[#allocation8 + $0x180] sm:$0xff]
    %v307 = vld [vmem:[#allocation8 + $0x188] sm:$0xff]
    %v308 = vld [vmem:[#allocation8 + $0x190] sm:$0xff]
    %v309 = vld [vmem:[#allocation8 + $0x198] sm:$0xff]
    %v310 = vld [vmem:[#allocation8 + $0x1a0] sm:$0xff]
    %v311 = vld [vmem:[#allocation8 + $0x1a8] sm:$0xff]
    %v312 = vld [vmem:[#allocation8 + $0x1b0] sm:$0xff]
    %v313 = vld [vmem:[#allocation8 + $0x1b8] sm:$0xff]
    %v314 = vld [vmem:[#allocation8 + $0x1c0] sm:$0xff]
    %v315 = vld [vmem:[#allocation8 + $0x1c8] sm:$0xff]
    %v316 = vld [vmem:[#allocation8 + $0x1d0] sm:$0xff]
    %v317 = vld [vmem:[#allocation8 + $0x1d8] sm:$0xff]
    %v318 = vld [vmem:[#allocation8 + $0x1e0] sm:$0xff]
    %v319 = vld [vmem:[#allocation8 + $0x1e8] sm:$0xff]
    %v320 = vld [vmem:[#allocation8 + $0x1f0] sm:$0xff]
    %v321 = vld [vmem:[#allocation8 + $0x1f8] sm:$0xff]
    %v322 = vld [vmem:[#allocation9] sm:$0x3]
    %v323 = vxor.u32 %v248, 2147483648
    %v324 = vmul.f32 %v323, 1.442695
    %v325 = vpow.pop %v324
    %v326 = vadd.f32 %v325, 1.0
    %v327 = vrcp.pop %v326
    %v328 = vmul.f32 1.0, %v327
    %v329 = vtanh.pop %v250
    %v330 = vxor.u32 %v250, 2147483648
    %v331 = vmul.f32 %v330, 1.442695
    %v332 = vpow.pop %v331
    %v333 = vadd.f32 %v332, 1.0
    %v334 = vrcp.pop %v333
    %v335 = vmul.f32 1.0, %v334
    %v336 = vmul.f32 %v328, 0.0
    %v337 = vmul.f32 %v328, %v329
    %339 = vrot.lane.b32.xlu0 %v337, 64
    %v340 = vpop.permute.xlu0 %339
    %v342 = vadd.f32 %v336, %v340
    %v343 = vtanh.pop %v342
    %v344 = vmul.f32 %v335, %v343
    %346 = vrot.lane.b32.xlu0 %v344, 64
    %v347 = vpop.permute.xlu0 %346
    %vm349 = vcmask 523264
    %v350 = vsel %vm349, %v347, 0.0
    %351 = vmatprep.subr.mxu0 %v259
    %352 = vmatpush1.msra.mxu0 %v258
    %353 = vmatprep.subr.mxu0 %v263
    %354 = vmatpush1.msra.mxu0 %v262
    %355 = vmatprep.subr.mxu0 %v267
    %356 = vmatpush1.msra.mxu0 %v266
    %357 = vmatprep.subr.mxu0 %v271
    %358 = vmatpush1.msra.mxu0 %v270
    %359 = vmatprep.subr.mxu0 %v275
    %360 = vmatpush1.msra.mxu0 %v274
    %361 = vmatprep.subr.mxu0 %v279
    %362 = vmatpush1.msra.mxu0 %v278
    %363 = vmatprep.subr.mxu0 %v283
    %364 = vmatpush1.msra.mxu0 %v282
    %365 = vmatprep.subr.mxu0 %v287
    %366 = vmatpush1.msra.mxu0 %v286
    %367 = vmatprep.subr.mxu0 %v291
    %368 = vmatpush1.msra.mxu0 %v290
    %369 = vmatprep.subr.mxu0 %v295
    %370 = vmatpush1.msra.mxu0 %v294
    %371 = vmatprep.subr.mxu0 %v299
    %372 = vmatpush1.msra.mxu0 %v298
    %373 = vmatprep.subr.mxu0 %v303
    %374 = vmatpush1.msra.mxu0 %v302
    %375 = vmatprep.subr.mxu0 %v307
    %376 = vmatpush1.msra.mxu0 %v306
    %377 = vmatprep.subr.mxu0 %v311
    %378 = vmatpush1.msra.mxu0 %v310
    %379 = vmatprep.subr.mxu0 %v315
    %380 = vmatpush1.msra.mxu0 %v314
    %381 = vmatprep.subr.mxu0 %v319
    %382 = vmatpush1.msra.mxu0 %v318
    %383 = vmatprep.subr.mxu0 0.0
    %384 = vmatpush1.msra.mxu0 0.0
    %385 = vmatprep.subr.mxu0 0.0
    %386 = vmatpush1.msra.mxu0 0.0
    %387 = vmatprep.subr.mxu0 0.0
    %388 = vmatpush1.msra.mxu0 0.0
    %389 = vmatprep.subr.mxu0 0.0
    %390 = vmatpush1.msra.mxu0 0.0
    %391 = vmatprep.subr.mxu0 0.0
    %392 = vmatpush1.msra.mxu0 0.0
    %393 = vmatprep.subr.mxu0 0.0
    %394 = vmatpush1.msra.mxu0 0.0
    %395 = vmatprep.subr.mxu0 0.0
    %396 = vmatpush1.msra.mxu0 0.0
    %397 = vmatprep.subr.mxu0 0.0
    %398 = vmatpush1.msra.mxu0 0.0
    %399 = vmatprep.subr.mxu0 0.0
    %400 = vmatpush1.msra.mxu0 0.0
    %401 = vmatprep.subr.mxu0 0.0
    %402 = vmatpush1.msra.mxu0 0.0
    %403 = vmatprep.subr.mxu0 0.0
    %404 = vmatpush1.msra.mxu0 0.0
    %405 = vmatprep.subr.mxu0 0.0
    %406 = vmatpush1.msra.mxu0 0.0
    %407 = vmatprep.subr.mxu0 0.0
    %408 = vmatpush1.msra.mxu0 0.0
    %409 = vmatprep.subr.mxu0 0.0
    %410 = vmatpush1.msra.mxu0 0.0
    %411 = vmatprep.subr.mxu0 0.0
    %412 = vmatpush1.msra.mxu0 0.0
    %413 = vmatprep.subr.mxu0 0.0
    %414 = vmatpush1.msra.mxu0 0.0
    %415 = vmatprep.mubr.f32.mxu0 0.0
    %416 = vmatmul.mubr.f32.gmra.mrb[0].mxu0 %v350
    %v417 = vpop.f32.mrb[0].mxu0
    %v418 = vadd.f32 0.0, %v417
    %v419 = vpop.f32.mrb[0].mxu0
    %v420 = vadd.f32 0.0, %v419
    %421 = vdwg.mxu0
    %422 = vmatprep.subr.mxu0 %v261
    %423 = vmatpush1.msra.mxu0 %v260
    %424 = vmatprep.subr.mxu0 %v265
    %425 = vmatpush1.msra.mxu0 %v264
    %426 = vmatprep.subr.mxu0 %v269
    %427 = vmatpush1.msra.mxu0 %v268
    %428 = vmatprep.subr.mxu0 %v273
    %429 = vmatpush1.msra.mxu0 %v272
    %430 = vmatprep.subr.mxu0 %v277
    %431 = vmatpush1.msra.mxu0 %v276
    %432 = vmatprep.subr.mxu0 %v281
    %433 = vmatpush1.msra.mxu0 %v280
    %434 = vmatprep.subr.mxu0 %v285
    %435 = vmatpush1.msra.mxu0 %v284
    %436 = vmatprep.subr.mxu0 %v289
    %437 = vmatpush1.msra.mxu0 %v288
    %438 = vmatprep.subr.mxu0 %v293
    %439 = vmatpush1.msra.mxu0 %v292
    %440 = vmatprep.subr.mxu0 %v297
    %441 = vmatpush1.msra.mxu0 %v296
    %442 = vmatprep.subr.mxu0 %v301
    %443 = vmatpush1.msra.mxu0 %v300
    %444 = vmatprep.subr.mxu0 %v305
    %445 = vmatpush1.msra.mxu0 %v304
    %446 = vmatprep.subr.mxu0 %v309
    %447 = vmatpush1.msra.mxu0 %v308
    %448 = vmatprep.subr.mxu0 %v313
    %449 = vmatpush1.msra.mxu0 %v312
    %450 = vmatprep.subr.mxu0 %v317
    %451 = vmatpush1.msra.mxu0 %v316
    %452 = vmatprep.subr.mxu0 %v321
    %453 = vmatpush1.msra.mxu0 %v320
    %454 = vmatprep.subr.mxu0 0.0
    %455 = vmatpush1.msra.mxu0 0.0
    %456 = vmatprep.subr.mxu0 0.0
    %457 = vmatpush1.msra.mxu0 0.0
    %458 = vmatprep.subr.mxu0 0.0
    %459 = vmatpush1.msra.mxu0 0.0
    %460 = vmatprep.subr.mxu0 0.0
    %461 = vmatpush1.msra.mxu0 0.0
    %462 = vmatprep.subr.mxu0 0.0
    %463 = vmatpush1.msra.mxu0 0.0
    %464 = vmatprep.subr.mxu0 0.0
    %465 = vmatpush1.msra.mxu0 0.0
    %466 = vmatprep.subr.mxu0 0.0
    %467 = vmatpush1.msra.mxu0 0.0
    %468 = vmatprep.subr.mxu0 0.0
    %469 = vmatpush1.msra.mxu0 0.0
    %470 = vmatprep.subr.mxu0 0.0
    %471 = vmatpush1.msra.mxu0 0.0
    %472 = vmatprep.subr.mxu0 0.0
    %473 = vmatpush1.msra.mxu0 0.0
    %474 = vmatprep.subr.mxu0 0.0
    %475 = vmatpush1.msra.mxu0 0.0
    %476 = vmatprep.subr.mxu0 0.0
    %477 = vmatpush1.msra.mxu0 0.0
    %478 = vmatprep.subr.mxu0 0.0
    %479 = vmatpush1.msra.mxu0 0.0
    %480 = vmatprep.subr.mxu0 0.0
    %481 = vmatpush1.msra.mxu0 0.0
    %482 = vmatprep.subr.mxu0 0.0
    %483 = vmatpush1.msra.mxu0 0.0
    %484 = vmatprep.subr.mxu0 0.0
    %485 = vmatpush1.msra.mxu0 0.0
    %486 = vmatprep.mubr.f32.mxu0 0.0
    %487 = vmatmul.mubr.f32.gmra.mrb[0].mxu0 %v350
    %v488 = vpop.f32.mrb[0].mxu0
    %v489 = vadd.f32 0.0, %v488
    %v490 = vpop.f32.mrb[0].mxu0
    %v491 = vadd.f32 0.0, %v490
    %492 = vdwg.mxu0
    %v494 = vlaneseq
    %v495 = vshrl.u32 %v494, 7
    %v496 = vsub.s32 0, %v495
    %v497 = vrot.slane %v322, %v496
    %v498 = vlaneseq
    %v499 = vshrl.u32 %v498, 7
    %v500 = vsub.s32 1, %v499
    %v501 = vrot.slane %v322, %v500
    %v504 = vadd.f32 %v489, %v497
    %v505 = vadd.f32 %v491, %v501
    %v506 = vxor.u32 %v504, 2147483648
    %v507 = vmul.f32 %v506, 1.442695
    %v508 = vpow.pop %v507
    %v509 = vadd.f32 %v508, 1.0
    %v510 = vrcp.pop %v509
    %v511 = vmul.f32 1.0, %v510
    %v512 = vtanh.pop %v505
    %v513 = vxor.u32 %v505, 2147483648
    %v514 = vmul.f32 %v513, 1.442695
    %v515 = vpow.pop %v514
    %v516 = vadd.f32 %v515, 1.0
    %v517 = vrcp.pop %v516
    %v518 = vmul.f32 1.0, %v517
    %v519 = vmul.f32 %v511, 0.0
    %v520 = vmul.f32 %v511, %v512
    %522 = vrot.lane.b32.xlu0 %v520, 64
    %v523 = vpop.permute.xlu0 %522
    %v525 = vadd.f32 %v519, %v523
    %v526 = vtanh.pop %v525
    %v527 = vmul.f32 %v518, %v526
    %529 = vrot.lane.b32.xlu0 %v527, 64
    %v530 = vpop.permute.xlu0 %529
    %vm532 = vcmask 517120
    %533 = vst.msk [vmem:[#allocation2] sm:$0x3] %vm532, %v530
    %v536 = vrot.slane %v418, 6
    %v537 = vrot.slane %v420, 6
    %v540 = vadd.f32 %v248, %v536
    %v541 = vadd.f32 %v250, %v537
    %v542 = vxor.u32 %v540, 2147483648
    %v543 = vmul.f32 %v542, 1.442695
    %v544 = vpow.pop %v543
    %v545 = vadd.f32 %v544, 1.0
    %v546 = vrcp.pop %v545
    %v547 = vmul.f32 1.0, %v546
    %v548 = vtanh.pop %v541
    %v549 = vxor.u32 %v541, 2147483648
    %v550 = vmul.f32 %v549, 1.442695
    %v551 = vpow.pop %v550
    %v552 = vadd.f32 %v551, 1.0
    %v553 = vrcp.pop %v552
    %v554 = vmul.f32 1.0, %v553
    %v556 = vrot.slane %v342, 6
    %v558 = vmul.f32 %v547, %v556
    %v559 = vmul.f32 %v547, %v548
    %561 = vrot.lane.b32.xlu0 %v559, 64
    %v562 = vpop.permute.xlu0 %561
    %v564 = vadd.f32 %v558, %v562
    %v565 = vtanh.pop %v564
    %v566 = vmul.f32 %v554, %v565
    %568 = vrot.lane.b32.xlu0 %v566, 64
    %v569 = vpop.permute.xlu0 %568
    %v571 = vrot.slane %v527, 6
    %v573 = vsel %vm349, %v569, %v571
    %v575 = vrot.slane %v573, 2
    %577 = vmatprep.subr.mxu0 %v259
    %578 = vmatpush1.msra.mxu0 %v258
    %579 = vmatprep.subr.mxu0 %v263
    %580 = vmatpush1.msra.mxu0 %v262
    %581 = vmatprep.subr.mxu0 %v267
    %582 = vmatpush1.msra.mxu0 %v266
    %583 = vmatprep.subr.mxu0 %v271
    %584 = vmatpush1.msra.mxu0 %v270
    %585 = vmatprep.subr.mxu0 %v275
    %586 = vmatpush1.msra.mxu0 %v274
    %587 = vmatprep.subr.mxu0 %v279
    %588 = vmatpush1.msra.mxu0 %v278
    %589 = vmatprep.subr.mxu0 %v283
    %590 = vmatpush1.msra.mxu0 %v282
    %591 = vmatprep.subr.mxu0 %v287
    %592 = vmatpush1.msra.mxu0 %v286
    %593 = vmatprep.subr.mxu0 %v291
    %594 = vmatpush1.msra.mxu0 %v290
    %595 = vmatprep.subr.mxu0 %v295
    %596 = vmatpush1.msra.mxu0 %v294
    %597 = vmatprep.subr.mxu0 %v299
    %598 = vmatpush1.msra.mxu0 %v298
    %599 = vmatprep.subr.mxu0 %v303
    %600 = vmatpush1.msra.mxu0 %v302
    %601 = vmatprep.subr.mxu0 %v307
    %602 = vmatpush1.msra.mxu0 %v306
    %603 = vmatprep.subr.mxu0 %v311
    %604 = vmatpush1.msra.mxu0 %v310
    %605 = vmatprep.subr.mxu0 %v315
    %606 = vmatpush1.msra.mxu0 %v314
    %607 = vmatprep.subr.mxu0 %v319
    %608 = vmatpush1.msra.mxu0 %v318
    %609 = vmatprep.subr.mxu0 0.0
    %610 = vmatpush1.msra.mxu0 0.0
    %611 = vmatprep.subr.mxu0 0.0
    %612 = vmatpush1.msra.mxu0 0.0
    %613 = vmatprep.subr.mxu0 0.0
    %614 = vmatpush1.msra.mxu0 0.0
    %615 = vmatprep.subr.mxu0 0.0
    %616 = vmatpush1.msra.mxu0 0.0
    %617 = vmatprep.subr.mxu0 0.0
    %618 = vmatpush1.msra.mxu0 0.0
    %619 = vmatprep.subr.mxu0 0.0
    %620 = vmatpush1.msra.mxu0 0.0
    %621 = vmatprep.subr.mxu0 0.0
    %622 = vmatpush1.msra.mxu0 0.0
    %623 = vmatprep.subr.mxu0 0.0
    %624 = vmatpush1.msra.mxu0 0.0
    %625 = vmatprep.subr.mxu0 0.0
    %626 = vmatpush1.msra.mxu0 0.0
    %627 = vmatprep.subr.mxu0 0.0
    %628 = vmatpush1.msra.mxu0 0.0
    %629 = vmatprep.subr.mxu0 0.0
    %630 = vmatpush1.msra.mxu0 0.0
    %631 = vmatprep.subr.mxu0 0.0
    %632 = vmatpush1.msra.mxu0 0.0
    %633 = vmatprep.subr.mxu0 0.0
    %634 = vmatpush1.msra.mxu0 0.0
    %635 = vmatprep.subr.mxu0 0.0
    %636 = vmatpush1.msra.mxu0 0.0
    %637 = vmatprep.subr.mxu0 0.0
    %638 = vmatpush1.msra.mxu0 0.0
    %639 = vmatprep.subr.mxu0 0.0
    %640 = vmatpush1.msra.mxu0 0.0
    %641 = vmatprep.mubr.f32.mxu0 0.0
    %642 = vmatmul.mubr.f32.gmra.mrb[0].mxu0 %v575
    %v643 = vpop.f32.mrb[0].mxu0
    %v644 = vadd.f32 0.0, %v643
    %v645 = vpop.f32.mrb[0].mxu0
    %v646 = vadd.f32 0.0, %v645
    %647 = vdwg.mxu0
    %648 = vmatprep.subr.mxu0 %v261
    %649 = vmatpush1.msra.mxu0 %v260
    %650 = vmatprep.subr.mxu0 %v265
    %651 = vmatpush1.msra.mxu0 %v264
    %652 = vmatprep.subr.mxu0 %v269
    %653 = vmatpush1.msra.mxu0 %v268
    %654 = vmatprep.subr.mxu0 %v273
    %655 = vmatpush1.msra.mxu0 %v272
    %656 = vmatprep.subr.mxu0 %v277
    %657 = vmatpush1.msra.mxu0 %v276
    %658 = vmatprep.subr.mxu0 %v281
    %659 = vmatpush1.msra.mxu0 %v280
    %660 = vmatprep.subr.mxu0 %v285
    %661 = vmatpush1.msra.mxu0 %v284
    %662 = vmatprep.subr.mxu0 %v289
    %663 = vmatpush1.msra.mxu0 %v288
    %664 = vmatprep.subr.mxu0 %v293
    %665 = vmatpush1.msra.mxu0 %v292
    %666 = vmatprep.subr.mxu0 %v297
    %667 = vmatpush1.msra.mxu0 %v296
    %668 = vmatprep.subr.mxu0 %v301
    %669 = vmatpush1.msra.mxu0 %v300
    %670 = vmatprep.subr.mxu0 %v305
    %671 = vmatpush1.msra.mxu0 %v304
    %672 = vmatprep.subr.mxu0 %v309
    %673 = vmatpush1.msra.mxu0 %v308
    %674 = vmatprep.subr.mxu0 %v313
    %675 = vmatpush1.msra.mxu0 %v312
    %676 = vmatprep.subr.mxu0 %v317
    %677 = vmatpush1.msra.mxu0 %v316
    %678 = vmatprep.subr.mxu0 %v321
    %679 = vmatpush1.msra.mxu0 %v320
    %680 = vmatprep.subr.mxu0 0.0
    %681 = vmatpush1.msra.mxu0 0.0
    %682 = vmatprep.subr.mxu0 0.0
    %683 = vmatpush1.msra.mxu0 0.0
    %684 = vmatprep.subr.mxu0 0.0
    %685 = vmatpush1.msra.mxu0 0.0
    %686 = vmatprep.subr.mxu0 0.0
    %687 = vmatpush1.msra.mxu0 0.0
    %688 = vmatprep.subr.mxu0 0.0
    %689 = vmatpush1.msra.mxu0 0.0
    %690 = vmatprep.subr.mxu0 0.0
    %691 = vmatpush1.msra.mxu0 0.0
    %692 = vmatprep.subr.mxu0 0.0
    %693 = vmatpush1.msra.mxu0 0.0
    %694 = vmatprep.subr.mxu0 0.0
    %695 = vmatpush1.msra.mxu0 0.0
    %696 = vmatprep.subr.mxu0 0.0
    %697 = vmatpush1.msra.mxu0 0.0
    %698 = vmatprep.subr.mxu0 0.0
    %699 = vmatpush1.msra.mxu0 0.0
    %700 = vmatprep.subr.mxu0 0.0
    %701 = vmatpush1.msra.mxu0 0.0
    %702 = vmatprep.subr.mxu0 0.0
    %703 = vmatpush1.msra.mxu0 0.0
    %704 = vmatprep.subr.mxu0 0.0
    %705 = vmatpush1.msra.mxu0 0.0
    %706 = vmatprep.subr.mxu0 0.0
    %707 = vmatpush1.msra.mxu0 0.0
    %708 = vmatprep.subr.mxu0 0.0
    %709 = vmatpush1.msra.mxu0 0.0
    %710 = vmatprep.subr.mxu0 0.0
    %711 = vmatpush1.msra.mxu0 0.0
    %712 = vmatprep.mubr.f32.mxu0 0.0
    %713 = vmatmul.mubr.f32.gmra.mrb[0].mxu0 %v575
    %v714 = vpop.f32.mrb[0].mxu0
    %v715 = vadd.f32 0.0, %v714
    %v716 = vpop.f32.mrb[0].mxu0
    %v717 = vadd.f32 0.0, %v716
    %718 = vdwg.mxu0
    %v719 = vadd.f32 %v715, %v497
    %v720 = vadd.f32 %v717, %v501
    %v721 = vxor.u32 %v719, 2147483648
    %v722 = vmul.f32 %v721, 1.442695
    %v723 = vpow.pop %v722
    %v724 = vadd.f32 %v723, 1.0
    %v725 = vrcp.pop %v724
    %v726 = vmul.f32 1.0, %v725
    %v727 = vtanh.pop %v720
    %v728 = vxor.u32 %v720, 2147483648
    %v729 = vmul.f32 %v728, 1.442695
    %v730 = vpow.pop %v729
    %v731 = vadd.f32 %v730, 1.0
    %v732 = vrcp.pop %v731
    %v733 = vmul.f32 1.0, %v732
    %v734 = vmul.f32 %v726, %v525
    %v735 = vmul.f32 %v726, %v727
    %737 = vrot.lane.b32.xlu0 %v735, 64
    %v738 = vpop.permute.xlu0 %737
    %v740 = vadd.f32 %v734, %v738
    %v741 = vtanh.pop %v740
    %v742 = vmul.f32 %v733, %v741
    %744 = vrot.lane.b32.xlu0 %v742, 64
    %v745 = vpop.permute.xlu0 %744
    %747 = vst.msk [vmem:[#allocation2 + $0x2] sm:$0x3] %vm532, %v745
    %v750 = vrot.slane %v644, 4
    %v751 = vrot.slane %v646, 4
    %v754 = vadd.f32 %v248, %v750
    %v755 = vadd.f32 %v250, %v751
    %v756 = vxor.u32 %v754, 2147483648
    %v757 = vmul.f32 %v756, 1.442695
    %v758 = vpow.pop %v757
    %v759 = vadd.f32 %v758, 1.0
    %v760 = vrcp.pop %v759
    %v761 = vmul.f32 1.0, %v760
    %v762 = vtanh.pop %v755
    %v763 = vxor.u32 %v755, 2147483648
    %v764 = vmul.f32 %v763, 1.442695
    %v765 = vpow.pop %v764
    %v766 = vadd.f32 %v765, 1.0
    %v767 = vrcp.pop %v766
    %v768 = vmul.f32 1.0, %v767
    %v770 = vrot.slane %v564, 6
    %v772 = vmul.f32 %v761, %v770
    %v773 = vmul.f32 %v761, %v762
    %775 = vrot.lane.b32.xlu0 %v773, 64
    %v776 = vpop.permute.xlu0 %775
    %v778 = vadd.f32 %v772, %v776
    %v779 = vtanh.pop %v778
    %v780 = vmul.f32 %v768, %v779
    %782 = vrot.lane.b32.xlu0 %v780, 64
    %v783 = vpop.permute.xlu0 %782
    %v785 = vrot.slane %v742, 4
    %v787 = vsel %vm349, %v783, %v785
    %v789 = vrot.slane %v787, 4
    %791 = vmatprep.subr.mxu0 %v259
    %792 = vmatpush1.msra.mxu0 %v258
    %793 = vmatprep.subr.mxu0 %v263
    %794 = vmatpush1.msra.mxu0 %v262
    %795 = vmatprep.subr.mxu0 %v267
    %796 = vmatpush1.msra.mxu0 %v266
    %797 = vmatprep.subr.mxu0 %v271
    %798 = vmatpush1.msra.mxu0 %v270
    %799 = vmatprep.subr.mxu0 %v275
    %800 = vmatpush1.msra.mxu0 %v274
    %801 = vmatprep.subr.mxu0 %v279
    %802 = vmatpush1.msra.mxu0 %v278
    %803 = vmatprep.subr.mxu0 %v283
    %804 = vmatpush1.msra.mxu0 %v282
    %805 = vmatprep.subr.mxu0 %v287
    %806 = vmatpush1.msra.mxu0 %v286
    %807 = vmatprep.subr.mxu0 %v291
    %808 = vmatpush1.msra.mxu0 %v290
    %809 = vmatprep.subr.mxu0 %v295
    %810 = vmatpush1.msra.mxu0 %v294
    %811 = vmatprep.subr.mxu0 %v299
    %812 = vmatpush1.msra.mxu0 %v298
    %813 = vmatprep.subr.mxu0 %v303
    %814 = vmatpush1.msra.mxu0 %v302
    %815 = vmatprep.subr.mxu0 %v307
    %816 = vmatpush1.msra.mxu0 %v306
    %817 = vmatprep.subr.mxu0 %v311
    %818 = vmatpush1.msra.mxu0 %v310
    %819 = vmatprep.subr.mxu0 %v315
    %820 = vmatpush1.msra.mxu0 %v314
    %821 = vmatprep.subr.mxu0 %v319
    %822 = vmatpush1.msra.mxu0 %v318
    %823 = vmatprep.subr.mxu0 0.0
    %824 = vmatpush1.msra.mxu0 0.0
    %825 = vmatprep.subr.mxu0 0.0
    %826 = vmatpush1.msra.mxu0 0.0
    %827 = vmatprep.subr.mxu0 0.0
    %828 = vmatpush1.msra.mxu0 0.0
    %829 = vmatprep.subr.mxu0 0.0
    %830 = vmatpush1.msra.mxu0 0.0
    %831 = vmatprep.subr.mxu0 0.0
    %832 = vmatpush1.msra.mxu0 0.0
    %833 = vmatprep.subr.mxu0 0.0
    %834 = vmatpush1.msra.mxu0 0.0
    %835 = vmatprep.subr.mxu0 0.0
    %836 = vmatpush1.msra.mxu0 0.0
    %837 = vmatprep.subr.mxu0 0.0
    %838 = vmatpush1.msra.mxu0 0.0
    %839 = vmatprep.subr.mxu0 0.0
    %840 = vmatpush1.msra.mxu0 0.0
    %841 = vmatprep.subr.mxu0 0.0
    %842 = vmatpush1.msra.mxu0 0.0
    %843 = vmatprep.subr.mxu0 0.0
    %844 = vmatpush1.msra.mxu0 0.0
    %845 = vmatprep.subr.mxu0 0.0
    %846 = vmatpush1.msra.mxu0 0.0
    %847 = vmatprep.subr.mxu0 0.0
    %848 = vmatpush1.msra.mxu0 0.0
    %849 = vmatprep.subr.mxu0 0.0
    %850 = vmatpush1.msra.mxu0 0.0
    %851 = vmatprep.subr.mxu0 0.0
    %852 = vmatpush1.msra.mxu0 0.0
    %853 = vmatprep.subr.mxu0 0.0
    %854 = vmatpush1.msra.mxu0 0.0
    %855 = vmatprep.mubr.f32.mxu0 0.0
    %856 = vmatmul.mubr.f32.gmra.mrb[0].mxu0 %v789
    %v857 = vpop.f32.mrb[0].mxu0
    %v858 = vadd.f32 0.0, %v857
    %v859 = vpop.f32.mrb[0].mxu0
    %v860 = vadd.f32 0.0, %v859
    %861 = vdwg.mxu0
    %862 = vmatprep.subr.mxu0 %v261
    %863 = vmatpush1.msra.mxu0 %v260
    %864 = vmatprep.subr.mxu0 %v265
    %865 = vmatpush1.msra.mxu0 %v264
    %866 = vmatprep.subr.mxu0 %v269
    %867 = vmatpush1.msra.mxu0 %v268
    %868 = vmatprep.subr.mxu0 %v273
    %869 = vmatpush1.msra.mxu0 %v272
    %870 = vmatprep.subr.mxu0 %v277
    %871 = vmatpush1.msra.mxu0 %v276
    %872 = vmatprep.subr.mxu0 %v281
    %873 = vmatpush1.msra.mxu0 %v280
    %874 = vmatprep.subr.mxu0 %v285
    %875 = vmatpush1.msra.mxu0 %v284
    %876 = vmatprep.subr.mxu0 %v289
    %877 = vmatpush1.msra.mxu0 %v288
    %878 = vmatprep.subr.mxu0 %v293
    %879 = vmatpush1.msra.mxu0 %v292
    %880 = vmatprep.subr.mxu0 %v297
    %881 = vmatpush1.msra.mxu0 %v296
    %882 = vmatprep.subr.mxu0 %v301
    %883 = vmatpush1.msra.mxu0 %v300
    %884 = vmatprep.subr.mxu0 %v305
    %885 = vmatpush1.msra.mxu0 %v304
    %886 = vmatprep.subr.mxu0 %v309
    %887 = vmatpush1.msra.mxu0 %v308
    %888 = vmatprep.subr.mxu0 %v313
    %889 = vmatpush1.msra.mxu0 %v312
    %890 = vmatprep.subr.mxu0 %v317
    %891 = vmatpush1.msra.mxu0 %v316
    %892 = vmatprep.subr.mxu0 %v321
    %893 = vmatpush1.msra.mxu0 %v320
    %894 = vmatprep.subr.mxu0 0.0
    %895 = vmatpush1.msra.mxu0 0.0
    %896 = vmatprep.subr.mxu0 0.0
    %897 = vmatpush1.msra.mxu0 0.0
    %898 = vmatprep.subr.mxu0 0.0
    %899 = vmatpush1.msra.mxu0 0.0
    %900 = vmatprep.subr.mxu0 0.0
    %901 = vmatpush1.msra.mxu0 0.0
    %902 = vmatprep.subr.mxu0 0.0
    %903 = vmatpush1.msra.mxu0 0.0
    %904 = vmatprep.subr.mxu0 0.0
    %905 = vmatpush1.msra.mxu0 0.0
    %906 = vmatprep.subr.mxu0 0.0
    %907 = vmatpush1.msra.mxu0 0.0
    %908 = vmatprep.subr.mxu0 0.0
    %909 = vmatpush1.msra.mxu0 0.0
    %910 = vmatprep.subr.mxu0 0.0
    %911 = vmatpush1.msra.mxu0 0.0
    %912 = vmatprep.subr.mxu0 0.0
    %913 = vmatpush1.msra.mxu0 0.0
    %914 = vmatprep.subr.mxu0 0.0
    %915 = vmatpush1.msra.mxu0 0.0
    %916 = vmatprep.subr.mxu0 0.0
    %917 = vmatpush1.msra.mxu0 0.0
    %918 = vmatprep.subr.mxu0 0.0
    %919 = vmatpush1.msra.mxu0 0.0
    %920 = vmatprep.subr.mxu0 0.0
    %921 = vmatpush1.msra.mxu0 0.0
    %922 = vmatprep.subr.mxu0 0.0
    %923 = vmatpush1.msra.mxu0 0.0
    %924 = vmatprep.subr.mxu0 0.0
    %925 = vmatpush1.msra.mxu0 0.0
    %926 = vmatprep.mubr.f32.mxu0 0.0
    %927 = vmatmul.mubr.f32.gmra.mrb[0].mxu0 %v789
    %v928 = vpop.f32.mrb[0].mxu0
    %v929 = vadd.f32 0.0, %v928
    %v930 = vpop.f32.mrb[0].mxu0
    %v931 = vadd.f32 0.0, %v930
    %932 = vdwg.mxu0
    %v933 = vadd.f32 %v929, %v497
    %v934 = vadd.f32 %v931, %v501
    %v935 = vxor.u32 %v933, 2147483648
    %v936 = vmul.f32 %v935, 1.442695
    %v937 = vpow.pop %v936
    %v938 = vadd.f32 %v937, 1.0
    %v939 = vrcp.pop %v938
    %v940 = vmul.f32 1.0, %v939
    %v941 = vtanh.pop %v934
    %v942 = vxor.u32 %v934, 2147483648
    %v943 = vmul.f32 %v942, 1.442695
    %v944 = vpow.pop %v943
    %v945 = vadd.f32 %v944, 1.0
    %v946 = vrcp.pop %v945
    %v947 = vmul.f32 1.0, %v946
    %v948 = vmul.f32 %v940, %v740
    %v949 = vmul.f32 %v940, %v941
    %951 = vrot.lane.b32.xlu0 %v949, 64
    %v952 = vpop.permute.xlu0 %951
    %v954 = vadd.f32 %v948, %v952
    %v955 = vtanh.pop %v954
    %v956 = vmul.f32 %v947, %v955
    %958 = vrot.lane.b32.xlu0 %v956, 64
    %v959 = vpop.permute.xlu0 %958
    %961 = vst.msk [vmem:[#allocation2 + $0x4] sm:$0x3] %vm532, %v959
    %v964 = vrot.slane %v858, 2
    %v965 = vrot.slane %v860, 2
    %v968 = vadd.f32 %v248, %v964
    %v969 = vadd.f32 %v250, %v965
    %v970 = vxor.u32 %v968, 2147483648
    %v971 = vmul.f32 %v970, 1.442695
    %v972 = vpow.pop %v971
    %v973 = vadd.f32 %v972, 1.0
    %v974 = vrcp.pop %v973
    %v975 = vmul.f32 1.0, %v974
    %v976 = vtanh.pop %v969
    %v977 = vxor.u32 %v969, 2147483648
    %v978 = vmul.f32 %v977, 1.442695
    %v979 = vpow.pop %v978
    %v980 = vadd.f32 %v979, 1.0
    %v981 = vrcp.pop %v980
    %v982 = vmul.f32 1.0, %v981
    %v984 = vrot.slane %v778, 6
    %v986 = vmul.f32 %v975, %v984
    %v987 = vmul.f32 %v975, %v976
    %989 = vrot.lane.b32.xlu0 %v987, 64
    %v990 = vpop.permute.xlu0 %989
    %v992 = vadd.f32 %v986, %v990
    %v993 = vtanh.pop %v992
    %v994 = vmul.f32 %v982, %v993
    %996 = vrot.lane.b32.xlu0 %v994, 64
    %v997 = vpop.permute.xlu0 %996
    %v999 = vrot.slane %v956, 2
    %v1001 = vsel %vm349, %v997, %v999
    %v1003 = vrot.slane %v1001, 6
    %1005 = vmatprep.subr.mxu0 %v259
    %1006 = vmatpush1.msra.mxu0 %v258
    %1007 = vmatprep.subr.mxu0 %v263
    %1008 = vmatpush1.msra.mxu0 %v262
    %1009 = vmatprep.subr.mxu0 %v267
    %1010 = vmatpush1.msra.mxu0 %v266
    %1011 = vmatprep.subr.mxu0 %v271
    %1012 = vmatpush1.msra.mxu0 %v270
    %1013 = vmatprep.subr.mxu0 %v275
    %1014 = vmatpush1.msra.mxu0 %v274
    %1015 = vmatprep.subr.mxu0 %v279
    %1016 = vmatpush1.msra.mxu0 %v278
    %1017 = vmatprep.subr.mxu0 %v283
    %1018 = vmatpush1.msra.mxu0 %v282
    %1019 = vmatprep.subr.mxu0 %v287
    %1020 = vmatpush1.msra.mxu0 %v286
    %1021 = vmatprep.subr.mxu0 %v291
    %1022 = vmatpush1.msra.mxu0 %v290
    %1023 = vmatprep.subr.mxu0 %v295
    %1024 = vmatpush1.msra.mxu0 %v294
    %1025 = vmatprep.subr.mxu0 %v299
    %1026 = vmatpush1.msra.mxu0 %v298
    %1027 = vmatprep.subr.mxu0 %v303
    %1028 = vmatpush1.msra.mxu0 %v302
    %1029 = vmatprep.subr.mxu0 %v307
    %1030 = vmatpush1.msra.mxu0 %v306
    %1031 = vmatprep.subr.mxu0 %v311
    %1032 = vmatpush1.msra.mxu0 %v310
    %1033 = vmatprep.subr.mxu0 %v315
    %1034 = vmatpush1.msra.mxu0 %v314
    %1035 = vmatprep.subr.mxu0 %v319
    %1036 = vmatpush1.msra.mxu0 %v318
    %1037 = vmatprep.subr.mxu0 0.0
    %1038 = vmatpush1.msra.mxu0 0.0
    %1039 = vmatprep.subr.mxu0 0.0
    %1040 = vmatpush1.msra.mxu0 0.0
    %1041 = vmatprep.subr.mxu0 0.0
    %1042 = vmatpush1.msra.mxu0 0.0
    %1043 = vmatprep.subr.mxu0 0.0
    %1044 = vmatpush1.msra.mxu0 0.0
    %1045 = vmatprep.subr.mxu0 0.0
    %1046 = vmatpush1.msra.mxu0 0.0
    %1047 = vmatprep.subr.mxu0 0.0
    %1048 = vmatpush1.msra.mxu0 0.0
    %1049 = vmatprep.subr.mxu0 0.0
    %1050 = vmatpush1.msra.mxu0 0.0
    %1051 = vmatprep.subr.mxu0 0.0
    %1052 = vmatpush1.msra.mxu0 0.0
    %1053 = vmatprep.subr.mxu0 0.0
    %1054 = vmatpush1.msra.mxu0 0.0
    %1055 = vmatprep.subr.mxu0 0.0
    %1056 = vmatpush1.msra.mxu0 0.0
    %1057 = vmatprep.subr.mxu0 0.0
    %1058 = vmatpush1.msra.mxu0 0.0
    %1059 = vmatprep.subr.mxu0 0.0
    %1060 = vmatpush1.msra.mxu0 0.0
    %1061 = vmatprep.subr.mxu0 0.0
    %1062 = vmatpush1.msra.mxu0 0.0
    %1063 = vmatprep.subr.mxu0 0.0
    %1064 = vmatpush1.msra.mxu0 0.0
    %1065 = vmatprep.subr.mxu0 0.0
    %1066 = vmatpush1.msra.mxu0 0.0
    %1067 = vmatprep.subr.mxu0 0.0
    %1068 = vmatpush1.msra.mxu0 0.0
    %1069 = vmatprep.mubr.f32.mxu0 0.0
    %1070 = vmatmul.mubr.f32.gmra.mrb[0].mxu0 %v1003
    %v1071 = vpop.f32.mrb[0].mxu0
    %v1072 = vadd.f32 0.0, %v1071
    %v1073 = vpop.f32.mrb[0].mxu0
    %v1074 = vadd.f32 0.0, %v1073
    %1075 = vdwg.mxu0
    %1076 = vmatprep.subr.mxu0 %v261
    %1077 = vmatpush1.msra.mxu0 %v260
    %1078 = vmatprep.subr.mxu0 %v265
    %1079 = vmatpush1.msra.mxu0 %v264
    %1080 = vmatprep.subr.mxu0 %v269
    %1081 = vmatpush1.msra.mxu0 %v268
    %1082 = vmatprep.subr.mxu0 %v273
    %1083 = vmatpush1.msra.mxu0 %v272
    %1084 = vmatprep.subr.mxu0 %v277
    %1085 = vmatpush1.msra.mxu0 %v276
    %1086 = vmatprep.subr.mxu0 %v281
    %1087 = vmatpush1.msra.mxu0 %v280
    %1088 = vmatprep.subr.mxu0 %v285
    %1089 = vmatpush1.msra.mxu0 %v284
    %1090 = vmatprep.subr.mxu0 %v289
    %1091 = vmatpush1.msra.mxu0 %v288
    %1092 = vmatprep.subr.mxu0 %v293
    %1093 = vmatpush1.msra.mxu0 %v292
    %1094 = vmatprep.subr.mxu0 %v297
    %1095 = vmatpush1.msra.mxu0 %v296
    %1096 = vmatprep.subr.mxu0 %v301
    %1097 = vmatpush1.msra.mxu0 %v300
    %1098 = vmatprep.subr.mxu0 %v305
    %1099 = vmatpush1.msra.mxu0 %v304
    %1100 = vmatprep.subr.mxu0 %v309
    %1101 = vmatpush1.msra.mxu0 %v308
    %1102 = vmatprep.subr.mxu0 %v313
    %1103 = vmatpush1.msra.mxu0 %v312
    %1104 = vmatprep.subr.mxu0 %v317
    %1105 = vmatpush1.msra.mxu0 %v316
    %1106 = vmatprep.subr.mxu0 %v321
    %1107 = vmatpush1.msra.mxu0 %v320
    %1108 = vmatprep.subr.mxu0 0.0
    %1109 = vmatpush1.msra.mxu0 0.0
    %1110 = vmatprep.subr.mxu0 0.0
    %1111 = vmatpush1.msra.mxu0 0.0
    %1112 = vmatprep.subr.mxu0 0.0
    %1113 = vmatpush1.msra.mxu0 0.0
    %1114 = vmatprep.subr.mxu0 0.0
    %1115 = vmatpush1.msra.mxu0 0.0
    %1116 = vmatprep.subr.mxu0 0.0
    %1117 = vmatpush1.msra.mxu0 0.0
    %1118 = vmatprep.subr.mxu0 0.0
    %1119 = vmatpush1.msra.mxu0 0.0
    %1120 = vmatprep.subr.mxu0 0.0
    %1121 = vmatpush1.msra.mxu0 0.0
    %1122 = vmatprep.subr.mxu0 0.0
    %1123 = vmatpush1.msra.mxu0 0.0
    %1124 = vmatprep.subr.mxu0 0.0
    %1125 = vmatpush1.msra.mxu0 0.0
    %1126 = vmatprep.subr.mxu0 0.0
    %1127 = vmatpush1.msra.mxu0 0.0
    %1128 = vmatprep.subr.mxu0 0.0
    %1129 = vmatpush1.msra.mxu0 0.0
    %1130 = vmatprep.subr.mxu0 0.0
    %1131 = vmatpush1.msra.mxu0 0.0
    %1132 = vmatprep.subr.mxu0 0.0
    %1133 = vmatpush1.msra.mxu0 0.0
    %1134 = vmatprep.subr.mxu0 0.0
    %1135 = vmatpush1.msra.mxu0 0.0
    %1136 = vmatprep.subr.mxu0 0.0
    %1137 = vmatpush1.msra.mxu0 0.0
    %1138 = vmatprep.subr.mxu0 0.0
    %1139 = vmatpush1.msra.mxu0 0.0
    %1140 = vmatprep.mubr.f32.mxu0 0.0
    %1141 = vmatmul.mubr.f32.gmra.mrb[0].mxu0 %v1003
    %v1142 = vpop.f32.mrb[0].mxu0
    %v1143 = vadd.f32 0.0, %v1142
    %v1144 = vpop.f32.mrb[0].mxu0
    %v1145 = vadd.f32 0.0, %v1144
    %1146 = vdwg.mxu0
    %v1147 = vadd.f32 %v1143, %v497
    %v1148 = vadd.f32 %v1145, %v501
    %v1149 = vxor.u32 %v1147, 2147483648
    %v1150 = vmul.f32 %v1149, 1.442695
    %v1151 = vpow.pop %v1150
    %v1152 = vadd.f32 %v1151, 1.0
    %v1153 = vrcp.pop %v1152
    %v1154 = vmul.f32 1.0, %v1153
    %v1155 = vtanh.pop %v1148
    %v1156 = vxor.u32 %v1148, 2147483648
    %v1157 = vmul.f32 %v1156, 1.442695
    %v1158 = vpow.pop %v1157
    %v1159 = vadd.f32 %v1158, 1.0
    %v1160 = vrcp.pop %v1159
    %v1161 = vmul.f32 1.0, %v1160
    %v1162 = vmul.f32 %v1154, %v954
    %v1163 = vmul.f32 %v1154, %v1155
    %1165 = vrot.lane.b32.xlu0 %v1163, 64
    %v1166 = vpop.permute.xlu0 %1165
    %v1168 = vadd.f32 %v1162, %v1166
    %v1169 = vtanh.pop %v1168
    %v1170 = vmul.f32 %v1161, %v1169
    %1172 = vrot.lane.b32.xlu0 %v1170, 64
    %v1173 = vpop.permute.xlu0 %1172
    %1175 = vst.msk [vmem:[#allocation2 + $0x6] sm:$0x3] %vm532, %v1173
    %v1176 = vadd.f32 %v254, %v1072
    %v1177 = vadd.f32 %v256, %v1074
    %v1178 = vxor.u32 %v1176, 2147483648
    %v1179 = vmul.f32 %v1178, 1.442695
    %v1180 = vpow.pop %v1179
    %v1181 = vadd.f32 %v1180, 1.0
    %v1182 = vrcp.pop %v1181
    %v1183 = vmul.f32 1.0, %v1182
    %v1184 = vtanh.pop %v1177
    %v1185 = vxor.u32 %v1177, 2147483648
    %v1186 = vmul.f32 %v1185, 1.442695
    %v1187 = vpow.pop %v1186
    %v1188 = vadd.f32 %v1187, 1.0
    %v1189 = vrcp.pop %v1188
    %v1190 = vmul.f32 1.0, %v1189
    %v1192 = vrot.slane %v992, 6
    %v1194 = vmul.f32 %v1183, %v1192
    %v1195 = vmul.f32 %v1183, %v1184
    %1197 = vrot.lane.b32.xlu0 %v1195, 64
    %v1198 = vpop.permute.xlu0 %1197
    %v1200 = vadd.f32 %v1194, %v1198
    %v1201 = vtanh.pop %v1200
    %v1202 = vmul.f32 %v1190, %v1201
    %1204 = vrot.lane.b32.xlu0 %v1202, 64
    %v1205 = vpop.permute.xlu0 %1204
    %v1207 = vsel %vm349, %v1205, %v1170
    %1208 = vmatprep.subr.mxu0 %v259
    %1209 = vmatpush1.msra.mxu0 %v258
    %1210 = vmatprep.subr.mxu0 %v263
    %1211 = vmatpush1.msra.mxu0 %v262
    %1212 = vmatprep.subr.mxu0 %v267
    %1213 = vmatpush1.msra.mxu0 %v266
    %1214 = vmatprep.subr.mxu0 %v271
    %1215 = vmatpush1.msra.mxu0 %v270
    %1216 = vmatprep.subr.mxu0 %v275
    %1217 = vmatpush1.msra.mxu0 %v274
    %1218 = vmatprep.subr.mxu0 %v279
    %1219 = vmatpush1.msra.mxu0 %v278
    %1220 = vmatprep.subr.mxu0 %v283
    %1221 = vmatpush1.msra.mxu0 %v282
    %1222 = vmatprep.subr.mxu0 %v287
    %1223 = vmatpush1.msra.mxu0 %v286
    %1224 = vmatprep.subr.mxu0 %v291
    %1225 = vmatpush1.msra.mxu0 %v290
    %1226 = vmatprep.subr.mxu0 %v295
    %1227 = vmatpush1.msra.mxu0 %v294
    %1228 = vmatprep.subr.mxu0 %v299
    %1229 = vmatpush1.msra.mxu0 %v298
    %1230 = vmatprep.subr.mxu0 %v303
    %1231 = vmatpush1.msra.mxu0 %v302
    %1232 = vmatprep.subr.mxu0 %v307
    %1233 = vmatpush1.msra.mxu0 %v306
    %1234 = vmatprep.subr.mxu0 %v311
    %1235 = vmatpush1.msra.mxu0 %v310
    %1236 = vmatprep.subr.mxu0 %v315
    %1237 = vmatpush1.msra.mxu0 %v314
    %1238 = vmatprep.subr.mxu0 %v319
    %1239 = vmatpush1.msra.mxu0 %v318
    %1240 = vmatprep.subr.mxu0 0.0
    %1241 = vmatpush1.msra.mxu0 0.0
    %1242 = vmatprep.subr.mxu0 0.0
    %1243 = vmatpush1.msra.mxu0 0.0
    %1244 = vmatprep.subr.mxu0 0.0
    %1245 = vmatpush1.msra.mxu0 0.0
    %1246 = vmatprep.subr.mxu0 0.0
    %1247 = vmatpush1.msra.mxu0 0.0
    %1248 = vmatprep.subr.mxu0 0.0
    %1249 = vmatpush1.msra.mxu0 0.0
    %1250 = vmatprep.subr.mxu0 0.0
    %1251 = vmatpush1.msra.mxu0 0.0
    %1252 = vmatprep.subr.mxu0 0.0
    %1253 = vmatpush1.msra.mxu0 0.0
    %1254 = vmatprep.subr.mxu0 0.0
    %1255 = vmatpush1.msra.mxu0 0.0
    %1256 = vmatprep.subr.mxu0 0.0
    %1257 = vmatpush1.msra.mxu0 0.0
    %1258 = vmatprep.subr.mxu0 0.0
    %1259 = vmatpush1.msra.mxu0 0.0
    %1260 = vmatprep.subr.mxu0 0.0
    %1261 = vmatpush1.msra.mxu0 0.0
    %1262 = vmatprep.subr.mxu0 0.0
    %1263 = vmatpush1.msra.mxu0 0.0
    %1264 = vmatprep.subr.mxu0 0.0
    %1265 = vmatpush1.msra.mxu0 0.0
    %1266 = vmatprep.subr.mxu0 0.0
    %1267 = vmatpush1.msra.mxu0 0.0
    %1268 = vmatprep.subr.mxu0 0.0
    %1269 = vmatpush1.msra.mxu0 0.0
    %1270 = vmatprep.subr.mxu0 0.0
    %1271 = vmatpush1.msra.mxu0 0.0
    %1272 = vmatprep.mubr.f32.mxu0 0.0
    %1273 = vmatmul.mubr.f32.gmra.mrb[0].mxu0 %v1207
    %v1274 = vpop.f32.mrb[0].mxu0
    %v1275 = vadd.f32 0.0, %v1274
    %v1276 = vpop.f32.mrb[0].mxu0
    %v1277 = vadd.f32 0.0, %v1276
    %1278 = vdwg.mxu0
    %1279 = vmatprep.subr.mxu0 %v261
    %1280 = vmatpush1.msra.mxu0 %v260
    %1281 = vmatprep.subr.mxu0 %v265
    %1282 = vmatpush1.msra.mxu0 %v264
    %1283 = vmatprep.subr.mxu0 %v269
    %1284 = vmatpush1.msra.mxu0 %v268
    %1285 = vmatprep.subr.mxu0 %v273
    %1286 = vmatpush1.msra.mxu0 %v272
    %1287 = vmatprep.subr.mxu0 %v277
    %1288 = vmatpush1.msra.mxu0 %v276
    %1289 = vmatprep.subr.mxu0 %v281
    %1290 = vmatpush1.msra.mxu0 %v280
    %1291 = vmatprep.subr.mxu0 %v285
    %1292 = vmatpush1.msra.mxu0 %v284
    %1293 = vmatprep.subr.mxu0 %v289
    %1294 = vmatpush1.msra.mxu0 %v288
    %1295 = vmatprep.subr.mxu0 %v293
    %1296 = vmatpush1.msra.mxu0 %v292
    %1297 = vmatprep.subr.mxu0 %v297
    %1298 = vmatpush1.msra.mxu0 %v296
    %1299 = vmatprep.subr.mxu0 %v301
    %1300 = vmatpush1.msra.mxu0 %v300
    %1301 = vmatprep.subr.mxu0 %v305
    %1302 = vmatpush1.msra.mxu0 %v304
    %1303 = vmatprep.subr.mxu0 %v309
    %1304 = vmatpush1.msra.mxu0 %v308
    %1305 = vmatprep.subr.mxu0 %v313
    %1306 = vmatpush1.msra.mxu0 %v312
    %1307 = vmatprep.subr.mxu0 %v317
    %1308 = vmatpush1.msra.mxu0 %v316
    %1309 = vmatprep.subr.mxu0 %v321
    %1310 = vmatpush1.msra.mxu0 %v320
    %1311 = vmatprep.subr.mxu0 0.0
    %1312 = vmatpush1.msra.mxu0 0.0
    %1313 = vmatprep.subr.mxu0 0.0
    %1314 = vmatpush1.msra.mxu0 0.0
    %1315 = vmatprep.subr.mxu0 0.0
    %1316 = vmatpush1.msra.mxu0 0.0
    %1317 = vmatprep.subr.mxu0 0.0
    %1318 = vmatpush1.msra.mxu0 0.0
    %1319 = vmatprep.subr.mxu0 0.0
    %1320 = vmatpush1.msra.mxu0 0.0
    %1321 = vmatprep.subr.mxu0 0.0
    %1322 = vmatpush1.msra.mxu0 0.0
    %1323 = vmatprep.subr.mxu0 0.0
    %1324 = vmatpush1.msra.mxu0 0.0
    %1325 = vmatprep.subr.mxu0 0.0
    %1326 = vmatpush1.msra.mxu0 0.0
    %1327 = vmatprep.subr.mxu0 0.0
    %1328 = vmatpush1.msra.mxu0 0.0
    %1329 = vmatprep.subr.mxu0 0.0
    %1330 = vmatpush1.msra.mxu0 0.0
    %1331 = vmatprep.subr.mxu0 0.0
    %1332 = vmatpush1.msra.mxu0 0.0
    %1333 = vmatprep.subr.mxu0 0.0
    %1334 = vmatpush1.msra.mxu0 0.0
    %1335 = vmatprep.subr.mxu0 0.0
    %1336 = vmatpush1.msra.mxu0 0.0
    %1337 = vmatprep.subr.mxu0 0.0
    %1338 = vmatpush1.msra.mxu0 0.0
    %1339 = vmatprep.subr.mxu0 0.0
    %1340 = vmatpush1.msra.mxu0 0.0
    %1341 = vmatprep.subr.mxu0 0.0
    %1342 = vmatpush1.msra.mxu0 0.0
    %1343 = vmatprep.mubr.f32.mxu0 0.0
    %1344 = vmatmul.mubr.f32.gmra.mrb[0].mxu0 %v1207
    %v1345 = vpop.f32.mrb[0].mxu0
    %v1346 = vadd.f32 0.0, %v1345
    %v1347 = vpop.f32.mrb[0].mxu0
    %v1348 = vadd.f32 0.0, %v1347
    %1349 = vdwg.mxu0
    %v1350 = vadd.f32 %v1346, %v497
    %v1351 = vadd.f32 %v1348, %v501
    %v1352 = vxor.u32 %v1350, 2147483648
    %v1353 = vmul.f32 %v1352, 1.442695
    %v1354 = vpow.pop %v1353
    %v1355 = vadd.f32 %v1354, 1.0
    %v1356 = vrcp.pop %v1355
    %v1357 = vmul.f32 1.0, %v1356
    %v1358 = vtanh.pop %v1351
    %v1359 = vxor.u32 %v1351, 2147483648
    %v1360 = vmul.f32 %v1359, 1.442695
    %v1361 = vpow.pop %v1360
    %v1362 = vadd.f32 %v1361, 1.0
    %v1363 = vrcp.pop %v1362
    %v1364 = vmul.f32 1.0, %v1363
    %v1365 = vmul.f32 %v1357, %v1168
    %v1366 = vmul.f32 %v1357, %v1358
    %1368 = vrot.lane.b32.xlu0 %v1366, 64
    %v1369 = vpop.permute.xlu0 %1368
    %v1371 = vadd.f32 %v1365, %v1369
    %v1372 = vtanh.pop %v1371
    %v1373 = vmul.f32 %v1364, %v1372
    %1375 = vrot.lane.b32.xlu0 %v1373, 64
    %v1376 = vpop.permute.xlu0 %1375
    %1378 = vst.msk [vmem:[#allocation2 + $0x8] sm:$0x3] %vm532, %v1376
    %v1381 = vrot.slane %v1275, 6
    %v1382 = vrot.slane %v1277, 6
    %v1385 = vadd.f32 %v254, %v1381
    %v1386 = vadd.f32 %v256, %v1382
    %v1387 = vxor.u32 %v1385, 2147483648
    %v1388 = vmul.f32 %v1387, 1.442695
    %v1389 = vpow.pop %v1388
    %v1390 = vadd.f32 %v1389, 1.0
    %v1391 = vrcp.pop %v1390
    %v1392 = vmul.f32 1.0, %v1391
    %v1393 = vtanh.pop %v1386
    %v1394 = vxor.u32 %v1386, 2147483648
    %v1395 = vmul.f32 %v1394, 1.442695
    %v1396 = vpow.pop %v1395
    %v1397 = vadd.f32 %v1396, 1.0
    %v1398 = vrcp.pop %v1397
    %v1399 = vmul.f32 1.0, %v1398
    %v1401 = vrot.slane %v1200, 6
    %v1403 = vmul.f32 %v1392, %v1401
    %v1404 = vmul.f32 %v1392, %v1393
    %1406 = vrot.lane.b32.xlu0 %v1404, 64
    %v1407 = vpop.permute.xlu0 %1406
    %v1409 = vadd.f32 %v1403, %v1407
    %v1410 = vtanh.pop %v1409
    %v1411 = vmul.f32 %v1399, %v1410
    %1413 = vrot.lane.b32.xlu0 %v1411, 64
    %v1414 = vpop.permute.xlu0 %1413
    %v1416 = vrot.slane %v1373, 6
    %v1418 = vsel %vm349, %v1414, %v1416
    %v1420 = vrot.slane %v1418, 2
    %1422 = vmatprep.subr.mxu0 %v259
    %1423 = vmatpush1.msra.mxu0 %v258
    %1424 = vmatprep.subr.mxu0 %v263
    %1425 = vmatpush1.msra.mxu0 %v262
    %1426 = vmatprep.subr.mxu0 %v267
    %1427 = vmatpush1.msra.mxu0 %v266
    %1428 = vmatprep.subr.mxu0 %v271
    %1429 = vmatpush1.msra.mxu0 %v270
    %1430 = vmatprep.subr.mxu0 %v275
    %1431 = vmatpush1.msra.mxu0 %v274
    %1432 = vmatprep.subr.mxu0 %v279
    %1433 = vmatpush1.msra.mxu0 %v278
    %1434 = vmatprep.subr.mxu0 %v283
    %1435 = vmatpush1.msra.mxu0 %v282
    %1436 = vmatprep.subr.mxu0 %v287
    %1437 = vmatpush1.msra.mxu0 %v286
    %1438 = vmatprep.subr.mxu0 %v291
    %1439 = vmatpush1.msra.mxu0 %v290
    %1440 = vmatprep.subr.mxu0 %v295
    %1441 = vmatpush1.msra.mxu0 %v294
    %1442 = vmatprep.subr.mxu0 %v299
    %1443 = vmatpush1.msra.mxu0 %v298
    %1444 = vmatprep.subr.mxu0 %v303
    %1445 = vmatpush1.msra.mxu0 %v302
    %1446 = vmatprep.subr.mxu0 %v307
    %1447 = vmatpush1.msra.mxu0 %v306
    %1448 = vmatprep.subr.mxu0 %v311
    %1449 = vmatpush1.msra.mxu0 %v310
    %1450 = vmatprep.subr.mxu0 %v315
    %1451 = vmatpush1.msra.mxu0 %v314
    %1452 = vmatprep.subr.mxu0 %v319
    %1453 = vmatpush1.msra.mxu0 %v318
    %1454 = vmatprep.subr.mxu0 0.0
    %1455 = vmatpush1.msra.mxu0 0.0
    %1456 = vmatprep.subr.mxu0 0.0
    %1457 = vmatpush1.msra.mxu0 0.0
    %1458 = vmatprep.subr.mxu0 0.0
    %1459 = vmatpush1.msra.mxu0 0.0
    %1460 = vmatprep.subr.mxu0 0.0
    %1461 = vmatpush1.msra.mxu0 0.0
    %1462 = vmatprep.subr.mxu0 0.0
    %1463 = vmatpush1.msra.mxu0 0.0
    %1464 = vmatprep.subr.mxu0 0.0
    %1465 = vmatpush1.msra.mxu0 0.0
    %1466 = vmatprep.subr.mxu0 0.0
    %1467 = vmatpush1.msra.mxu0 0.0
    %1468 = vmatprep.subr.mxu0 0.0
    %1469 = vmatpush1.msra.mxu0 0.0
    %1470 = vmatprep.subr.mxu0 0.0
    %1471 = vmatpush1.msra.mxu0 0.0
    %1472 = vmatprep.subr.mxu0 0.0
    %1473 = vmatpush1.msra.mxu0 0.0
    %1474 = vmatprep.subr.mxu0 0.0
    %1475 = vmatpush1.msra.mxu0 0.0
    %1476 = vmatprep.subr.mxu0 0.0
    %1477 = vmatpush1.msra.mxu0 0.0
    %1478 = vmatprep.subr.mxu0 0.0
    %1479 = vmatpush1.msra.mxu0 0.0
    %1480 = vmatprep.subr.mxu0 0.0
    %1481 = vmatpush1.msra.mxu0 0.0
    %1482 = vmatprep.subr.mxu0 0.0
    %1483 = vmatpush1.msra.mxu0 0.0
    %1484 = vmatprep.subr.mxu0 0.0
    %1485 = vmatpush1.msra.mxu0 0.0
    %1486 = vmatprep.mubr.f32.mxu0 0.0
    %1487 = vmatmul.mubr.f32.gmra.mrb[0].mxu0 %v1420
    %v1488 = vpop.f32.mrb[0].mxu0
    %v1489 = vadd.f32 0.0, %v1488
    %v1490 = vpop.f32.mrb[0].mxu0
    %v1491 = vadd.f32 0.0, %v1490
    %1492 = vdwg.mxu0
    %1493 = vmatprep.subr.mxu0 %v261
    %1494 = vmatpush1.msra.mxu0 %v260
    %1495 = vmatprep.subr.mxu0 %v265
    %1496 = vmatpush1.msra.mxu0 %v264
    %1497 = vmatprep.subr.mxu0 %v269
    %1498 = vmatpush1.msra.mxu0 %v268
    %1499 = vmatprep.subr.mxu0 %v273
    %1500 = vmatpush1.msra.mxu0 %v272
    %1501 = vmatprep.subr.mxu0 %v277
    %1502 = vmatpush1.msra.mxu0 %v276
    %1503 = vmatprep.subr.mxu0 %v281
    %1504 = vmatpush1.msra.mxu0 %v280
    %1505 = vmatprep.subr.mxu0 %v285
    %1506 = vmatpush1.msra.mxu0 %v284
    %1507 = vmatprep.subr.mxu0 %v289
    %1508 = vmatpush1.msra.mxu0 %v288
    %1509 = vmatprep.subr.mxu0 %v293
    %1510 = vmatpush1.msra.mxu0 %v292
    %1511 = vmatprep.subr.mxu0 %v297
    %1512 = vmatpush1.msra.mxu0 %v296
    %1513 = vmatprep.subr.mxu0 %v301
    %1514 = vmatpush1.msra.mxu0 %v300
    %1515 = vmatprep.subr.mxu0 %v305
    %1516 = vmatpush1.msra.mxu0 %v304
    %1517 = vmatprep.subr.mxu0 %v309
    %1518 = vmatpush1.msra.mxu0 %v308
    %1519 = vmatprep.subr.mxu0 %v313
    %1520 = vmatpush1.msra.mxu0 %v312
    %1521 = vmatprep.subr.mxu0 %v317
    %1522 = vmatpush1.msra.mxu0 %v316
    %1523 = vmatprep.subr.mxu0 %v321
    %1524 = vmatpush1.msra.mxu0 %v320
    %1525 = vmatprep.subr.mxu0 0.0
    %1526 = vmatpush1.msra.mxu0 0.0
    %1527 = vmatprep.subr.mxu0 0.0
    %1528 = vmatpush1.msra.mxu0 0.0
    %1529 = vmatprep.subr.mxu0 0.0
    %1530 = vmatpush1.msra.mxu0 0.0
    %1531 = vmatprep.subr.mxu0 0.0
    %1532 = vmatpush1.msra.mxu0 0.0
    %1533 = vmatprep.subr.mxu0 0.0
    %1534 = vmatpush1.msra.mxu0 0.0
    %1535 = vmatprep.subr.mxu0 0.0
    %1536 = vmatpush1.msra.mxu0 0.0
    %1537 = vmatprep.subr.mxu0 0.0
    %1538 = vmatpush1.msra.mxu0 0.0
    %1539 = vmatprep.subr.mxu0 0.0
    %1540 = vmatpush1.msra.mxu0 0.0
    %1541 = vmatprep.subr.mxu0 0.0
    %1542 = vmatpush1.msra.mxu0 0.0
    %1543 = vmatprep.subr.mxu0 0.0
    %1544 = vmatpush1.msra.mxu0 0.0
    %1545 = vmatprep.subr.mxu0 0.0
    %1546 = vmatpush1.msra.mxu0 0.0
    %1547 = vmatprep.subr.mxu0 0.0
    %1548 = vmatpush1.msra.mxu0 0.0
    %1549 = vmatprep.subr.mxu0 0.0
    %1550 = vmatpush1.msra.mxu0 0.0
    %1551 = vmatprep.subr.mxu0 0.0
    %1552 = vmatpush1.msra.mxu0 0.0
    %1553 = vmatprep.subr.mxu0 0.0
    %1554 = vmatpush1.msra.mxu0 0.0
    %1555 = vmatprep.subr.mxu0 0.0
    %1556 = vmatpush1.msra.mxu0 0.0
    %1557 = vmatprep.mubr.f32.mxu0 0.0
    %1558 = vmatmul.mubr.f32.gmra.mrb[0].mxu0 %v1420
    %v1559 = vpop.f32.mrb[0].mxu0
    %v1560 = vadd.f32 0.0, %v1559
    %v1561 = vpop.f32.mrb[0].mxu0
    %v1562 = vadd.f32 0.0, %v1561
    %1563 = vdwg.mxu0
    %v1564 = vadd.f32 %v1560, %v497
    %v1565 = vadd.f32 %v1562, %v501
    %v1566 = vxor.u32 %v1564, 2147483648
    %v1567 = vmul.f32 %v1566, 1.442695
    %v1568 = vpow.pop %v1567
    %v1569 = vadd.f32 %v1568, 1.0
    %v1570 = vrcp.pop %v1569
    %v1571 = vmul.f32 1.0, %v1570
    %v1572 = vtanh.pop %v1565
    %v1573 = vxor.u32 %v1565, 2147483648
    %v1574 = vmul.f32 %v1573, 1.442695
    %v1575 = vpow.pop %v1574
    %v1576 = vadd.f32 %v1575, 1.0
    %v1577 = vrcp.pop %v1576
    %v1578 = vmul.f32 1.0, %v1577
    %v1579 = vmul.f32 %v1571, %v1371
    %v1580 = vmul.f32 %v1571, %v1572
    %1582 = vrot.lane.b32.xlu0 %v1580, 64
    %v1583 = vpop.permute.xlu0 %1582
    %v1585 = vadd.f32 %v1579, %v1583
    %v1586 = vtanh.pop %v1585
    %v1587 = vmul.f32 %v1578, %v1586
    %1589 = vrot.lane.b32.xlu0 %v1587, 64
    %v1590 = vpop.permute.xlu0 %1589
    %1592 = vst.msk [vmem:[#allocation2 + $0xa] sm:$0x3] %vm532, %v1590
    %v1595 = vrot.slane %v1489, 4
    %v1596 = vrot.slane %v1491, 4
    %v1599 = vadd.f32 %v254, %v1595
    %v1600 = vadd.f32 %v256, %v1596
    %v1601 = vxor.u32 %v1599, 2147483648
    %v1602 = vmul.f32 %v1601, 1.442695
    %v1603 = vpow.pop %v1602
    %v1604 = vadd.f32 %v1603, 1.0
    %v1605 = vrcp.pop %v1604
    %v1606 = vmul.f32 1.0, %v1605
    %v1607 = vtanh.pop %v1600
    %v1608 = vxor.u32 %v1600, 2147483648
    %v1609 = vmul.f32 %v1608, 1.442695
    %v1610 = vpow.pop %v1609
    %v1611 = vadd.f32 %v1610, 1.0
    %v1612 = vrcp.pop %v1611
    %v1613 = vmul.f32 1.0, %v1612
    %v1615 = vrot.slane %v1409, 6
    %v1617 = vmul.f32 %v1606, %v1615
    %v1618 = vmul.f32 %v1606, %v1607
    %1620 = vrot.lane.b32.xlu0 %v1618, 64
    %v1621 = vpop.permute.xlu0 %1620
    %v1623 = vadd.f32 %v1617, %v1621
    %v1624 = vtanh.pop %v1623
    %v1625 = vmul.f32 %v1613, %v1624
    %1627 = vrot.lane.b32.xlu0 %v1625, 64
    %v1628 = vpop.permute.xlu0 %1627
    %v1630 = vrot.slane %v1587, 4
    %v1632 = vsel %vm349, %v1628, %v1630
    %v1634 = vrot.slane %v1632, 4
    %1636 = vmatprep.subr.mxu0 %v259
    %1637 = vmatpush1.msra.mxu0 %v258
    %1638 = vmatprep.subr.mxu0 %v263
    %1639 = vmatpush1.msra.mxu0 %v262
    %1640 = vmatprep.subr.mxu0 %v267
    %1641 = vmatpush1.msra.mxu0 %v266
    %1642 = vmatprep.subr.mxu0 %v271
    %1643 = vmatpush1.msra.mxu0 %v270
    %1644 = vmatprep.subr.mxu0 %v275
    %1645 = vmatpush1.msra.mxu0 %v274
    %1646 = vmatprep.subr.mxu0 %v279
    %1647 = vmatpush1.msra.mxu0 %v278
    %1648 = vmatprep.subr.mxu0 %v283
    %1649 = vmatpush1.msra.mxu0 %v282
    %1650 = vmatprep.subr.mxu0 %v287
    %1651 = vmatpush1.msra.mxu0 %v286
    %1652 = vmatprep.subr.mxu0 %v291
    %1653 = vmatpush1.msra.mxu0 %v290
    %1654 = vmatprep.subr.mxu0 %v295
    %1655 = vmatpush1.msra.mxu0 %v294
    %1656 = vmatprep.subr.mxu0 %v299
    %1657 = vmatpush1.msra.mxu0 %v298
    %1658 = vmatprep.subr.mxu0 %v303
    %1659 = vmatpush1.msra.mxu0 %v302
    %1660 = vmatprep.subr.mxu0 %v307
    %1661 = vmatpush1.msra.mxu0 %v306
    %1662 = vmatprep.subr.mxu0 %v311
    %1663 = vmatpush1.msra.mxu0 %v310
    %1664 = vmatprep.subr.mxu0 %v315
    %1665 = vmatpush1.msra.mxu0 %v314
    %1666 = vmatprep.subr.mxu0 %v319
    %1667 = vmatpush1.msra.mxu0 %v318
    %1668 = vmatprep.subr.mxu0 0.0
    %1669 = vmatpush1.msra.mxu0 0.0
    %1670 = vmatprep.subr.mxu0 0.0
    %1671 = vmatpush1.msra.mxu0 0.0
    %1672 = vmatprep.subr.mxu0 0.0
    %1673 = vmatpush1.msra.mxu0 0.0
    %1674 = vmatprep.subr.mxu0 0.0
    %1675 = vmatpush1.msra.mxu0 0.0
    %1676 = vmatprep.subr.mxu0 0.0
    %1677 = vmatpush1.msra.mxu0 0.0
    %1678 = vmatprep.subr.mxu0 0.0
    %1679 = vmatpush1.msra.mxu0 0.0
    %1680 = vmatprep.subr.mxu0 0.0
    %1681 = vmatpush1.msra.mxu0 0.0
    %1682 = vmatprep.subr.mxu0 0.0
    %1683 = vmatpush1.msra.mxu0 0.0
    %1684 = vmatprep.subr.mxu0 0.0
    %1685 = vmatpush1.msra.mxu0 0.0
    %1686 = vmatprep.subr.mxu0 0.0
    %1687 = vmatpush1.msra.mxu0 0.0
    %1688 = vmatprep.subr.mxu0 0.0
    %1689 = vmatpush1.msra.mxu0 0.0
    %1690 = vmatprep.subr.mxu0 0.0
    %1691 = vmatpush1.msra.mxu0 0.0
    %1692 = vmatprep.subr.mxu0 0.0
    %1693 = vmatpush1.msra.mxu0 0.0
    %1694 = vmatprep.subr.mxu0 0.0
    %1695 = vmatpush1.msra.mxu0 0.0
    %1696 = vmatprep.subr.mxu0 0.0
    %1697 = vmatpush1.msra.mxu0 0.0
    %1698 = vmatprep.subr.mxu0 0.0
    %1699 = vmatpush1.msra.mxu0 0.0
    %1700 = vmatprep.mubr.f32.mxu0 0.0
    %1701 = vmatmul.mubr.f32.gmra.mrb[0].mxu0 %v1634
    %v1702 = vpop.f32.mrb[0].mxu0
    %v1703 = vadd.f32 0.0, %v1702
    %v1704 = vpop.f32.mrb[0].mxu0
    %v1705 = vadd.f32 0.0, %v1704
    %1706 = vdwg.mxu0
    %1707 = vmatprep.subr.mxu0 %v261
    %1708 = vmatpush1.msra.mxu0 %v260
    %1709 = vmatprep.subr.mxu0 %v265
    %1710 = vmatpush1.msra.mxu0 %v264
    %1711 = vmatprep.subr.mxu0 %v269
    %1712 = vmatpush1.msra.mxu0 %v268
    %1713 = vmatprep.subr.mxu0 %v273
    %1714 = vmatpush1.msra.mxu0 %v272
    %1715 = vmatprep.subr.mxu0 %v277
    %1716 = vmatpush1.msra.mxu0 %v276
    %1717 = vmatprep.subr.mxu0 %v281
    %1718 = vmatpush1.msra.mxu0 %v280
    %1719 = vmatprep.subr.mxu0 %v285
    %1720 = vmatpush1.msra.mxu0 %v284
    %1721 = vmatprep.subr.mxu0 %v289
    %1722 = vmatpush1.msra.mxu0 %v288
    %1723 = vmatprep.subr.mxu0 %v293
    %1724 = vmatpush1.msra.mxu0 %v292
    %1725 = vmatprep.subr.mxu0 %v297
    %1726 = vmatpush1.msra.mxu0 %v296
    %1727 = vmatprep.subr.mxu0 %v301
    %1728 = vmatpush1.msra.mxu0 %v300
    %1729 = vmatprep.subr.mxu0 %v305
    %1730 = vmatpush1.msra.mxu0 %v304
    %1731 = vmatprep.subr.mxu0 %v309
    %1732 = vmatpush1.msra.mxu0 %v308
    %1733 = vmatprep.subr.mxu0 %v313
    %1734 = vmatpush1.msra.mxu0 %v312
    %1735 = vmatprep.subr.mxu0 %v317
    %1736 = vmatpush1.msra.mxu0 %v316
    %1737 = vmatprep.subr.mxu0 %v321
    %1738 = vmatpush1.msra.mxu0 %v320
    %1739 = vmatprep.subr.mxu0 0.0
    %1740 = vmatpush1.msra.mxu0 0.0
    %1741 = vmatprep.subr.mxu0 0.0
    %1742 = vmatpush1.msra.mxu0 0.0
    %1743 = vmatprep.subr.mxu0 0.0
    %1744 = vmatpush1.msra.mxu0 0.0
    %1745 = vmatprep.subr.mxu0 0.0
    %1746 = vmatpush1.msra.mxu0 0.0
    %1747 = vmatprep.subr.mxu0 0.0
    %1748 = vmatpush1.msra.mxu0 0.0
    %1749 = vmatprep.subr.mxu0 0.0
    %1750 = vmatpush1.msra.mxu0 0.0
    %1751 = vmatprep.subr.mxu0 0.0
    %1752 = vmatpush1.msra.mxu0 0.0
    %1753 = vmatprep.subr.mxu0 0.0
    %1754 = vmatpush1.msra.mxu0 0.0
    %1755 = vmatprep.subr.mxu0 0.0
    %1756 = vmatpush1.msra.mxu0 0.0
    %1757 = vmatprep.subr.mxu0 0.0
    %1758 = vmatpush1.msra.mxu0 0.0
    %1759 = vmatprep.subr.mxu0 0.0
    %1760 = vmatpush1.msra.mxu0 0.0
    %1761 = vmatprep.subr.mxu0 0.0
    %1762 = vmatpush1.msra.mxu0 0.0
    %1763 = vmatprep.subr.mxu0 0.0
    %1764 = vmatpush1.msra.mxu0 0.0
    %1765 = vmatprep.subr.mxu0 0.0
    %1766 = vmatpush1.msra.mxu0 0.0
    %1767 = vmatprep.subr.mxu0 0.0
    %1768 = vmatpush1.msra.mxu0 0.0
    %1769 = vmatprep.subr.mxu0 0.0
    %1770 = vmatpush1.msra.mxu0 0.0
    %1771 = vmatprep.mubr.f32.mxu0 0.0
    %1772 = vmatmul.mubr.f32.gmra.mrb[0].mxu0 %v1634
    %v1773 = vpop.f32.mrb[0].mxu0
    %v1774 = vadd.f32 0.0, %v1773
    %v1775 = vpop.f32.mrb[0].mxu0
    %v1776 = vadd.f32 0.0, %v1775
    %1777 = vdwg.mxu0
    %v1778 = vadd.f32 %v1774, %v497
    %v1779 = vadd.f32 %v1776, %v501
    %v1780 = vxor.u32 %v1778, 2147483648
    %v1781 = vmul.f32 %v1780, 1.442695
    %v1782 = vpow.pop %v1781
    %v1783 = vadd.f32 %v1782, 1.0
    %v1784 = vrcp.pop %v1783
    %v1785 = vmul.f32 1.0, %v1784
    %v1786 = vtanh.pop %v1779
    %v1787 = vxor.u32 %v1779, 2147483648
    %v1788 = vmul.f32 %v1787, 1.442695
    %v1789 = vpow.pop %v1788
    %v1790 = vadd.f32 %v1789, 1.0
    %v1791 = vrcp.pop %v1790
    %v1792 = vmul.f32 1.0, %v1791
    %v1793 = vmul.f32 %v1785, %v1585
    %v1794 = vmul.f32 %v1785, %v1786
    %1796 = vrot.lane.b32.xlu0 %v1794, 64
    %v1797 = vpop.permute.xlu0 %1796
    %v1799 = vadd.f32 %v1793, %v1797
    %v1800 = vtanh.pop %v1799
    %v1801 = vmul.f32 %v1792, %v1800
    %1803 = vrot.lane.b32.xlu0 %v1801, 64
    %v1804 = vpop.permute.xlu0 %1803
    %1806 = vst.msk [vmem:[#allocation2 + $0xc] sm:$0x3] %vm532, %v1804
    %v1809 = vrot.slane %v1703, 2
    %v1810 = vrot.slane %v1705, 2
    %v1813 = vadd.f32 %v254, %v1809
    %v1814 = vadd.f32 %v256, %v1810
    %v1815 = vxor.u32 %v1813, 2147483648
    %v1816 = vmul.f32 %v1815, 1.442695
    %v1817 = vpow.pop %v1816
    %v1818 = vadd.f32 %v1817, 1.0
    %v1819 = vrcp.pop %v1818
    %v1820 = vmul.f32 1.0, %v1819
    %v1821 = vtanh.pop %v1814
    %v1822 = vxor.u32 %v1814, 2147483648
    %v1823 = vmul.f32 %v1822, 1.442695
    %v1824 = vpow.pop %v1823
    %v1825 = vadd.f32 %v1824, 1.0
    %v1826 = vrcp.pop %v1825
    %v1827 = vmul.f32 1.0, %v1826
    %v1829 = vrot.slane %v1623, 6
    %v1831 = vmul.f32 %v1820, %v1829
    %v1832 = vmul.f32 %v1820, %v1821
    %1834 = vrot.lane.b32.xlu0 %v1832, 64
    %v1835 = vpop.permute.xlu0 %1834
    %v1837 = vadd.f32 %v1831, %v1835
    %v1838 = vtanh.pop %v1837
    %v1839 = vmul.f32 %v1827, %v1838
    %1841 = vrot.lane.b32.xlu0 %v1839, 64
    %v1842 = vpop.permute.xlu0 %1841
    %v1844 = vrot.slane %v1801, 2
    %v1846 = vsel %vm349, %v1842, %v1844
    %v1848 = vrot.slane %v1846, 6
    %1850 = vmatprep.subr.mxu0 %v261
    %1851 = vmatpush1.msra.mxu0 %v260
    %1852 = vmatprep.subr.mxu0 %v265
    %1853 = vmatpush1.msra.mxu0 %v264
    %1854 = vmatprep.subr.mxu0 %v269
    %1855 = vmatpush1.msra.mxu0 %v268
    %1856 = vmatprep.subr.mxu0 %v273
    %1857 = vmatpush1.msra.mxu0 %v272
    %1858 = vmatprep.subr.mxu0 %v277
    %1859 = vmatpush1.msra.mxu0 %v276
    %1860 = vmatprep.subr.mxu0 %v281
    %1861 = vmatpush1.msra.mxu0 %v280
    %1862 = vmatprep.subr.mxu0 %v285
    %1863 = vmatpush1.msra.mxu0 %v284
    %1864 = vmatprep.subr.mxu0 %v289
    %1865 = vmatpush1.msra.mxu0 %v288
    %1866 = vmatprep.subr.mxu0 %v293
    %1867 = vmatpush1.msra.mxu0 %v292
    %1868 = vmatprep.subr.mxu0 %v297
    %1869 = vmatpush1.msra.mxu0 %v296
    %1870 = vmatprep.subr.mxu0 %v301
    %1871 = vmatpush1.msra.mxu0 %v300
    %1872 = vmatprep.subr.mxu0 %v305
    %1873 = vmatpush1.msra.mxu0 %v304
    %1874 = vmatprep.subr.mxu0 %v309
    %1875 = vmatpush1.msra.mxu0 %v308
    %1876 = vmatprep.subr.mxu0 %v313
    %1877 = vmatpush1.msra.mxu0 %v312
    %1878 = vmatprep.subr.mxu0 %v317
    %1879 = vmatpush1.msra.mxu0 %v316
    %1880 = vmatprep.subr.mxu0 %v321
    %1881 = vmatpush1.msra.mxu0 %v320
    %1882 = vmatprep.subr.mxu0 0.0
    %1883 = vmatpush1.msra.mxu0 0.0
    %1884 = vmatprep.subr.mxu0 0.0
    %1885 = vmatpush1.msra.mxu0 0.0
    %1886 = vmatprep.subr.mxu0 0.0
    %1887 = vmatpush1.msra.mxu0 0.0
    %1888 = vmatprep.subr.mxu0 0.0
    %1889 = vmatpush1.msra.mxu0 0.0
    %1890 = vmatprep.subr.mxu0 0.0
    %1891 = vmatpush1.msra.mxu0 0.0
    %1892 = vmatprep.subr.mxu0 0.0
    %1893 = vmatpush1.msra.mxu0 0.0
    %1894 = vmatprep.subr.mxu0 0.0
    %1895 = vmatpush1.msra.mxu0 0.0
    %1896 = vmatprep.subr.mxu0 0.0
    %1897 = vmatpush1.msra.mxu0 0.0
    %1898 = vmatprep.subr.mxu0 0.0
    %1899 = vmatpush1.msra.mxu0 0.0
    %1900 = vmatprep.subr.mxu0 0.0
    %1901 = vmatpush1.msra.mxu0 0.0
    %1902 = vmatprep.subr.mxu0 0.0
    %1903 = vmatpush1.msra.mxu0 0.0
    %1904 = vmatprep.subr.mxu0 0.0
    %1905 = vmatpush1.msra.mxu0 0.0
    %1906 = vmatprep.subr.mxu0 0.0
    %1907 = vmatpush1.msra.mxu0 0.0
    %1908 = vmatprep.subr.mxu0 0.0
    %1909 = vmatpush1.msra.mxu0 0.0
    %1910 = vmatprep.subr.mxu0 0.0
    %1911 = vmatpush1.msra.mxu0 0.0
    %1912 = vmatprep.subr.mxu0 0.0
    %1913 = vmatpush1.msra.mxu0 0.0
    %1914 = vmatprep.mubr.f32.mxu0 0.0
    %1915 = vmatmul.mubr.f32.gmra.mrb[0].mxu0 %v1848
    %v1916 = vpop.f32.mrb[0].mxu0
    %v1917 = vadd.f32 0.0, %v1916
    %v1918 = vpop.f32.mrb[0].mxu0
    %v1919 = vadd.f32 0.0, %v1918
    %1920 = vdwg.mxu0
    %v1921 = vadd.f32 %v1917, %v497
    %v1922 = vadd.f32 %v1919, %v501
    %v1923 = vxor.u32 %v1921, 2147483648
    %v1924 = vmul.f32 %v1923, 1.442695
    %v1925 = vpow.pop %v1924
    %v1926 = vadd.f32 %v1925, 1.0
    %v1927 = vrcp.pop %v1926
    %v1928 = vmul.f32 1.0, %v1927
    %v1929 = vtanh.pop %v1922
    %v1930 = vxor.u32 %v1922, 2147483648
    %v1931 = vmul.f32 %v1930, 1.442695
    %v1932 = vpow.pop %v1931
    %v1933 = vadd.f32 %v1932, 1.0
    %v1934 = vrcp.pop %v1933
    %v1935 = vmul.f32 1.0, %v1934
    %v1936 = vmul.f32 %v1928, %v1799
    %v1937 = vmul.f32 %v1928, %v1929
    %1939 = vrot.lane.b32.xlu0 %v1937, 64
    %v1940 = vpop.permute.xlu0 %1939
    %v1942 = vadd.f32 %v1936, %v1940
    %v1943 = vtanh.pop %v1942
    %v1944 = vmul.f32 %v1935, %v1943
    %1946 = vrot.lane.b32.xlu0 %v1944, 64
    %v1947 = vpop.permute.xlu0 %1946
    %1949 = vst.msk [vmem:[#allocation2 + $0xe] sm:$0x3] %vm532, %v1947
    %v1950 = vld [vmem:[#allocation2] sm:$0xff]
    %v1951 = vld [vmem:[#allocation2 + $0x8] sm:$0xff]
    %v1952 = vld [vmem:[%s5] sm:$0xff]
    %v1953 = vld [vmem:[%s5 + $0x8] sm:$0xff]
    %v1954 = vld [vmem:[%s5 + $0x10] sm:$0xff]
    %v1955 = vld [vmem:[%s5 + $0x18] sm:$0xff]
    %v1956 = vld [vmem:[%s5 + $0x20] sm:$0xff]
    %v1957 = vld [vmem:[%s5 + $0x28] sm:$0xff]
    %v1958 = vld [vmem:[%s5 + $0x30] sm:$0xff]
    %v1959 = vld [vmem:[%s5 + $0x38] sm:$0xff]
    %v1960 = vld [vmem:[#allocation11] sm:$0x1]
    %v1962 = vlaneseq
    %v1963 = vshrl.u32 %v1962, 7
    %v1964 = vsub.s32 0, %v1963
    %v1965 = vrot.slane %v1960, %v1964
    %v1967 = vsel %vm349, %v1947, 0
    %1969 = vmatprep.subr.mxu0 0.0
    %1970 = vmatpush1.msra.mxu0 %v1952
    %1971 = vmatprep.subr.mxu0 0.0
    %1972 = vmatpush1.msra.mxu0 %v1953
    %1973 = vmatprep.subr.mxu0 0.0
    %1974 = vmatpush1.msra.mxu0 %v1954
    %1975 = vmatprep.subr.mxu0 0.0
    %1976 = vmatpush1.msra.mxu0 %v1955
    %1977 = vmatprep.subr.mxu0 0.0
    %1978 = vmatpush1.msra.mxu0 %v1956
    %1979 = vmatprep.subr.mxu0 0.0
    %1980 = vmatpush1.msra.mxu0 %v1957
    %1981 = vmatprep.subr.mxu0 0.0
    %1982 = vmatpush1.msra.mxu0 %v1958
    %1983 = vmatprep.subr.mxu0 0.0
    %1984 = vmatpush1.msra.mxu0 %v1959
    %1985 = vmatprep.subr.mxu0 0.0
    %1986 = vmatpush1.msra.mxu0 0.0
    %1987 = vmatprep.subr.mxu0 0.0
    %1988 = vmatpush1.msra.mxu0 0.0
    %1989 = vmatprep.subr.mxu0 0.0
    %1990 = vmatpush1.msra.mxu0 0.0
    %1991 = vmatprep.subr.mxu0 0.0
    %1992 = vmatpush1.msra.mxu0 0.0
    %1993 = vmatprep.subr.mxu0 0.0
    %1994 = vmatpush1.msra.mxu0 0.0
    %1995 = vmatprep.subr.mxu0 0.0
    %1996 = vmatpush1.msra.mxu0 0.0
    %1997 = vmatprep.subr.mxu0 0.0
    %1998 = vmatpush1.msra.mxu0 0.0
    %1999 = vmatprep.subr.mxu0 0.0
    %2000 = vmatpush1.msra.mxu0 0.0
    %2001 = vmatprep.subr.mxu0 0.0
    %2002 = vmatpush1.msra.mxu0 0.0
    %2003 = vmatprep.subr.mxu0 0.0
    %2004 = vmatpush1.msra.mxu0 0.0
    %2005 = vmatprep.subr.mxu0 0.0
    %2006 = vmatpush1.msra.mxu0 0.0
    %2007 = vmatprep.subr.mxu0 0.0
    %2008 = vmatpush1.msra.mxu0 0.0
    %2009 = vmatprep.subr.mxu0 0.0
    %2010 = vmatpush1.msra.mxu0 0.0
    %2011 = vmatprep.subr.mxu0 0.0
    %2012 = vmatpush1.msra.mxu0 0.0
    %2013 = vmatprep.subr.mxu0 0.0
    %2014 = vmatpush1.msra.mxu0 0.0
    %2015 = vmatprep.subr.mxu0 0.0
    %2016 = vmatpush1.msra.mxu0 0.0
    %2017 = vmatprep.subr.mxu0 0.0
    %2018 = vmatpush1.msra.mxu0 0.0
    %2019 = vmatprep.subr.mxu0 0.0
    %2020 = vmatpush1.msra.mxu0 0.0
    %2021 = vmatprep.subr.mxu0 0.0
    %2022 = vmatpush1.msra.mxu0 0.0
    %2023 = vmatprep.subr.mxu0 0.0
    %2024 = vmatpush1.msra.mxu0 0.0
    %2025 = vmatprep.subr.mxu0 0.0
    %2026 = vmatpush1.msra.mxu0 0.0
    %2027 = vmatprep.subr.mxu0 0.0
    %2028 = vmatpush1.msra.mxu0 0.0
    %2029 = vmatprep.subr.mxu0 0.0
    %2030 = vmatpush1.msra.mxu0 0.0
    %2031 = vmatprep.subr.mxu0 0.0
    %2032 = vmatpush1.msra.mxu0 0.0
    %2033 = vmatprep.mubr.f32.mxu0 0.0
    %2034 = vmatmul.mubr.f32.gmra.mrb[0].mxu0 %v1967
    %v2035 = vpop.f32.mrb[0].mxu0
    %v2036 = vadd.f32 %v1965, %v2035
    %v2037 = vpop.f32.mrb[0].mxu0
    %2038 = vdwg.mxu0
    %v2039 = vld [vmem:[%s7] sm:$0xff]
    %v2040 = vld [vmem:[%s7 + $0x8] sm:$0xff]
    %v2041 = vld [vmem:[%s7 + $0x10] sm:$0xff]
    %v2042 = vld [vmem:[%s7 + $0x18] sm:$0xff]
    %v2043 = vld [vmem:[%s7 + $0x20] sm:$0xff]
    %v2044 = vld [vmem:[%s7 + $0x28] sm:$0xff]
    %v2045 = vld [vmem:[%s7 + $0x30] sm:$0xff]
    %v2046 = vld [vmem:[%s7 + $0x38] sm:$0xff]
    %v2047 = vld [vmem:[#allocation12] sm:$0x1]
    %v2049 = vlaneseq
    %v2050 = vshrl.u32 %v2049, 7
    %v2051 = vsub.s32 0, %v2050
    %v2052 = vrot.slane %v2047, %v2051
    %v2055 = vsel %vm349, %v1950, 0
    %v2058 = vsel %vm349, %v1951, 0
    %2060 = vmatprep.subr.mxu0 0.0
    %2061 = vmatpush1.msra.mxu0 %v2039
    %2062 = vmatprep.subr.mxu0 0.0
    %2063 = vmatpush1.msra.mxu0 %v2040
    %2064 = vmatprep.subr.mxu0 0.0
    %2065 = vmatpush1.msra.mxu0 %v2041
    %2066 = vmatprep.subr.mxu0 0.0
    %2067 = vmatpush1.msra.mxu0 %v2042
    %2068 = vmatprep.subr.mxu0 0.0
    %2069 = vmatpush1.msra.mxu0 %v2043
    %2070 = vmatprep.subr.mxu0 0.0
    %2071 = vmatpush1.msra.mxu0 %v2044
    %2072 = vmatprep.subr.mxu0 0.0
    %2073 = vmatpush1.msra.mxu0 %v2045
    %2074 = vmatprep.subr.mxu0 0.0
    %2075 = vmatpush1.msra.mxu0 %v2046
    %2076 = vmatprep.subr.mxu0 0.0
    %2077 = vmatpush1.msra.mxu0 0.0
    %2078 = vmatprep.subr.mxu0 0.0
    %2079 = vmatpush1.msra.mxu0 0.0
    %2080 = vmatprep.subr.mxu0 0.0
    %2081 = vmatpush1.msra.mxu0 0.0
    %2082 = vmatprep.subr.mxu0 0.0
    %2083 = vmatpush1.msra.mxu0 0.0
    %2084 = vmatprep.subr.mxu0 0.0
    %2085 = vmatpush1.msra.mxu0 0.0
    %2086 = vmatprep.subr.mxu0 0.0
    %2087 = vmatpush1.msra.mxu0 0.0
    %2088 = vmatprep.subr.mxu0 0.0
    %2089 = vmatpush1.msra.mxu0 0.0
    %2090 = vmatprep.subr.mxu0 0.0
    %2091 = vmatpush1.msra.mxu0 0.0
    %2092 = vmatprep.subr.mxu0 0.0
    %2093 = vmatpush1.msra.mxu0 0.0
    %2094 = vmatprep.subr.mxu0 0.0
    %2095 = vmatpush1.msra.mxu0 0.0
    %2096 = vmatprep.subr.mxu0 0.0
    %2097 = vmatpush1.msra.mxu0 0.0
    %2098 = vmatprep.subr.mxu0 0.0
    %2099 = vmatpush1.msra.mxu0 0.0
    %2100 = vmatprep.subr.mxu0 0.0
    %2101 = vmatpush1.msra.mxu0 0.0
    %2102 = vmatprep.subr.mxu0 0.0
    %2103 = vmatpush1.msra.mxu0 0.0
    %2104 = vmatprep.subr.mxu0 0.0
    %2105 = vmatpush1.msra.mxu0 0.0
    %2106 = vmatprep.subr.mxu0 0.0
    %2107 = vmatpush1.msra.mxu0 0.0
    %2108 = vmatprep.subr.mxu0 0.0
    %2109 = vmatpush1.msra.mxu0 0.0
    %2110 = vmatprep.subr.mxu0 0.0
    %2111 = vmatpush1.msra.mxu0 0.0
    %2112 = vmatprep.subr.mxu0 0.0
    %2113 = vmatpush1.msra.mxu0 0.0
    %2114 = vmatprep.subr.mxu0 0.0
    %2115 = vmatpush1.msra.mxu0 0.0
    %2116 = vmatprep.subr.mxu0 0.0
    %2117 = vmatpush1.msra.mxu0 0.0
    %2118 = vmatprep.subr.mxu0 0.0
    %2119 = vmatpush1.msra.mxu0 0.0
    %2120 = vmatprep.subr.mxu0 0.0
    %2121 = vmatpush1.msra.mxu0 0.0
    %2122 = vmatprep.subr.mxu0 0.0
    %2123 = vmatpush1.msra.mxu0 0.0
    %2124 = vmatprep.mubr.f32.mxu0 0.0
    %2125 = vmatmul.mubr.f32.gmra.mrb[0].mxu0 %v2055
    %v2126 = vpop.f32.mrb[0].mxu0
    %v2127 = vadd.f32 %v2052, %v2126
    %v2128 = vpop.f32.mrb[0].mxu0
    %2129 = vmatprep.mubr.f32.mxu0 0.0
    %2130 = vmatmul.mubr.f32.gmra.mrb[0].mxu0 %v2058
    %v2131 = vpop.f32.mrb[0].mxu0
    %v2132 = vadd.f32 %v2052, %v2131
    %v2133 = vpop.f32.mrb[0].mxu0
    %2134 = vdwg.mxu0
    %v2135 = vld [vmem:[%s9] sm:$0xff]
    %v2136 = vld [vmem:[%s9 + $0x8] sm:$0xff]
    %v2137 = vld [vmem:[%s9 + $0x10] sm:$0xff]
    %v2138 = vld [vmem:[%s9 + $0x18] sm:$0xff]
    %v2139 = vld [vmem:[%s9 + $0x20] sm:$0xff]
    %v2140 = vld [vmem:[%s9 + $0x28] sm:$0xff]
    %v2141 = vld [vmem:[%s9 + $0x30] sm:$0xff]
    %v2142 = vld [vmem:[%s9 + $0x38] sm:$0xff]
    %v2143 = vld [vmem:[#allocation14] sm:$0x1]
    %v2145 = vlaneseq
    %v2146 = vshrl.u32 %v2145, 7
    %v2147 = vsub.s32 0, %v2146
    %v2148 = vrot.slane %v2143, %v2147
    %2150 = vmatprep.subr.mxu0 0.0
    %2151 = vmatpush1.msra.mxu0 %v2135
    %2152 = vmatprep.subr.mxu0 0.0
    %2153 = vmatpush1.msra.mxu0 %v2136
    %2154 = vmatprep.subr.mxu0 0.0
    %2155 = vmatpush1.msra.mxu0 %v2137
    %2156 = vmatprep.subr.mxu0 0.0
    %2157 = vmatpush1.msra.mxu0 %v2138
    %2158 = vmatprep.subr.mxu0 0.0
    %2159 = vmatpush1.msra.mxu0 %v2139
    %2160 = vmatprep.subr.mxu0 0.0
    %2161 = vmatpush1.msra.mxu0 %v2140
    %2162 = vmatprep.subr.mxu0 0.0
    %2163 = vmatpush1.msra.mxu0 %v2141
    %2164 = vmatprep.subr.mxu0 0.0
    %2165 = vmatpush1.msra.mxu0 %v2142
    %2166 = vmatprep.subr.mxu0 0.0
    %2167 = vmatpush1.msra.mxu0 0.0
    %2168 = vmatprep.subr.mxu0 0.0
    %2169 = vmatpush1.msra.mxu0 0.0
    %2170 = vmatprep.subr.mxu0 0.0
    %2171 = vmatpush1.msra.mxu0 0.0
    %2172 = vmatprep.subr.mxu0 0.0
    %2173 = vmatpush1.msra.mxu0 0.0
    %2174 = vmatprep.subr.mxu0 0.0
    %2175 = vmatpush1.msra.mxu0 0.0
    %2176 = vmatprep.subr.mxu0 0.0
    %2177 = vmatpush1.msra.mxu0 0.0
    %2178 = vmatprep.subr.mxu0 0.0
    %2179 = vmatpush1.msra.mxu0 0.0
    %2180 = vmatprep.subr.mxu0 0.0
    %2181 = vmatpush1.msra.mxu0 0.0
    %2182 = vmatprep.subr.mxu0 0.0
    %2183 = vmatpush1.msra.mxu0 0.0
    %2184 = vmatprep.subr.mxu0 0.0
    %2185 = vmatpush1.msra.mxu0 0.0
    %2186 = vmatprep.subr.mxu0 0.0
    %2187 = vmatpush1.msra.mxu0 0.0
    %2188 = vmatprep.subr.mxu0 0.0
    %2189 = vmatpush1.msra.mxu0 0.0
    %2190 = vmatprep.subr.mxu0 0.0
    %2191 = vmatpush1.msra.mxu0 0.0
    %2192 = vmatprep.subr.mxu0 0.0
    %2193 = vmatpush1.msra.mxu0 0.0
    %2194 = vmatprep.subr.mxu0 0.0
    %2195 = vmatpush1.msra.mxu0 0.0
    %2196 = vmatprep.subr.mxu0 0.0
    %2197 = vmatpush1.msra.mxu0 0.0
    %2198 = vmatprep.subr.mxu0 0.0
    %2199 = vmatpush1.msra.mxu0 0.0
    %2200 = vmatprep.subr.mxu0 0.0
    %2201 = vmatpush1.msra.mxu0 0.0
    %2202 = vmatprep.subr.mxu0 0.0
    %2203 = vmatpush1.msra.mxu0 0.0
    %2204 = vmatprep.subr.mxu0 0.0
    %2205 = vmatpush1.msra.mxu0 0.0
    %2206 = vmatprep.subr.mxu0 0.0
    %2207 = vmatpush1.msra.mxu0 0.0
    %2208 = vmatprep.subr.mxu0 0.0
    %2209 = vmatpush1.msra.mxu0 0.0
    %2210 = vmatprep.subr.mxu0 0.0
    %2211 = vmatpush1.msra.mxu0 0.0
    %2212 = vmatprep.subr.mxu0 0.0
    %2213 = vmatpush1.msra.mxu0 0.0
    %2214 = vmatprep.mubr.f32.mxu0 0.0
    %2215 = vmatmul.mubr.f32.gmra.mrb[0].mxu0 %v2055
    %v2216 = vpop.f32.mrb[0].mxu0
    %v2217 = vadd.f32 %v2148, %v2216
    %v2218 = vpop.f32.mrb[0].mxu0
    %2219 = vmatprep.mubr.f32.mxu0 0.0
    %2220 = vmatmul.mubr.f32.gmra.mrb[0].mxu0 %v2058
    %v2221 = vpop.f32.mrb[0].mxu0
    %v2222 = vadd.f32 %v2148, %v2221
    %v2223 = vpop.f32.mrb[0].mxu0
    %2224 = vdwg.mxu0
    %v2226 = vrot.slane %v2036, 6
    %v2228 = vrot.slane %v2036, 4
    %v2230 = vrot.slane %v2036, 2
    %vm2232 = vcmask 1041408
    %v2233 = vsel %vm2232, %v2036, %v2226
    %vm2234 = vcmask 1043456
    %v2235 = vsel %vm2234, %v2233, %v2228
    %vm2236 = vcmask 1045504
    %v2237 = vsel %vm2236, %v2235, %v2230
    %v2238 = vmul.f32 %v2127, %v2237
    %v2239 = vmul.f32 %v2132, %v2237
    %v2240 = vld [vmem:[%s13] sm:$0xff]
    %v2241 = vld [vmem:[%s13 + $0x8] sm:$0xff]
    %v2242 = vld [vmem:[%s13 + $0x10] sm:$0xff]
    %v2243 = vld [vmem:[%s13 + $0x18] sm:$0xff]
    %v2244 = vld [vmem:[%s13 + $0x20] sm:$0xff]
    %v2245 = vld [vmem:[%s13 + $0x28] sm:$0xff]
    %v2246 = vld [vmem:[%s13 + $0x30] sm:$0xff]
    %v2247 = vld [vmem:[%s13 + $0x38] sm:$0xff]
    %v2249 = vsel %vm349, %v2238, 0
    %v2252 = vsel %vm349, %v2239, 0
    %2254 = vmatprep.subr.mxu0 0.0
    %2255 = vmatpush1.msra.mxu0 %v2240
    %2256 = vmatprep.subr.mxu0 0.0
    %2257 = vmatpush1.msra.mxu0 %v2241
    %2258 = vmatprep.subr.mxu0 0.0
    %2259 = vmatpush1.msra.mxu0 %v2242
    %2260 = vmatprep.subr.mxu0 0.0
    %2261 = vmatpush1.msra.mxu0 %v2243
    %2262 = vmatprep.subr.mxu0 0.0
    %2263 = vmatpush1.msra.mxu0 %v2244
    %2264 = vmatprep.subr.mxu0 0.0
    %2265 = vmatpush1.msra.mxu0 %v2245
    %2266 = vmatprep.subr.mxu0 0.0
    %2267 = vmatpush1.msra.mxu0 %v2246
    %2268 = vmatprep.subr.mxu0 0.0
    %2269 = vmatpush1.msra.mxu0 %v2247
    %2270 = vmatprep.subr.mxu0 0.0
    %2271 = vmatpush1.msra.mxu0 0.0
    %2272 = vmatprep.subr.mxu0 0.0
    %2273 = vmatpush1.msra.mxu0 0.0
    %2274 = vmatprep.subr.mxu0 0.0
    %2275 = vmatpush1.msra.mxu0 0.0
    %2276 = vmatprep.subr.mxu0 0.0
    %2277 = vmatpush1.msra.mxu0 0.0
    %2278 = vmatprep.subr.mxu0 0.0
    %2279 = vmatpush1.msra.mxu0 0.0
    %2280 = vmatprep.subr.mxu0 0.0
    %2281 = vmatpush1.msra.mxu0 0.0
    %2282 = vmatprep.subr.mxu0 0.0
    %2283 = vmatpush1.msra.mxu0 0.0
    %2284 = vmatprep.subr.mxu0 0.0
    %2285 = vmatpush1.msra.mxu0 0.0
    %2286 = vmatprep.subr.mxu0 0.0
    %2287 = vmatpush1.msra.mxu0 0.0
    %2288 = vmatprep.subr.mxu0 0.0
    %2289 = vmatpush1.msra.mxu0 0.0
    %2290 = vmatprep.subr.mxu0 0.0
    %2291 = vmatpush1.msra.mxu0 0.0
    %2292 = vmatprep.subr.mxu0 0.0
    %2293 = vmatpush1.msra.mxu0 0.0
    %2294 = vmatprep.subr.mxu0 0.0
    %2295 = vmatpush1.msra.mxu0 0.0
    %2296 = vmatprep.subr.mxu0 0.0
    %2297 = vmatpush1.msra.mxu0 0.0
    %2298 = vmatprep.subr.mxu0 0.0
    %2299 = vmatpush1.msra.mxu0 0.0
    %2300 = vmatprep.subr.mxu0 0.0
    %2301 = vmatpush1.msra.mxu0 0.0
    %2302 = vmatprep.subr.mxu0 0.0
    %2303 = vmatpush1.msra.mxu0 0.0
    %2304 = vmatprep.subr.mxu0 0.0
    %2305 = vmatpush1.msra.mxu0 0.0
    %2306 = vmatprep.subr.mxu0 0.0
    %2307 = vmatpush1.msra.mxu0 0.0
    %2308 = vmatprep.subr.mxu0 0.0
    %2309 = vmatpush1.msra.mxu0 0.0
    %2310 = vmatprep.subr.mxu0 0.0
    %2311 = vmatpush1.msra.mxu0 0.0
    %2312 = vmatprep.subr.mxu0 0.0
    %2313 = vmatpush1.msra.mxu0 0.0
    %2314 = vmatprep.subr.mxu0 0.0
    %2315 = vmatpush1.msra.mxu0 0.0
    %2316 = vmatprep.subr.mxu0 0.0
    %2317 = vmatpush1.msra.mxu0 0.0
    %2318 = vmatprep.mubr.f32.mxu0 0.0
    %2319 = vmatmul.mubr.f32.gmra.mrb[0].mxu0 %v2249
    %v2320 = vpop.f32.mrb[0].mxu0
    %v2321 = vadd.f32 0.0, %v2320
    %v2322 = vpop.f32.mrb[0].mxu0
    %2323 = vmatprep.mubr.f32.mxu0 0.0
    %2324 = vmatmul.mubr.f32.gmra.mrb[0].mxu0 %v2252
    %v2325 = vpop.f32.mrb[0].mxu0
    %v2326 = vadd.f32 0.0, %v2325
    %v2327 = vpop.f32.mrb[0].mxu0
    %2328 = vdwg.mxu0
    %v2329 = vmul.f32 %v2321, 0.25
    %v2330 = vmul.f32 %v2326, 0.25
    %v2332 = vrot.slane %v2329, 2
    %v2334 = vmax.f32 %v2329, %v2332
    %v2335 = vrot.slane %v2329, 4
    %v2337 = vmax.f32 %v2334, %v2335
    %v2338 = vrot.slane %v2329, 6
    %v2340 = vmax.f32 %v2337, %v2338
    %v2341 = vmax.f32 %v2340, %v2330
    %v2343 = vrot.slane %v2330, 2
    %v2345 = vmax.f32 %v2341, %v2343
    %v2346 = vrot.slane %v2330, 4
    %v2348 = vmax.f32 %v2345, %v2346
    %v2349 = vrot.slane %v2330, 6
    %v2351 = vmax.f32 %v2348, %v2349
    %v2352 = vsub.f32 %v2329, %v2351
    %v2353 = vmul.f32 %v2352, 1.442695
    %v2354 = vpow.pop %v2353
    %v2355 = vadd.f32 %v2354, 0.0
    %v2357 = vrot.slane %v2351, 6
    %v2359 = vsub.f32 %v2329, %v2357
    %v2360 = vmul.f32 %v2359, 1.442695
    %v2361 = vpow.pop %v2360
    %v2363 = vrot.slane %v2361, 2
    %v2365 = vadd.f32 %v2355, %v2363
    %v2366 = vrot.slane %v2351, 4
    %v2368 = vsub.f32 %v2329, %v2366
    %v2369 = vmul.f32 %v2368, 1.442695
    %v2370 = vpow.pop %v2369
    %v2372 = vrot.slane %v2370, 4
    %v2374 = vadd.f32 %v2365, %v2372
    %v2375 = vrot.slane %v2351, 2
    %v2377 = vsub.f32 %v2329, %v2375
    %v2378 = vmul.f32 %v2377, 1.442695
    %v2379 = vpow.pop %v2378
    %v2381 = vrot.slane %v2379, 6
    %v2383 = vadd.f32 %v2374, %v2381
    %v2384 = vsub.f32 %v2330, %v2351
    %v2385 = vmul.f32 %v2384, 1.442695
    %v2386 = vpow.pop %v2385
    %v2387 = vadd.f32 %v2383, %v2386
    %v2388 = vsub.f32 %v2330, %v2357
    %v2389 = vmul.f32 %v2388, 1.442695
    %v2390 = vpow.pop %v2389
    %v2392 = vrot.slane %v2390, 2
    %v2394 = vadd.f32 %v2387, %v2392
    %v2395 = vsub.f32 %v2330, %v2366
    %v2396 = vmul.f32 %v2395, 1.442695
    %v2397 = vpow.pop %v2396
    %v2399 = vrot.slane %v2397, 4
    %v2401 = vadd.f32 %v2394, %v2399
    %v2402 = vsub.f32 %v2330, %v2375
    %v2403 = vmul.f32 %v2402, 1.442695
    %v2404 = vpow.pop %v2403
    %v2406 = vrot.slane %v2404, 6
    %v2408 = vadd.f32 %v2401, %v2406
    %v2409 = vrcp.pop %v2408
    %v2410 = vmul.f32 %v2354, %v2409
    %v2411 = vld [vmem:[%s14] sm:$0xf]
    %vm2412 = vcmask 31744
    %v2414 = vsel %vm2412, %v2410, 0
    %v2417 = vsel %vm2234, %v2411, 0
    %2419 = vmatprep.subr.mxu0 0.0
    %2420 = vmatpush1.msra.mxu0 %v2417
    %2421 = vmatprep.subr.mxu0 0.0
    %2422 = vmatpush1.msra.mxu0 0.0
    %2423 = vmatprep.subr.mxu0 0.0
    %2424 = vmatpush1.msra.mxu0 0.0
    %2425 = vmatprep.subr.mxu0 0.0
    %2426 = vmatpush1.msra.mxu0 0.0
    %2427 = vmatprep.subr.mxu0 0.0
    %2428 = vmatpush1.msra.mxu0 0.0
    %2429 = vmatprep.subr.mxu0 0.0
    %2430 = vmatpush1.msra.mxu0 0.0
    %2431 = vmatprep.subr.mxu0 0.0
    %2432 = vmatpush1.msra.mxu0 0.0
    %2433 = vmatprep.subr.mxu0 0.0
    %2434 = vmatpush1.msra.mxu0 0.0
    %2435 = vmatprep.subr.mxu0 0.0
    %2436 = vmatpush1.msra.mxu0 0.0
    %2437 = vmatprep.subr.mxu0 0.0
    %2438 = vmatpush1.msra.mxu0 0.0
    %2439 = vmatprep.subr.mxu0 0.0
    %2440 = vmatpush1.msra.mxu0 0.0
    %2441 = vmatprep.subr.mxu0 0.0
    %2442 = vmatpush1.msra.mxu0 0.0
    %2443 = vmatprep.subr.mxu0 0.0
    %2444 = vmatpush1.msra.mxu0 0.0
    %2445 = vmatprep.subr.mxu0 0.0
    %2446 = vmatpush1.msra.mxu0 0.0
    %2447 = vmatprep.subr.mxu0 0.0
    %2448 = vmatpush1.msra.mxu0 0.0
    %2449 = vmatprep.subr.mxu0 0.0
    %2450 = vmatpush1.msra.mxu0 0.0
    %2451 = vmatprep.subr.mxu0 0.0
    %2452 = vmatpush1.msra.mxu0 0.0
    %2453 = vmatprep.subr.mxu0 0.0
    %2454 = vmatpush1.msra.mxu0 0.0
    %2455 = vmatprep.subr.mxu0 0.0
    %2456 = vmatpush1.msra.mxu0 0.0
    %2457 = vmatprep.subr.mxu0 0.0
    %2458 = vmatpush1.msra.mxu0 0.0
    %2459 = vmatprep.subr.mxu0 0.0
    %2460 = vmatpush1.msra.mxu0 0.0
    %2461 = vmatprep.subr.mxu0 0.0
    %2462 = vmatpush1.msra.mxu0 0.0
    %2463 = vmatprep.subr.mxu0 0.0
    %2464 = vmatpush1.msra.mxu0 0.0
    %2465 = vmatprep.subr.mxu0 0.0
    %2466 = vmatpush1.msra.mxu0 0.0
    %2467 = vmatprep.subr.mxu0 0.0
    %2468 = vmatpush1.msra.mxu0 0.0
    %2469 = vmatprep.subr.mxu0 0.0
    %2470 = vmatpush1.msra.mxu0 0.0
    %2471 = vmatprep.subr.mxu0 0.0
    %2472 = vmatpush1.msra.mxu0 0.0
    %2473 = vmatprep.subr.mxu0 0.0
    %2474 = vmatpush1.msra.mxu0 0.0
    %2475 = vmatprep.subr.mxu0 0.0
    %2476 = vmatpush1.msra.mxu0 0.0
    %2477 = vmatprep.subr.mxu0 0.0
    %2478 = vmatpush1.msra.mxu0 0.0
    %2479 = vmatprep.subr.mxu0 0.0
    %2480 = vmatpush1.msra.mxu0 0.0
    %2481 = vmatprep.subr.mxu0 0.0
    %2482 = vmatpush1.msra.mxu0 0.0
    %2483 = vmatprep.mubr.f32.mxu0 0.0
    %2484 = vmatmul.mubr.f32.gmra.mrb[0].mxu0 %v2414
    %v2485 = vpop.f32.mrb[0].mxu0
    %v2486 = vadd.f32 0.0, %v2485
    %v2487 = vpop.f32.mrb[0].mxu0
    %2488 = vdwg.mxu0
    %v2489 = vmul.f32 %v2486, %v2217
    %v2490 = vadd.f32 %v2489, 0.0
    %v2492 = vrot.slane %v2409, 6
    %v2494 = vmul.f32 %v2361, %v2492
    %v2496 = vrot.slane %v2494, 2
    %v2497 = vsel %vm2412, %v2496, 0
    %2499 = vmatprep.subr.mxu0 0.0
    %2500 = vmatpush1.msra.mxu0 %v2417
    %2501 = vmatprep.subr.mxu0 0.0
    %2502 = vmatpush1.msra.mxu0 0.0
    %2503 = vmatprep.subr.mxu0 0.0
    %2504 = vmatpush1.msra.mxu0 0.0
    %2505 = vmatprep.subr.mxu0 0.0
    %2506 = vmatpush1.msra.mxu0 0.0
    %2507 = vmatprep.subr.mxu0 0.0
    %2508 = vmatpush1.msra.mxu0 0.0
    %2509 = vmatprep.subr.mxu0 0.0
    %2510 = vmatpush1.msra.mxu0 0.0
    %2511 = vmatprep.subr.mxu0 0.0
    %2512 = vmatpush1.msra.mxu0 0.0
    %2513 = vmatprep.subr.mxu0 0.0
    %2514 = vmatpush1.msra.mxu0 0.0
    %2515 = vmatprep.subr.mxu0 0.0
    %2516 = vmatpush1.msra.mxu0 0.0
    %2517 = vmatprep.subr.mxu0 0.0
    %2518 = vmatpush1.msra.mxu0 0.0
    %2519 = vmatprep.subr.mxu0 0.0
    %2520 = vmatpush1.msra.mxu0 0.0
    %2521 = vmatprep.subr.mxu0 0.0
    %2522 = vmatpush1.msra.mxu0 0.0
    %2523 = vmatprep.subr.mxu0 0.0
    %2524 = vmatpush1.msra.mxu0 0.0
    %2525 = vmatprep.subr.mxu0 0.0
    %2526 = vmatpush1.msra.mxu0 0.0
    %2527 = vmatprep.subr.mxu0 0.0
    %2528 = vmatpush1.msra.mxu0 0.0
    %2529 = vmatprep.subr.mxu0 0.0
    %2530 = vmatpush1.msra.mxu0 0.0
    %2531 = vmatprep.subr.mxu0 0.0
    %2532 = vmatpush1.msra.mxu0 0.0
    %2533 = vmatprep.subr.mxu0 0.0
    %2534 = vmatpush1.msra.mxu0 0.0
    %2535 = vmatprep.subr.mxu0 0.0
    %2536 = vmatpush1.msra.mxu0 0.0
    %2537 = vmatprep.subr.mxu0 0.0
    %2538 = vmatpush1.msra.mxu0 0.0
    %2539 = vmatprep.subr.mxu0 0.0
    %2540 = vmatpush1.msra.mxu0 0.0
    %2541 = vmatprep.subr.mxu0 0.0
    %2542 = vmatpush1.msra.mxu0 0.0
    %2543 = vmatprep.subr.mxu0 0.0
    %2544 = vmatpush1.msra.mxu0 0.0
    %2545 = vmatprep.subr.mxu0 0.0
    %2546 = vmatpush1.msra.mxu0 0.0
    %2547 = vmatprep.subr.mxu0 0.0
    %2548 = vmatpush1.msra.mxu0 0.0
    %2549 = vmatprep.subr.mxu0 0.0
    %2550 = vmatpush1.msra.mxu0 0.0
    %2551 = vmatprep.subr.mxu0 0.0
    %2552 = vmatpush1.msra.mxu0 0.0
    %2553 = vmatprep.subr.mxu0 0.0
    %2554 = vmatpush1.msra.mxu0 0.0
    %2555 = vmatprep.subr.mxu0 0.0
    %2556 = vmatpush1.msra.mxu0 0.0
    %2557 = vmatprep.subr.mxu0 0.0
    %2558 = vmatpush1.msra.mxu0 0.0
    %2559 = vmatprep.subr.mxu0 0.0
    %2560 = vmatpush1.msra.mxu0 0.0
    %2561 = vmatprep.subr.mxu0 0.0
    %2562 = vmatpush1.msra.mxu0 0.0
    %2563 = vmatprep.mubr.f32.mxu0 0.0
    %2564 = vmatmul.mubr.f32.gmra.mrb[0].mxu0 %v2497
    %v2565 = vpop.f32.mrb[0].mxu0
    %v2566 = vadd.f32 0.0, %v2565
    %v2567 = vpop.f32.mrb[0].mxu0
    %2568 = vdwg.mxu0
    %v2570 = vrot.slane %v2217, 2
    %v2572 = vmul.f32 %v2566, %v2570
    %v2573 = vadd.f32 %v2490, %v2572
    %v2574 = vrot.slane %v2409, 4
    %v2576 = vmul.f32 %v2370, %v2574
    %v2578 = vrot.slane %v2576, 4
    %v2579 = vsel %vm2412, %v2578, 0
    %2581 = vmatprep.subr.mxu0 0.0
    %2582 = vmatpush1.msra.mxu0 %v2417
    %2583 = vmatprep.subr.mxu0 0.0
    %2584 = vmatpush1.msra.mxu0 0.0
    %2585 = vmatprep.subr.mxu0 0.0
    %2586 = vmatpush1.msra.mxu0 0.0
    %2587 = vmatprep.subr.mxu0 0.0
    %2588 = vmatpush1.msra.mxu0 0.0
    %2589 = vmatprep.subr.mxu0 0.0
    %2590 = vmatpush1.msra.mxu0 0.0
    %2591 = vmatprep.subr.mxu0 0.0
    %2592 = vmatpush1.msra.mxu0 0.0
    %2593 = vmatprep.subr.mxu0 0.0
    %2594 = vmatpush1.msra.mxu0 0.0
    %2595 = vmatprep.subr.mxu0 0.0
    %2596 = vmatpush1.msra.mxu0 0.0
    %2597 = vmatprep.subr.mxu0 0.0
    %2598 = vmatpush1.msra.mxu0 0.0
    %2599 = vmatprep.subr.mxu0 0.0
    %2600 = vmatpush1.msra.mxu0 0.0
    %2601 = vmatprep.subr.mxu0 0.0
    %2602 = vmatpush1.msra.mxu0 0.0
    %2603 = vmatprep.subr.mxu0 0.0
    %2604 = vmatpush1.msra.mxu0 0.0
    %2605 = vmatprep.subr.mxu0 0.0
    %2606 = vmatpush1.msra.mxu0 0.0
    %2607 = vmatprep.subr.mxu0 0.0
    %2608 = vmatpush1.msra.mxu0 0.0
    %2609 = vmatprep.subr.mxu0 0.0
    %2610 = vmatpush1.msra.mxu0 0.0
    %2611 = vmatprep.subr.mxu0 0.0
    %2612 = vmatpush1.msra.mxu0 0.0
    %2613 = vmatprep.subr.mxu0 0.0
    %2614 = vmatpush1.msra.mxu0 0.0
    %2615 = vmatprep.subr.mxu0 0.0
    %2616 = vmatpush1.msra.mxu0 0.0
    %2617 = vmatprep.subr.mxu0 0.0
    %2618 = vmatpush1.msra.mxu0 0.0
    %2619 = vmatprep.subr.mxu0 0.0
    %2620 = vmatpush1.msra.mxu0 0.0
    %2621 = vmatprep.subr.mxu0 0.0
    %2622 = vmatpush1.msra.mxu0 0.0
    %2623 = vmatprep.subr.mxu0 0.0
    %2624 = vmatpush1.msra.mxu0 0.0
    %2625 = vmatprep.subr.mxu0 0.0
    %2626 = vmatpush1.msra.mxu0 0.0
    %2627 = vmatprep.subr.mxu0 0.0
    %2628 = vmatpush1.msra.mxu0 0.0
    %2629 = vmatprep.subr.mxu0 0.0
    %2630 = vmatpush1.msra.mxu0 0.0
    %2631 = vmatprep.subr.mxu0 0.0
    %2632 = vmatpush1.msra.mxu0 0.0
    %2633 = vmatprep.subr.mxu0 0.0
    %2634 = vmatpush1.msra.mxu0 0.0
    %2635 = vmatprep.subr.mxu0 0.0
    %2636 = vmatpush1.msra.mxu0 0.0
    %2637 = vmatprep.subr.mxu0 0.0
    %2638 = vmatpush1.msra.mxu0 0.0
    %2639 = vmatprep.subr.mxu0 0.0
    %2640 = vmatpush1.msra.mxu0 0.0
    %2641 = vmatprep.subr.mxu0 0.0
    %2642 = vmatpush1.msra.mxu0 0.0
    %2643 = vmatprep.subr.mxu0 0.0
    %2644 = vmatpush1.msra.mxu0 0.0
    %2645 = vmatprep.mubr.f32.mxu0 0.0
    %2646 = vmatmul.mubr.f32.gmra.mrb[0].mxu0 %v2579
    %v2647 = vpop.f32.mrb[0].mxu0
    %v2648 = vadd.f32 0.0, %v2647
    %v2649 = vpop.f32.mrb[0].mxu0
    %2650 = vdwg.mxu0
    %v2651 = vrot.slane %v2217, 4
    %v2653 = vmul.f32 %v2648, %v2651
    %v2654 = vadd.f32 %v2573, %v2653
    %v2655 = vrot.slane %v2409, 2
    %v2657 = vmul.f32 %v2379, %v2655
    %v2659 = vrot.slane %v2657, 6
    %v2660 = vsel %vm2412, %v2659, 0
    %2662 = vmatprep.subr.mxu0 0.0
    %2663 = vmatpush1.msra.mxu0 %v2417
    %2664 = vmatprep.subr.mxu0 0.0
    %2665 = vmatpush1.msra.mxu0 0.0
    %2666 = vmatprep.subr.mxu0 0.0
    %2667 = vmatpush1.msra.mxu0 0.0
    %2668 = vmatprep.subr.mxu0 0.0
    %2669 = vmatpush1.msra.mxu0 0.0
    %2670 = vmatprep.subr.mxu0 0.0
    %2671 = vmatpush1.msra.mxu0 0.0
    %2672 = vmatprep.subr.mxu0 0.0
    %2673 = vmatpush1.msra.mxu0 0.0
    %2674 = vmatprep.subr.mxu0 0.0
    %2675 = vmatpush1.msra.mxu0 0.0
    %2676 = vmatprep.subr.mxu0 0.0
    %2677 = vmatpush1.msra.mxu0 0.0
    %2678 = vmatprep.subr.mxu0 0.0
    %2679 = vmatpush1.msra.mxu0 0.0
    %2680 = vmatprep.subr.mxu0 0.0
    %2681 = vmatpush1.msra.mxu0 0.0
    %2682 = vmatprep.subr.mxu0 0.0
    %2683 = vmatpush1.msra.mxu0 0.0
    %2684 = vmatprep.subr.mxu0 0.0
    %2685 = vmatpush1.msra.mxu0 0.0
    %2686 = vmatprep.subr.mxu0 0.0
    %2687 = vmatpush1.msra.mxu0 0.0
    %2688 = vmatprep.subr.mxu0 0.0
    %2689 = vmatpush1.msra.mxu0 0.0
    %2690 = vmatprep.subr.mxu0 0.0
    %2691 = vmatpush1.msra.mxu0 0.0
    %2692 = vmatprep.subr.mxu0 0.0
    %2693 = vmatpush1.msra.mxu0 0.0
    %2694 = vmatprep.subr.mxu0 0.0
    %2695 = vmatpush1.msra.mxu0 0.0
    %2696 = vmatprep.subr.mxu0 0.0
    %2697 = vmatpush1.msra.mxu0 0.0
    %2698 = vmatprep.subr.mxu0 0.0
    %2699 = vmatpush1.msra.mxu0 0.0
    %2700 = vmatprep.subr.mxu0 0.0
    %2701 = vmatpush1.msra.mxu0 0.0
    %2702 = vmatprep.subr.mxu0 0.0
    %2703 = vmatpush1.msra.mxu0 0.0
    %2704 = vmatprep.subr.mxu0 0.0
    %2705 = vmatpush1.msra.mxu0 0.0
    %2706 = vmatprep.subr.mxu0 0.0
    %2707 = vmatpush1.msra.mxu0 0.0
    %2708 = vmatprep.subr.mxu0 0.0
    %2709 = vmatpush1.msra.mxu0 0.0
    %2710 = vmatprep.subr.mxu0 0.0
    %2711 = vmatpush1.msra.mxu0 0.0
    %2712 = vmatprep.subr.mxu0 0.0
    %2713 = vmatpush1.msra.mxu0 0.0
    %2714 = vmatprep.subr.mxu0 0.0
    %2715 = vmatpush1.msra.mxu0 0.0
    %2716 = vmatprep.subr.mxu0 0.0
    %2717 = vmatpush1.msra.mxu0 0.0
    %2718 = vmatprep.subr.mxu0 0.0
    %2719 = vmatpush1.msra.mxu0 0.0
    %2720 = vmatprep.subr.mxu0 0.0
    %2721 = vmatpush1.msra.mxu0 0.0
    %2722 = vmatprep.subr.mxu0 0.0
    %2723 = vmatpush1.msra.mxu0 0.0
    %2724 = vmatprep.subr.mxu0 0.0
    %2725 = vmatpush1.msra.mxu0 0.0
    %2726 = vmatprep.mubr.f32.mxu0 0.0
    %2727 = vmatmul.mubr.f32.gmra.mrb[0].mxu0 %v2660
    %v2728 = vpop.f32.mrb[0].mxu0
    %v2729 = vadd.f32 0.0, %v2728
    %v2730 = vpop.f32.mrb[0].mxu0
    %2731 = vdwg.mxu0
    %v2732 = vrot.slane %v2217, 6
    %v2734 = vmul.f32 %v2729, %v2732
    %v2735 = vadd.f32 %v2654, %v2734
    %v2736 = vmul.f32 %v2386, %v2409
    %v2738 = vsel %vm2412, %v2736, 0
    %2740 = vmatprep.subr.mxu0 0.0
    %2741 = vmatpush1.msra.mxu0 %v2417
    %2742 = vmatprep.subr.mxu0 0.0
    %2743 = vmatpush1.msra.mxu0 0.0
    %2744 = vmatprep.subr.mxu0 0.0
    %2745 = vmatpush1.msra.mxu0 0.0
    %2746 = vmatprep.subr.mxu0 0.0
    %2747 = vmatpush1.msra.mxu0 0.0
    %2748 = vmatprep.subr.mxu0 0.0
    %2749 = vmatpush1.msra.mxu0 0.0
    %2750 = vmatprep.subr.mxu0 0.0
    %2751 = vmatpush1.msra.mxu0 0.0
    %2752 = vmatprep.subr.mxu0 0.0
    %2753 = vmatpush1.msra.mxu0 0.0
    %2754 = vmatprep.subr.mxu0 0.0
    %2755 = vmatpush1.msra.mxu0 0.0
    %2756 = vmatprep.subr.mxu0 0.0
    %2757 = vmatpush1.msra.mxu0 0.0
    %2758 = vmatprep.subr.mxu0 0.0
    %2759 = vmatpush1.msra.mxu0 0.0
    %2760 = vmatprep.subr.mxu0 0.0
    %2761 = vmatpush1.msra.mxu0 0.0
    %2762 = vmatprep.subr.mxu0 0.0
    %2763 = vmatpush1.msra.mxu0 0.0
    %2764 = vmatprep.subr.mxu0 0.0
    %2765 = vmatpush1.msra.mxu0 0.0
    %2766 = vmatprep.subr.mxu0 0.0
    %2767 = vmatpush1.msra.mxu0 0.0
    %2768 = vmatprep.subr.mxu0 0.0
    %2769 = vmatpush1.msra.mxu0 0.0
    %2770 = vmatprep.subr.mxu0 0.0
    %2771 = vmatpush1.msra.mxu0 0.0
    %2772 = vmatprep.subr.mxu0 0.0
    %2773 = vmatpush1.msra.mxu0 0.0
    %2774 = vmatprep.subr.mxu0 0.0
    %2775 = vmatpush1.msra.mxu0 0.0
    %2776 = vmatprep.subr.mxu0 0.0
    %2777 = vmatpush1.msra.mxu0 0.0
    %2778 = vmatprep.subr.mxu0 0.0
    %2779 = vmatpush1.msra.mxu0 0.0
    %2780 = vmatprep.subr.mxu0 0.0
    %2781 = vmatpush1.msra.mxu0 0.0
    %2782 = vmatprep.subr.mxu0 0.0
    %2783 = vmatpush1.msra.mxu0 0.0
    %2784 = vmatprep.subr.mxu0 0.0
    %2785 = vmatpush1.msra.mxu0 0.0
    %2786 = vmatprep.subr.mxu0 0.0
    %2787 = vmatpush1.msra.mxu0 0.0
    %2788 = vmatprep.subr.mxu0 0.0
    %2789 = vmatpush1.msra.mxu0 0.0
    %2790 = vmatprep.subr.mxu0 0.0
    %2791 = vmatpush1.msra.mxu0 0.0
    %2792 = vmatprep.subr.mxu0 0.0
    %2793 = vmatpush1.msra.mxu0 0.0
    %2794 = vmatprep.subr.mxu0 0.0
    %2795 = vmatpush1.msra.mxu0 0.0
    %2796 = vmatprep.subr.mxu0 0.0
    %2797 = vmatpush1.msra.mxu0 0.0
    %2798 = vmatprep.subr.mxu0 0.0
    %2799 = vmatpush1.msra.mxu0 0.0
    %2800 = vmatprep.subr.mxu0 0.0
    %2801 = vmatpush1.msra.mxu0 0.0
    %2802 = vmatprep.subr.mxu0 0.0
    %2803 = vmatpush1.msra.mxu0 0.0
    %2804 = vmatprep.mubr.f32.mxu0 0.0
    %2805 = vmatmul.mubr.f32.gmra.mrb[0].mxu0 %v2738
    %v2806 = vpop.f32.mrb[0].mxu0
    %v2807 = vadd.f32 0.0, %v2806
    %v2808 = vpop.f32.mrb[0].mxu0
    %2809 = vdwg.mxu0
    %v2810 = vmul.f32 %v2807, %v2222
    %v2811 = vadd.f32 %v2735, %v2810
    %v2812 = vmul.f32 %v2390, %v2492
    %v2814 = vrot.slane %v2812, 2
    %v2815 = vsel %vm2412, %v2814, 0
    %2817 = vmatprep.subr.mxu0 0.0
    %2818 = vmatpush1.msra.mxu0 %v2417
    %2819 = vmatprep.subr.mxu0 0.0
    %2820 = vmatpush1.msra.mxu0 0.0
    %2821 = vmatprep.subr.mxu0 0.0
    %2822 = vmatpush1.msra.mxu0 0.0
    %2823 = vmatprep.subr.mxu0 0.0
    %2824 = vmatpush1.msra.mxu0 0.0
    %2825 = vmatprep.subr.mxu0 0.0
    %2826 = vmatpush1.msra.mxu0 0.0
    %2827 = vmatprep.subr.mxu0 0.0
    %2828 = vmatpush1.msra.mxu0 0.0
    %2829 = vmatprep.subr.mxu0 0.0
    %2830 = vmatpush1.msra.mxu0 0.0
    %2831 = vmatprep.subr.mxu0 0.0
    %2832 = vmatpush1.msra.mxu0 0.0
    %2833 = vmatprep.subr.mxu0 0.0
    %2834 = vmatpush1.msra.mxu0 0.0
    %2835 = vmatprep.subr.mxu0 0.0
    %2836 = vmatpush1.msra.mxu0 0.0
    %2837 = vmatprep.subr.mxu0 0.0
    %2838 = vmatpush1.msra.mxu0 0.0
    %2839 = vmatprep.subr.mxu0 0.0
    %2840 = vmatpush1.msra.mxu0 0.0
    %2841 = vmatprep.subr.mxu0 0.0
    %2842 = vmatpush1.msra.mxu0 0.0
    %2843 = vmatprep.subr.mxu0 0.0
    %2844 = vmatpush1.msra.mxu0 0.0
    %2845 = vmatprep.subr.mxu0 0.0
    %2846 = vmatpush1.msra.mxu0 0.0
    %2847 = vmatprep.subr.mxu0 0.0
    %2848 = vmatpush1.msra.mxu0 0.0
    %2849 = vmatprep.subr.mxu0 0.0
    %2850 = vmatpush1.msra.mxu0 0.0
    %2851 = vmatprep.subr.mxu0 0.0
    %2852 = vmatpush1.msra.mxu0 0.0
    %2853 = vmatprep.subr.mxu0 0.0
    %2854 = vmatpush1.msra.mxu0 0.0
    %2855 = vmatprep.subr.mxu0 0.0
    %2856 = vmatpush1.msra.mxu0 0.0
    %2857 = vmatprep.subr.mxu0 0.0
    %2858 = vmatpush1.msra.mxu0 0.0
    %2859 = vmatprep.subr.mxu0 0.0
    %2860 = vmatpush1.msra.mxu0 0.0
    %2861 = vmatprep.subr.mxu0 0.0
    %2862 = vmatpush1.msra.mxu0 0.0
    %2863 = vmatprep.subr.mxu0 0.0
    %2864 = vmatpush1.msra.mxu0 0.0
    %2865 = vmatprep.subr.mxu0 0.0
    %2866 = vmatpush1.msra.mxu0 0.0
    %2867 = vmatprep.subr.mxu0 0.0
    %2868 = vmatpush1.msra.mxu0 0.0
    %2869 = vmatprep.subr.mxu0 0.0
    %2870 = vmatpush1.msra.mxu0 0.0
    %2871 = vmatprep.subr.mxu0 0.0
    %2872 = vmatpush1.msra.mxu0 0.0
    %2873 = vmatprep.subr.mxu0 0.0
    %2874 = vmatpush1.msra.mxu0 0.0
    %2875 = vmatprep.subr.mxu0 0.0
    %2876 = vmatpush1.msra.mxu0 0.0
    %2877 = vmatprep.subr.mxu0 0.0
    %2878 = vmatpush1.msra.mxu0 0.0
    %2879 = vmatprep.subr.mxu0 0.0
    %2880 = vmatpush1.msra.mxu0 0.0
    %2881 = vmatprep.mubr.f32.mxu0 0.0
    %2882 = vmatmul.mubr.f32.gmra.mrb[0].mxu0 %v2815
    %v2883 = vpop.f32.mrb[0].mxu0
    %v2884 = vadd.f32 0.0, %v2883
    %v2885 = vpop.f32.mrb[0].mxu0
    %2886 = vdwg.mxu0
    %v2888 = vrot.slane %v2222, 2
    %v2890 = vmul.f32 %v2884, %v2888
    %v2891 = vadd.f32 %v2811, %v2890
    %v2892 = vmul.f32 %v2397, %v2574
    %v2894 = vrot.slane %v2892, 4
    %v2895 = vsel %vm2412, %v2894, 0
    %2897 = vmatprep.subr.mxu0 0.0
    %2898 = vmatpush1.msra.mxu0 %v2417
    %2899 = vmatprep.subr.mxu0 0.0
    %2900 = vmatpush1.msra.mxu0 0.0
    %2901 = vmatprep.subr.mxu0 0.0
    %2902 = vmatpush1.msra.mxu0 0.0
    %2903 = vmatprep.subr.mxu0 0.0
    %2904 = vmatpush1.msra.mxu0 0.0
    %2905 = vmatprep.subr.mxu0 0.0
    %2906 = vmatpush1.msra.mxu0 0.0
    %2907 = vmatprep.subr.mxu0 0.0
    %2908 = vmatpush1.msra.mxu0 0.0
    %2909 = vmatprep.subr.mxu0 0.0
    %2910 = vmatpush1.msra.mxu0 0.0
    %2911 = vmatprep.subr.mxu0 0.0
    %2912 = vmatpush1.msra.mxu0 0.0
    %2913 = vmatprep.subr.mxu0 0.0
    %2914 = vmatpush1.msra.mxu0 0.0
    %2915 = vmatprep.subr.mxu0 0.0
    %2916 = vmatpush1.msra.mxu0 0.0
    %2917 = vmatprep.subr.mxu0 0.0
    %2918 = vmatpush1.msra.mxu0 0.0
    %2919 = vmatprep.subr.mxu0 0.0
    %2920 = vmatpush1.msra.mxu0 0.0
    %2921 = vmatprep.subr.mxu0 0.0
    %2922 = vmatpush1.msra.mxu0 0.0
    %2923 = vmatprep.subr.mxu0 0.0
    %2924 = vmatpush1.msra.mxu0 0.0
    %2925 = vmatprep.subr.mxu0 0.0
    %2926 = vmatpush1.msra.mxu0 0.0
    %2927 = vmatprep.subr.mxu0 0.0
    %2928 = vmatpush1.msra.mxu0 0.0
    %2929 = vmatprep.subr.mxu0 0.0
    %2930 = vmatpush1.msra.mxu0 0.0
    %2931 = vmatprep.subr.mxu0 0.0
    %2932 = vmatpush1.msra.mxu0 0.0
    %2933 = vmatprep.subr.mxu0 0.0
    %2934 = vmatpush1.msra.mxu0 0.0
    %2935 = vmatprep.subr.mxu0 0.0
    %2936 = vmatpush1.msra.mxu0 0.0
    %2937 = vmatprep.subr.mxu0 0.0
    %2938 = vmatpush1.msra.mxu0 0.0
    %2939 = vmatprep.subr.mxu0 0.0
    %2940 = vmatpush1.msra.mxu0 0.0
    %2941 = vmatprep.subr.mxu0 0.0
    %2942 = vmatpush1.msra.mxu0 0.0
    %2943 = vmatprep.subr.mxu0 0.0
    %2944 = vmatpush1.msra.mxu0 0.0
    %2945 = vmatprep.subr.mxu0 0.0
    %2946 = vmatpush1.msra.mxu0 0.0
    %2947 = vmatprep.subr.mxu0 0.0
    %2948 = vmatpush1.msra.mxu0 0.0
    %2949 = vmatprep.subr.mxu0 0.0
    %2950 = vmatpush1.msra.mxu0 0.0
    %2951 = vmatprep.subr.mxu0 0.0
    %2952 = vmatpush1.msra.mxu0 0.0
    %2953 = vmatprep.subr.mxu0 0.0
    %2954 = vmatpush1.msra.mxu0 0.0
    %2955 = vmatprep.subr.mxu0 0.0
    %2956 = vmatpush1.msra.mxu0 0.0
    %2957 = vmatprep.subr.mxu0 0.0
    %2958 = vmatpush1.msra.mxu0 0.0
    %2959 = vmatprep.subr.mxu0 0.0
    %2960 = vmatpush1.msra.mxu0 0.0
    %2961 = vmatprep.mubr.f32.mxu0 0.0
    %2962 = vmatmul.mubr.f32.gmra.mrb[0].mxu0 %v2895
    %v2963 = vpop.f32.mrb[0].mxu0
    %v2964 = vadd.f32 0.0, %v2963
    %v2965 = vpop.f32.mrb[0].mxu0
    %2966 = vdwg.mxu0
    %v2967 = vrot.slane %v2222, 4
    %v2969 = vmul.f32 %v2964, %v2967
    %v2970 = vadd.f32 %v2891, %v2969
    %v2971 = vmul.f32 %v2404, %v2655
    %v2973 = vrot.slane %v2971, 6
    %v2974 = vsel %vm2412, %v2973, 0
    %2976 = vmatprep.subr.mxu0 0.0
    %2977 = vmatpush1.msra.mxu0 %v2417
    %2978 = vmatprep.subr.mxu0 0.0
    %2979 = vmatpush1.msra.mxu0 0.0
    %2980 = vmatprep.subr.mxu0 0.0
    %2981 = vmatpush1.msra.mxu0 0.0
    %2982 = vmatprep.subr.mxu0 0.0
    %2983 = vmatpush1.msra.mxu0 0.0
    %2984 = vmatprep.subr.mxu0 0.0
    %2985 = vmatpush1.msra.mxu0 0.0
    %2986 = vmatprep.subr.mxu0 0.0
    %2987 = vmatpush1.msra.mxu0 0.0
    %2988 = vmatprep.subr.mxu0 0.0
    %2989 = vmatpush1.msra.mxu0 0.0
    %2990 = vmatprep.subr.mxu0 0.0
    %2991 = vmatpush1.msra.mxu0 0.0
    %2992 = vmatprep.subr.mxu0 0.0
    %2993 = vmatpush1.msra.mxu0 0.0
    %2994 = vmatprep.subr.mxu0 0.0
    %2995 = vmatpush1.msra.mxu0 0.0
    %2996 = vmatprep.subr.mxu0 0.0
    %2997 = vmatpush1.msra.mxu0 0.0
    %2998 = vmatprep.subr.mxu0 0.0
    %2999 = vmatpush1.msra.mxu0 0.0
    %3000 = vmatprep.subr.mxu0 0.0
    %3001 = vmatpush1.msra.mxu0 0.0
    %3002 = vmatprep.subr.mxu0 0.0
    %3003 = vmatpush1.msra.mxu0 0.0
    %3004 = vmatprep.subr.mxu0 0.0
    %3005 = vmatpush1.msra.mxu0 0.0
    %3006 = vmatprep.subr.mxu0 0.0
    %3007 = vmatpush1.msra.mxu0 0.0
    %3008 = vmatprep.subr.mxu0 0.0
    %3009 = vmatpush1.msra.mxu0 0.0
    %3010 = vmatprep.subr.mxu0 0.0
    %3011 = vmatpush1.msra.mxu0 0.0
    %3012 = vmatprep.subr.mxu0 0.0
    %3013 = vmatpush1.msra.mxu0 0.0
    %3014 = vmatprep.subr.mxu0 0.0
    %3015 = vmatpush1.msra.mxu0 0.0
    %3016 = vmatprep.subr.mxu0 0.0
    %3017 = vmatpush1.msra.mxu0 0.0
    %3018 = vmatprep.subr.mxu0 0.0
    %3019 = vmatpush1.msra.mxu0 0.0
    %3020 = vmatprep.subr.mxu0 0.0
    %3021 = vmatpush1.msra.mxu0 0.0
    %3022 = vmatprep.subr.mxu0 0.0
    %3023 = vmatpush1.msra.mxu0 0.0
    %3024 = vmatprep.subr.mxu0 0.0
    %3025 = vmatpush1.msra.mxu0 0.0
    %3026 = vmatprep.subr.mxu0 0.0
    %3027 = vmatpush1.msra.mxu0 0.0
    %3028 = vmatprep.subr.mxu0 0.0
    %3029 = vmatpush1.msra.mxu0 0.0
    %3030 = vmatprep.subr.mxu0 0.0
    %3031 = vmatpush1.msra.mxu0 0.0
    %3032 = vmatprep.subr.mxu0 0.0
    %3033 = vmatpush1.msra.mxu0 0.0
    %3034 = vmatprep.subr.mxu0 0.0
    %3035 = vmatpush1.msra.mxu0 0.0
    %3036 = vmatprep.subr.mxu0 0.0
    %3037 = vmatpush1.msra.mxu0 0.0
    %3038 = vmatprep.subr.mxu0 0.0
    %3039 = vmatpush1.msra.mxu0 0.0
    %3040 = vmatprep.mubr.f32.mxu0 0.0
    %3041 = vmatmul.mubr.f32.gmra.mrb[0].mxu0 %v2974
    %v3042 = vpop.f32.mrb[0].mxu0
    %v3043 = vadd.f32 0.0, %v3042
    %v3044 = vpop.f32.mrb[0].mxu0
    %3045 = vdwg.mxu0
    %v3046 = vrot.slane %v2222, 6
    %v3048 = vmul.f32 %v3043, %v3046
    %v3049 = vadd.f32 %v2970, %v3048
    %v3050 = vld [vmem:[%s11] sm:$0xff]
    %v3051 = vld [vmem:[%s11 + $0x8] sm:$0xff]
    %v3052 = vld [vmem:[%s11 + $0x10] sm:$0xff]
    %v3053 = vld [vmem:[%s11 + $0x18] sm:$0xff]
    %v3054 = vld [vmem:[%s11 + $0x20] sm:$0xff]
    %v3055 = vld [vmem:[%s11 + $0x28] sm:$0xff]
    %v3056 = vld [vmem:[%s11 + $0x30] sm:$0xff]
    %v3057 = vld [vmem:[%s11 + $0x38] sm:$0xff]
    %v3058 = vld [vmem:[#allocation15] sm:$0x1]
    %v3060 = vlaneseq
    %v3061 = vshrl.u32 %v3060, 7
    %v3062 = vsub.s32 0, %v3061
    %v3063 = vrot.slane %v3058, %v3062
    %v3066 = vsel %vm349, %v3049, 0
    %3068 = vmatprep.subr.mxu0 0.0
    %3069 = vmatpush1.msra.mxu0 %v3050
    %3070 = vmatprep.subr.mxu0 0.0
    %3071 = vmatpush1.msra.mxu0 %v3051
    %3072 = vmatprep.subr.mxu0 0.0
    %3073 = vmatpush1.msra.mxu0 %v3052
    %3074 = vmatprep.subr.mxu0 0.0
    %3075 = vmatpush1.msra.mxu0 %v3053
    %3076 = vmatprep.subr.mxu0 0.0
    %3077 = vmatpush1.msra.mxu0 %v3054
    %3078 = vmatprep.subr.mxu0 0.0
    %3079 = vmatpush1.msra.mxu0 %v3055
    %3080 = vmatprep.subr.mxu0 0.0
    %3081 = vmatpush1.msra.mxu0 %v3056
    %3082 = vmatprep.subr.mxu0 0.0
    %3083 = vmatpush1.msra.mxu0 %v3057
    %3084 = vmatprep.subr.mxu0 0.0
    %3085 = vmatpush1.msra.mxu0 0.0
    %3086 = vmatprep.subr.mxu0 0.0
    %3087 = vmatpush1.msra.mxu0 0.0
    %3088 = vmatprep.subr.mxu0 0.0
    %3089 = vmatpush1.msra.mxu0 0.0
    %3090 = vmatprep.subr.mxu0 0.0
    %3091 = vmatpush1.msra.mxu0 0.0
    %3092 = vmatprep.subr.mxu0 0.0
    %3093 = vmatpush1.msra.mxu0 0.0
    %3094 = vmatprep.subr.mxu0 0.0
    %3095 = vmatpush1.msra.mxu0 0.0
    %3096 = vmatprep.subr.mxu0 0.0
    %3097 = vmatpush1.msra.mxu0 0.0
    %3098 = vmatprep.subr.mxu0 0.0
    %3099 = vmatpush1.msra.mxu0 0.0
    %3100 = vmatprep.subr.mxu0 0.0
    %3101 = vmatpush1.msra.mxu0 0.0
    %3102 = vmatprep.subr.mxu0 0.0
    %3103 = vmatpush1.msra.mxu0 0.0
    %3104 = vmatprep.subr.mxu0 0.0
    %3105 = vmatpush1.msra.mxu0 0.0
    %3106 = vmatprep.subr.mxu0 0.0
    %3107 = vmatpush1.msra.mxu0 0.0
    %3108 = vmatprep.subr.mxu0 0.0
    %3109 = vmatpush1.msra.mxu0 0.0
    %3110 = vmatprep.subr.mxu0 0.0
    %3111 = vmatpush1.msra.mxu0 0.0
    %3112 = vmatprep.subr.mxu0 0.0
    %3113 = vmatpush1.msra.mxu0 0.0
    %3114 = vmatprep.subr.mxu0 0.0
    %3115 = vmatpush1.msra.mxu0 0.0
    %3116 = vmatprep.subr.mxu0 0.0
    %3117 = vmatpush1.msra.mxu0 0.0
    %3118 = vmatprep.subr.mxu0 0.0
    %3119 = vmatpush1.msra.mxu0 0.0
    %3120 = vmatprep.subr.mxu0 0.0
    %3121 = vmatpush1.msra.mxu0 0.0
    %3122 = vmatprep.subr.mxu0 0.0
    %3123 = vmatpush1.msra.mxu0 0.0
    %3124 = vmatprep.subr.mxu0 0.0
    %3125 = vmatpush1.msra.mxu0 0.0
    %3126 = vmatprep.subr.mxu0 0.0
    %3127 = vmatpush1.msra.mxu0 0.0
    %3128 = vmatprep.subr.mxu0 0.0
    %3129 = vmatpush1.msra.mxu0 0.0
    %3130 = vmatprep.subr.mxu0 0.0
    %3131 = vmatpush1.msra.mxu0 0.0
    %3132 = vmatprep.mubr.f32.mxu0 0.0
    %3133 = vmatmul.mubr.f32.gmra.mrb[0].mxu0 %v3066
    %v3134 = vpop.f32.mrb[0].mxu0
    %v3135 = vadd.f32 %v3063, %v3134
    %v3136 = vpop.f32.mrb[0].mxu0
    %3137 = vdwg.mxu0
    %v3138 = vld [vmem:[%s15] sm:$0xff]
    %v3139 = vld [vmem:[%s15 + $0x8] sm:$0xff]
    %v3140 = vld [vmem:[%s15 + $0x10] sm:$0xff]
    %v3141 = vld [vmem:[%s15 + $0x18] sm:$0xff]
    %v3142 = vld [vmem:[%s15 + $0x20] sm:$0xff]
    %v3143 = vld [vmem:[%s15 + $0x28] sm:$0xff]
    %v3144 = vld [vmem:[%s15 + $0x30] sm:$0xff]
    %v3145 = vld [vmem:[%s15 + $0x38] sm:$0xff]
    %v3146 = vld [vmem:[%s16] sm:$0x1]
    %v3148 = vlaneseq
    %v3149 = vshrl.u32 %v3148, 7
    %v3150 = vsub.s32 0, %v3149
    %v3151 = vrot.slane %v3146, %v3150
    %v3154 = vsel %vm349, %v3135, 0
    %3156 = vmatprep.subr.mxu0 0.0
    %3157 = vmatpush1.msra.mxu0 %v3138
    %3158 = vmatprep.subr.mxu0 0.0
    %3159 = vmatpush1.msra.mxu0 %v3139
    %3160 = vmatprep.subr.mxu0 0.0
    %3161 = vmatpush1.msra.mxu0 %v3140
    %3162 = vmatprep.subr.mxu0 0.0
    %3163 = vmatpush1.msra.mxu0 %v3141
    %3164 = vmatprep.subr.mxu0 0.0
    %3165 = vmatpush1.msra.mxu0 %v3142
    %3166 = vmatprep.subr.mxu0 0.0
    %3167 = vmatpush1.msra.mxu0 %v3143
    %3168 = vmatprep.subr.mxu0 0.0
    %3169 = vmatpush1.msra.mxu0 %v3144
    %3170 = vmatprep.subr.mxu0 0.0
    %3171 = vmatpush1.msra.mxu0 %v3145
    %3172 = vmatprep.subr.mxu0 0.0
    %3173 = vmatpush1.msra.mxu0 0.0
    %3174 = vmatprep.subr.mxu0 0.0
    %3175 = vmatpush1.msra.mxu0 0.0
    %3176 = vmatprep.subr.mxu0 0.0
    %3177 = vmatpush1.msra.mxu0 0.0
    %3178 = vmatprep.subr.mxu0 0.0
    %3179 = vmatpush1.msra.mxu0 0.0
    %3180 = vmatprep.subr.mxu0 0.0
    %3181 = vmatpush1.msra.mxu0 0.0
    %3182 = vmatprep.subr.mxu0 0.0
    %3183 = vmatpush1.msra.mxu0 0.0
    %3184 = vmatprep.subr.mxu0 0.0
    %3185 = vmatpush1.msra.mxu0 0.0
    %3186 = vmatprep.subr.mxu0 0.0
    %3187 = vmatpush1.msra.mxu0 0.0
    %3188 = vmatprep.subr.mxu0 0.0
    %3189 = vmatpush1.msra.mxu0 0.0
    %3190 = vmatprep.subr.mxu0 0.0
    %3191 = vmatpush1.msra.mxu0 0.0
    %3192 = vmatprep.subr.mxu0 0.0
    %3193 = vmatpush1.msra.mxu0 0.0
    %3194 = vmatprep.subr.mxu0 0.0
    %3195 = vmatpush1.msra.mxu0 0.0
    %3196 = vmatprep.subr.mxu0 0.0
    %3197 = vmatpush1.msra.mxu0 0.0
    %3198 = vmatprep.subr.mxu0 0.0
    %3199 = vmatpush1.msra.mxu0 0.0
    %3200 = vmatprep.subr.mxu0 0.0
    %3201 = vmatpush1.msra.mxu0 0.0
    %3202 = vmatprep.subr.mxu0 0.0
    %3203 = vmatpush1.msra.mxu0 0.0
    %3204 = vmatprep.subr.mxu0 0.0
    %3205 = vmatpush1.msra.mxu0 0.0
    %3206 = vmatprep.subr.mxu0 0.0
    %3207 = vmatpush1.msra.mxu0 0.0
    %3208 = vmatprep.subr.mxu0 0.0
    %3209 = vmatpush1.msra.mxu0 0.0
    %3210 = vmatprep.subr.mxu0 0.0
    %3211 = vmatpush1.msra.mxu0 0.0
    %3212 = vmatprep.subr.mxu0 0.0
    %3213 = vmatpush1.msra.mxu0 0.0
    %3214 = vmatprep.subr.mxu0 0.0
    %3215 = vmatpush1.msra.mxu0 0.0
    %3216 = vmatprep.subr.mxu0 0.0
    %3217 = vmatpush1.msra.mxu0 0.0
    %3218 = vmatprep.subr.mxu0 0.0
    %3219 = vmatpush1.msra.mxu0 0.0
    %3220 = vmatprep.mubr.f32.mxu0 0.0
    %3221 = vmatmul.mubr.f32.gmra.mrb[0].mxu0 %v3154
    %v3222 = vpop.f32.mrb[0].mxu0
    %v3223 = vadd.f32 %v3151, %v3222
    %v3224 = vpop.f32.mrb[0].mxu0
    %3225 = vdwg.mxu0
    %v3226 = vmax.f32 %v3223, 0.0
    %v3227 = vld [vmem:[%s17] sm:$0xff]
    %v3228 = vld [vmem:[%s17 + $0x8] sm:$0xff]
    %v3229 = vld [vmem:[%s17 + $0x10] sm:$0xff]
    %v3230 = vld [vmem:[%s17 + $0x18] sm:$0xff]
    %v3231 = vld [vmem:[%s18] sm:$0x1]
    %v3233 = vlaneseq
    %v3234 = vshrl.u32 %v3233, 7
    %v3235 = vsub.s32 0, %v3234
    %v3236 = vrot.slane %v3231, %v3235
    %vm3238 = vcmask 261120
    %v3240 = vsel %vm3238, %v3226, 0
    %3242 = vmatprep.subr.mxu0 0.0
    %3243 = vmatpush1.msra.mxu0 %v3227
    %3244 = vmatprep.subr.mxu0 0.0
    %3245 = vmatpush1.msra.mxu0 %v3228
    %3246 = vmatprep.subr.mxu0 0.0
    %3247 = vmatpush1.msra.mxu0 %v3229
    %3248 = vmatprep.subr.mxu0 0.0
    %3249 = vmatpush1.msra.mxu0 %v3230
    %3250 = vmatprep.subr.mxu0 0.0
    %3251 = vmatpush1.msra.mxu0 0.0
    %3252 = vmatprep.subr.mxu0 0.0
    %3253 = vmatpush1.msra.mxu0 0.0
    %3254 = vmatprep.subr.mxu0 0.0
    %3255 = vmatpush1.msra.mxu0 0.0
    %3256 = vmatprep.subr.mxu0 0.0
    %3257 = vmatpush1.msra.mxu0 0.0
    %3258 = vmatprep.subr.mxu0 0.0
    %3259 = vmatpush1.msra.mxu0 0.0
    %3260 = vmatprep.subr.mxu0 0.0
    %3261 = vmatpush1.msra.mxu0 0.0
    %3262 = vmatprep.subr.mxu0 0.0
    %3263 = vmatpush1.msra.mxu0 0.0
    %3264 = vmatprep.subr.mxu0 0.0
    %3265 = vmatpush1.msra.mxu0 0.0
    %3266 = vmatprep.subr.mxu0 0.0
    %3267 = vmatpush1.msra.mxu0 0.0
    %3268 = vmatprep.subr.mxu0 0.0
    %3269 = vmatpush1.msra.mxu0 0.0
    %3270 = vmatprep.subr.mxu0 0.0
    %3271 = vmatpush1.msra.mxu0 0.0
    %3272 = vmatprep.subr.mxu0 0.0
    %3273 = vmatpush1.msra.mxu0 0.0
    %3274 = vmatprep.subr.mxu0 0.0
    %3275 = vmatpush1.msra.mxu0 0.0
    %3276 = vmatprep.subr.mxu0 0.0
    %3277 = vmatpush1.msra.mxu0 0.0
    %3278 = vmatprep.subr.mxu0 0.0
    %3279 = vmatpush1.msra.mxu0 0.0
    %3280 = vmatprep.subr.mxu0 0.0
    %3281 = vmatpush1.msra.mxu0 0.0
    %3282 = vmatprep.subr.mxu0 0.0
    %3283 = vmatpush1.msra.mxu0 0.0
    %3284 = vmatprep.subr.mxu0 0.0
    %3285 = vmatpush1.msra.mxu0 0.0
    %3286 = vmatprep.subr.mxu0 0.0
    %3287 = vmatpush1.msra.mxu0 0.0
    %3288 = vmatprep.subr.mxu0 0.0
    %3289 = vmatpush1.msra.mxu0 0.0
    %3290 = vmatprep.subr.mxu0 0.0
    %3291 = vmatpush1.msra.mxu0 0.0
    %3292 = vmatprep.subr.mxu0 0.0
    %3293 = vmatpush1.msra.mxu0 0.0
    %3294 = vmatprep.subr.mxu0 0.0
    %3295 = vmatpush1.msra.mxu0 0.0
    %3296 = vmatprep.subr.mxu0 0.0
    %3297 = vmatpush1.msra.mxu0 0.0
    %3298 = vmatprep.subr.mxu0 0.0
    %3299 = vmatpush1.msra.mxu0 0.0
    %3300 = vmatprep.subr.mxu0 0.0
    %3301 = vmatpush1.msra.mxu0 0.0
    %3302 = vmatprep.subr.mxu0 0.0
    %3303 = vmatpush1.msra.mxu0 0.0
    %3304 = vmatprep.subr.mxu0 0.0
    %3305 = vmatpush1.msra.mxu0 0.0
    %3306 = vmatprep.mubr.f32.mxu0 0.0
    %3307 = vmatmul.mubr.f32.gmra.mrb[0].mxu0 %v3240
    %v3308 = vpop.f32.mrb[0].mxu0
    %v3309 = vadd.f32 %v3236, %v3308
    %v3310 = vpop.f32.mrb[0].mxu0
    %3311 = vdwg.mxu0
    %vm3312 = vcmask 17408
    %3313 = vst.msk [vmem:[#allocation17] sm:$0x3] %vm3312, %v3309
    // Predicated region
    $region110: #{lstm_model_forward.1} parent=1 // pred_check
      _
    $region111: #{lstm_model_forward.1} parent=1 // pred_check_branch
      %3315 = sbr.rel (0) target = $region113
    $region112: #{lstm_model_forward.1} parent=1 // pred_region
      %s3317 = ssub.s32 32, 32
      %3318 = vsyncadd [#allocation5], %s3317
      %s3320 = sshll.u32 [#allocation17], 4
      %s3321 = int_to_ptr.vmem [resolvable:$true] %s3320
      %3323 = dma.vmem_to_hbm [thread:$0]  %s3321, 32, %s19, [#allocation5]
    $region113: #{lstm_model_forward.1} parent=1 // pred_fallthru
      _
    // Predicated region
    $region114: #{lstm_model_forward.1} parent=1 // pred_check
      _
    $region115: #{lstm_model_forward.1} parent=1 // pred_check_branch
      %3325 = sbr.rel (0) target = $region117
    $region116: #{lstm_model_forward.1} parent=1 // pred_region
      %3326 = dma.done [#allocation5], 32
    $region117: #{lstm_model_forward.1} parent=1 // pred_fallthru
      _
    %3327 = vsyncpa [#allocation4], 1
    %3328 = vsyncpa [#allocation7], 1
    %3329 = vsyncpa [#allocation10], 1
    %3330 = vsyncpa [#allocation13], 1
    %3331 = vsyncpa [#allocation16], 1
    %3332 = vsyncpa [#allocation5], 1

</llo_original>
